<compile_context>
chip_gen: v7x
topology: tpu7x:2x2x1
jax: 0.10.0
libtpu: 0.0.40
codegen_flags: <defaults>
</compile_context>

<pallas_src>
import math

import jax
import jax.numpy as jnp
from jax.experimental import pallas as pl
from jax.experimental.pallas import tpu as pltpu

# ---- model hyper-params (small, consistent with BertConfig in DetectBERT.__init__) ----
HIDDEN = 32            # embs_model.config.hidden_size (small synthetic value)
HEADS = 4              # num_attention_heads (must divide HIDDEN)
HEAD_DIM = HIDDEN // HEADS
LAYERS = 2             # num_hidden_layers (small synthetic value)
INTERMEDIATE = 4 * HIDDEN
NUM_LABELS = 14        # len(BertForLineClassification.statement_type)
CLS_PAD = 128          # classifier output padded to lane-dense width (vreg lanes)
MAX_LINES = 1024       # max_position_embeddings
LINES = 8              # number of lines per example "function"
BATCH = 2              # number of functions per call (grid axis)
LN_EPS = 1e-12         # HF BertConfig default layer_norm_eps


# ----------------------------- in-kernel helpers -----------------------------
def _layernorm(x, gamma, beta):
    # var = E[x^2] - mean^2: the two cross-lane reductions are independent, so they
    # can dual-issue on the XLUs instead of serializing a second (x-mean)^2 pass.
    mean = jnp.mean(x, axis=-1, keepdims=True)
    mean_sq = jnp.mean(x * x, axis=-1, keepdims=True)
    var = mean_sq - mean * mean
    inv = jax.lax.rsqrt(var + LN_EPS)          # rsqrt rides the EUP slot
    return (x - mean) * inv * gamma + beta


def _gelu(x):
    # TODO(synk): HF BERT default is exact erf-GELU; tanh-approx used for Mosaic lowering.
    return 0.5 * x * (1.0 + jnp.tanh(0.7978845608028654 * (x + 0.044715 * x * x * x)))


def _tree_sum(vals):
    # Pairwise tree reduction keeps the per-head chains independent (no running sum).
    while len(vals) > 1:
        nxt = [vals[i] + vals[i + 1] for i in range(0, len(vals) - 1, 2)]
        if len(vals) % 2:
            nxt.append(vals[-1])
        vals = nxt
    return vals[0]


# ----------------------------- fused Pallas kernel -----------------------------
def detectbert_kernel(x_ref, pos_ref, eg_ref, eb_ref,
                      wqkv_ref, bqkv_ref, wo_ref, bo_ref, ag_ref, ab_ref,
                      w1_ref, b1_ref, w2_ref, b2_ref, fg_ref, fb_ref,
                      cw_ref, cb_ref, o_ref):
    # ---- BertEmbeddings (inputs_embeds path) ----
    # token_type_embeddings[0] is pre-folded into pos_ref; dropout = identity (inference).
    x = _layernorm(x_ref[...] + pos_ref[...], eg_ref[...], eb_ref[...])

    # ---- encoder layers, statically unrolled; stacked weights stay resident in VMEM ----
    # TODO(synk): static unroll is fine at L=8; switch to lax.fori_loop / flash-style
    # query tiling before scaling L toward MAX_LINES=1024 (unbounded [L,L] live ranges).
    for l in range(LAYERS):
        # fused QKV projection: one [L,H] x [H,3H] matmul instead of three
        qkv = jnp.dot(x, wqkv_ref[l], preferred_element_type=jnp.float32) + bqkv_ref[l]
        wo = wo_ref[l]

        # Independent per-head chains. The 1/sqrt(head_dim) scale is pre-folded into the
        # Q columns of wqkv, so scores need no extra multiply. No attention_mask: matches
        # the PyTorch path where BertModel builds an all-ones mask for inputs_embeds.
        ctxs = []
        for h in range(HEADS):
            qh = qkv[:, h * HEAD_DIM:(h + 1) * HEAD_DIM]
            kh = qkv[:, HIDDEN + h * HEAD_DIM:HIDDEN + (h + 1) * HEAD_DIM]
            vh = qkv[:, 2 * HIDDEN + h * HEAD_DIM:2 * HIDDEN + (h + 1) * HEAD_DIM]
            scores = jax.lax.dot_general(
                qh, kh, (((1,), (1,)), ((), ())),
                preferred_element_type=jnp.float32)
            m = jnp.max(scores, axis=-1, keepdims=True)
            p = jnp.exp(scores - m)
            inv = pl.reciprocal(jnp.sum(p, axis=-1, keepdims=True), approx=True)
            # normalize after the PV matmul (one [L,HEAD_DIM] mul, off the score tile)
            ctxs.append(jnp.dot(p, vh, preferred_element_type=jnp.float32) * inv)

        # Output projection folded per head: ctx @ Wo == sum_h ctx_h @ Wo[h*hd:(h+1)*hd,:].
        # The dots are kept back-to-back with no interleaved VPU adds (v7x MRB can
        # accumulate); contributions tree-summed afterwards.
        outs = [jnp.dot(ctxs[h], wo[h * HEAD_DIM:(h + 1) * HEAD_DIM, :],
                        preferred_element_type=jnp.float32) for h in range(HEADS)]
        attn = _tree_sum(outs)
        # TODO(synk): attention/output dropout skipped (inference semantics).
        x = _layernorm(attn + bo_ref[l] + x, ag_ref[l], ab_ref[l])

        # ---- FFN ----
        hdn = _gelu(jnp.dot(x, w1_ref[l], preferred_element_type=jnp.float32) + b1_ref[l])
        y = jnp.dot(hdn, w2_ref[l], preferred_element_type=jnp.float32) + b2_ref[l]
        x = _layernorm(y + x, fg_ref[l], fb_ref[l])

    # ---- classifier (padded to CLS_PAD lanes -> unmasked, lane-dense store) ----
    # classifier dropout skipped (inference); logits = x @ Wc_pad + bc_pad
    o_ref[...] = jnp.dot(x, cw_ref[...], preferred_element_type=jnp.float32) + cb_ref[...]


# ----------------------------- JAX wrapper -----------------------------
@jax.jit
def detectbert_line_classifier(line_embeddings, params):
    """BertForLineClassification.forward(inputs_embeds=line_embeddings) -> logits.

    line_embeddings: [B, L, H]  (B functions, each with L per-line CLS embeddings;
                                 the original PyTorch module is the B=1 case)
    returns logits:  [B, L, NUM_LABELS]
    """
    B, L, H = line_embeddings.shape
    pos = params["pos_tok_emb"][:L]             # position ids assumed 0..L-1, type ids 0

    weight_args = (pos, params["emb_ln_g"], params["emb_ln_b"],
                   params["wqkv"], params["bqkv"], params["wo"], params["bo"],
                   params["attn_ln_g"], params["attn_ln_b"],
                   params["w1"], params["b1"], params["w2"], params["b2"],
                   params["ffn_ln_g"], params["ffn_ln_b"],
                   params["cls_w"], params["cls_b"])

    def const_spec(a):
        # full-extent block, constant index_map -> fetched once, VMEM-resident across
        # all grid steps.
        return pl.BlockSpec(a.shape, lambda b, _nd=a.ndim: (0,) * _nd)

    in_specs = ([pl.BlockSpec((None, L, H), lambda b: (b, 0, 0))] +
                [const_spec(a) for a in weight_args])
    out_spec = pl.BlockSpec((None, L, CLS_PAD), lambda b: (b, 0, 0))

    logits_pad = pl.pallas_call(
        detectbert_kernel,
        out_shape=jax.ShapeDtypeStruct((B, L, CLS_PAD), jnp.float32),
        grid=(B,),
        in_specs=in_specs,
        out_specs=out_spec,
        compiler_params=pltpu.CompilerParams(dimension_semantics=("parallel",)),
    )(line_embeddings, *weight_args)
    # TODO(synk): CrossEntropyLoss path not taken (labels/class_weight are None here).
    return logits_pad[..., :NUM_LABELS]          # [B, L, NUM_LABELS]


# ----------------------------- pure-JAX reference (validation) -----------------------------
def detectbert_reference(line_embeddings, params):
    def ln(x, g, b):
        m = jnp.mean(x, axis=-1, keepdims=True)
        v = jnp.mean((x - m) ** 2, axis=-1, keepdims=True)
        return (x - m) / jnp.sqrt(v + LN_EPS) * g + b

    B, L, _ = line_embeddings.shape
    x = ln(line_embeddings + params["pos_tok_emb"][:L][None],
           params["emb_ln_g"], params["emb_ln_b"])
    for l in range(LAYERS):
        qkv = x @ params["wqkv"][l] + params["bqkv"][l]
        q, k, v = jnp.split(qkv, 3, axis=-1)
        q = q.reshape(B, L, HEADS, HEAD_DIM).transpose(0, 2, 1, 3)
        k = k.reshape(B, L, HEADS, HEAD_DIM).transpose(0, 2, 1, 3)
        v = v.reshape(B, L, HEADS, HEAD_DIM).transpose(0, 2, 1, 3)
        s = q @ k.transpose(0, 1, 3, 2)          # scale already folded into Q weights
        p = jax.nn.softmax(s, axis=-1)
        ctx = (p @ v).transpose(0, 2, 1, 3).reshape(B, L, HIDDEN)
        attn = ctx @ params["wo"][l] + params["bo"][l]
        x = ln(attn + x, params["attn_ln_g"][l], params["attn_ln_b"][l])
        h = _gelu(x @ params["w1"][l] + params["b1"][l])
        y = h @ params["w2"][l] + params["b2"][l]
        x = ln(y + x, params["ffn_ln_g"][l], params["ffn_ln_b"][l])
    return (x @ params["cls_w"] + params["cls_b"])[..., :NUM_LABELS]


# ----------------------------- deterministic param init -----------------------------
def init_params(key):
    keys = iter(jax.random.split(key, 16))

    def nrm(shape):
        return 0.02 * jax.random.normal(next(keys), shape, jnp.float32)

    pos_emb = nrm((MAX_LINES, HIDDEN))
    tok_emb = nrm((1, HIDDEN))                   # token_type_embeddings[0]

    # fold the attention 1/sqrt(head_dim) scale into the Q columns (exact)
    scale = 1.0 / math.sqrt(HEAD_DIM)
    wqkv = nrm((LAYERS, HIDDEN, 3 * HIDDEN))
    wqkv = wqkv.at[:, :, :HIDDEN].multiply(scale)
    bqkv = jnp.zeros((LAYERS, 1, 3 * HIDDEN), jnp.float32)
    bqkv = bqkv.at[:, :, :HIDDEN].multiply(scale)

    cls_w = jnp.zeros((HIDDEN, CLS_PAD), jnp.float32)
    cls_w = cls_w.at[:, :NUM_LABELS].set(nrm((HIDDEN, NUM_LABELS)))

    return dict(
        # token_type_embeddings[0] pre-folded into pos emb (type ids are constant 0)
        pos_tok_emb=pos_emb + tok_emb,
        emb_ln_g=jnp.ones((1, HIDDEN), jnp.float32),
        emb_ln_b=jnp.zeros((1, HIDDEN), jnp.float32),
        # per-layer weights stacked along a leading LAYERS axis; Wq/Wk/Wv fused -> [H, 3H]
        wqkv=wqkv,
        bqkv=bqkv,
        wo=nrm((LAYERS, HIDDEN, HIDDEN)),
        bo=jnp.zeros((LAYERS, 1, HIDDEN), jnp.float32),
        attn_ln_g=jnp.ones((LAYERS, 1, HIDDEN), jnp.float32),
        attn_ln_b=jnp.zeros((LAYERS, 1, HIDDEN), jnp.float32),
        w1=nrm((LAYERS, HIDDEN, INTERMEDIATE)),
        b1=jnp.zeros((LAYERS, 1, INTERMEDIATE), jnp.float32),
        w2=nrm((LAYERS, INTERMEDIATE, HIDDEN)),
        b2=jnp.zeros((LAYERS, 1, HIDDEN), jnp.float32),
        ffn_ln_g=jnp.ones((LAYERS, 1, HIDDEN), jnp.float32),
        ffn_ln_b=jnp.zeros((LAYERS, 1, HIDDEN), jnp.float32),
        # classifier padded to CLS_PAD lanes (extra columns zero, sliced off in wrapper)
        cls_w=cls_w,
        cls_b=jnp.zeros((1, CLS_PAD), jnp.float32),
    )


if __name__ == "__main__":
    key = jax.random.PRNGKey(0)
    k_emb, k_params = jax.random.split(key)
    # Synthetic per-line CLS embeddings (stand-in for tokenizer + embs_model output).
    line_embeddings = jax.random.normal(k_emb, (BATCH, LINES, HIDDEN), jnp.float32)
    params = init_params(k_params)

    logits = detectbert_line_classifier(line_embeddings, params)
    jax.block_until_ready(logits)
    assert logits.shape == (BATCH, LINES, NUM_LABELS)
    assert bool(jnp.all(jnp.isfinite(logits)))

    # validate against the pure-JAX reference (approx reciprocal / E[x^2]-mean^2 drift)
    ref = detectbert_reference(line_embeddings, params)
    assert bool(jnp.allclose(logits, ref, rtol=1e-3, atol=1e-3)), \
        float(jnp.max(jnp.abs(logits - ref)))

    print("KERNEL_OK")
</pallas_src>

<mosaic_0001>
module attributes {stable_mosaic.version = 11 : i64} {
  func.func @detectbert_kernel(%arg0: i32, %arg1: memref<1x8x32xf32, #tpu.memory_space<vmem>>, %arg2: memref<8x32xf32, #tpu.memory_space<vmem>>, %arg3: memref<1x32xf32, #tpu.memory_space<vmem>>, %arg4: memref<1x32xf32, #tpu.memory_space<vmem>>, %arg5: memref<2x32x96xf32, #tpu.memory_space<vmem>>, %arg6: memref<2x1x96xf32, #tpu.memory_space<vmem>>, %arg7: memref<2x32x32xf32, #tpu.memory_space<vmem>>, %arg8: memref<2x1x32xf32, #tpu.memory_space<vmem>>, %arg9: memref<2x1x32xf32, #tpu.memory_space<vmem>>, %arg10: memref<2x1x32xf32, #tpu.memory_space<vmem>>, %arg11: memref<2x32x128xf32, #tpu.memory_space<vmem>>, %arg12: memref<2x1x128xf32, #tpu.memory_space<vmem>>, %arg13: memref<2x128x32xf32, #tpu.memory_space<vmem>>, %arg14: memref<2x1x32xf32, #tpu.memory_space<vmem>>, %arg15: memref<2x1x32xf32, #tpu.memory_space<vmem>>, %arg16: memref<2x1x32xf32, #tpu.memory_space<vmem>>, %arg17: memref<32x128xf32, #tpu.memory_space<vmem>>, %arg18: memref<1x128xf32, #tpu.memory_space<vmem>>, %arg19: memref<1x8x128xf32, #tpu.memory_space<vmem>>) attributes {dimension_semantics = [#tpu.dimension_semantics<parallel>], iteration_bounds = array<i64: 2>, scalar_prefetch = 0 : i64, scratch_operands = 0 : i64, tpu.core_type = #tpu.core_type<tc>, window_params = [{transform_indices = @transform_0, window_bounds = array<i64: 1, 8, 32>}, {pipeline_mode = #tpu.pipeline_mode<synchronous>, transform_indices = @transform_1, window_bounds = array<i64: 8, 32>}, {pipeline_mode = #tpu.pipeline_mode<synchronous>, transform_indices = @transform_2, window_bounds = array<i64: 1, 32>}, {pipeline_mode = #tpu.pipeline_mode<synchronous>, transform_indices = @transform_3, window_bounds = array<i64: 1, 32>}, {pipeline_mode = #tpu.pipeline_mode<synchronous>, transform_indices = @transform_4, window_bounds = array<i64: 2, 32, 96>}, {pipeline_mode = #tpu.pipeline_mode<synchronous>, transform_indices = @transform_5, window_bounds = array<i64: 2, 1, 96>}, {pipeline_mode = #tpu.pipeline_mode<synchronous>, transform_indices = @transform_6, window_bounds = array<i64: 2, 32, 32>}, {pipeline_mode = #tpu.pipeline_mode<synchronous>, transform_indices = @transform_7, window_bounds = array<i64: 2, 1, 32>}, {pipeline_mode = #tpu.pipeline_mode<synchronous>, transform_indices = @transform_8, window_bounds = array<i64: 2, 1, 32>}, {pipeline_mode = #tpu.pipeline_mode<synchronous>, transform_indices = @transform_9, window_bounds = array<i64: 2, 1, 32>}, {pipeline_mode = #tpu.pipeline_mode<synchronous>, transform_indices = @transform_10, window_bounds = array<i64: 2, 32, 128>}, {pipeline_mode = #tpu.pipeline_mode<synchronous>, transform_indices = @transform_11, window_bounds = array<i64: 2, 1, 128>}, {pipeline_mode = #tpu.pipeline_mode<synchronous>, transform_indices = @transform_12, window_bounds = array<i64: 2, 128, 32>}, {pipeline_mode = #tpu.pipeline_mode<synchronous>, transform_indices = @transform_13, window_bounds = array<i64: 2, 1, 32>}, {pipeline_mode = #tpu.pipeline_mode<synchronous>, transform_indices = @transform_14, window_bounds = array<i64: 2, 1, 32>}, {pipeline_mode = #tpu.pipeline_mode<synchronous>, transform_indices = @transform_15, window_bounds = array<i64: 2, 1, 32>}, {pipeline_mode = #tpu.pipeline_mode<synchronous>, transform_indices = @transform_16, window_bounds = array<i64: 32, 128>}, {pipeline_mode = #tpu.pipeline_mode<synchronous>, transform_indices = @transform_17, window_bounds = array<i64: 1, 128>}, {transform_indices = @transform_18, window_bounds = array<i64: 1, 8, 128>}]} {
    %c0 = arith.constant 0 : index
    %c0_0 = arith.constant 0 : index
    %c0_1 = arith.constant 0 : index
    %0 = vector.load %arg1[%c0, %c0_0, %c0_1] : memref<1x8x32xf32, #tpu.memory_space<vmem>>, vector<1x8x32xf32>
    %1 = vector.shape_cast %0 : vector<1x8x32xf32> to vector<8x32xf32>
    %c0_2 = arith.constant 0 : index
    %c0_3 = arith.constant 0 : index
    %2 = vector.load %arg2[%c0_2, %c0_3] : memref<8x32xf32, #tpu.memory_space<vmem>>, vector<8x32xf32>
    %3 = arith.addf %1, %2 : vector<8x32xf32>
    %c0_4 = arith.constant 0 : index
    %c0_5 = arith.constant 0 : index
    %4 = vector.load %arg3[%c0_4, %c0_5] : memref<1x32xf32, #tpu.memory_space<vmem>>, vector<1x32xf32>
    %c0_6 = arith.constant 0 : index
    %c0_7 = arith.constant 0 : index
    %5 = vector.load %arg4[%c0_6, %c0_7] : memref<1x32xf32, #tpu.memory_space<vmem>>, vector<1x32xf32>
    %cst = arith.constant dense<0.000000e+00> : vector<8xf32>
    %6 = vector.multi_reduction <add>, %3, %cst [1] : vector<8x32xf32> to vector<8xf32>
    %7 = vector.shape_cast %6 : vector<8xf32> to vector<8x1xf32>
    %cst_8 = arith.constant 3.200000e+01 : f32
    %8 = vector.broadcast %cst_8 : f32 to vector<8x1xf32>
    %9 = arith.divf %7, %8 : vector<8x1xf32>
    %10 = arith.mulf %3, %3 : vector<8x32xf32>
    %cst_9 = arith.constant dense<0.000000e+00> : vector<8xf32>
    %11 = vector.multi_reduction <add>, %10, %cst_9 [1] : vector<8x32xf32> to vector<8xf32>
    %12 = vector.shape_cast %11 : vector<8xf32> to vector<8x1xf32>
    %cst_10 = arith.constant 3.200000e+01 : f32
    %13 = vector.broadcast %cst_10 : f32 to vector<8x1xf32>
    %14 = arith.divf %12, %13 : vector<8x1xf32>
    %15 = arith.mulf %9, %9 : vector<8x1xf32>
    %16 = arith.subf %14, %15 : vector<8x1xf32>
    %cst_11 = arith.constant 9.99999996E-13 : f32
    %17 = vector.broadcast %cst_11 : f32 to vector<8x1xf32>
    %18 = arith.addf %16, %17 : vector<8x1xf32>
    %19 = math.rsqrt %18 : vector<8x1xf32>
    %20 = vector.broadcast %9 : vector<8x1xf32> to vector<8x32xf32>
    %21 = arith.subf %3, %20 : vector<8x32xf32>
    %22 = vector.broadcast %19 : vector<8x1xf32> to vector<8x32xf32>
    %23 = arith.mulf %21, %22 : vector<8x32xf32>
    %24 = vector.broadcast %4 : vector<1x32xf32> to vector<8x32xf32>
    %25 = arith.mulf %23, %24 : vector<8x32xf32>
    %26 = vector.broadcast %5 : vector<1x32xf32> to vector<8x32xf32>
    %27 = arith.addf %25, %26 : vector<8x32xf32>
    %c0_12 = arith.constant 0 : index
    %c0_13 = arith.constant 0 : index
    %c0_14 = arith.constant 0 : index
    %28 = vector.load %arg5[%c0_12, %c0_13, %c0_14] : memref<2x32x96xf32, #tpu.memory_space<vmem>>, vector<1x32x96xf32>
    %29 = vector.shape_cast %28 : vector<1x32x96xf32> to vector<32x96xf32>
    %cst_15 = arith.constant dense<0.000000e+00> : vector<8x96xf32>
    %30 = tpu.matmul %27, %29, %cst_15 {dimension_numbers = #tpu.dot_dimension_numbers<[1], [0], [0], [1], [0, 0, 1, 1], [], []>} : vector<8x32xf32>, vector<32x96xf32>, vector<8x96xf32> -> vector<8x96xf32>
    %c0_16 = arith.constant 0 : index
    %c0_17 = arith.constant 0 : index
    %c0_18 = arith.constant 0 : index
    %31 = vector.load %arg6[%c0_16, %c0_17, %c0_18] : memref<2x1x96xf32, #tpu.memory_space<vmem>>, vector<1x1x96xf32>
    %32 = vector.shape_cast %31 : vector<1x1x96xf32> to vector<1x96xf32>
    %33 = vector.broadcast %32 : vector<1x96xf32> to vector<8x96xf32>
    %34 = arith.addf %30, %33 : vector<8x96xf32>
    %c0_19 = arith.constant 0 : index
    %c0_20 = arith.constant 0 : index
    %c0_21 = arith.constant 0 : index
    %35 = vector.load %arg7[%c0_19, %c0_20, %c0_21] : memref<2x32x32xf32, #tpu.memory_space<vmem>>, vector<1x32x32xf32>
    %36 = vector.shape_cast %35 : vector<1x32x32xf32> to vector<32x32xf32>
    %37 = vector.extract_strided_slice %34 {offsets = [0, 0], sizes = [8, 8], strides = [1, 1]} : vector<8x96xf32> to vector<8x8xf32>
    %38 = vector.extract_strided_slice %34 {offsets = [0, 32], sizes = [8, 8], strides = [1, 1]} : vector<8x96xf32> to vector<8x8xf32>
    %39 = vector.extract_strided_slice %34 {offsets = [0, 64], sizes = [8, 8], strides = [1, 1]} : vector<8x96xf32> to vector<8x8xf32>
    %cst_22 = arith.constant dense<0.000000e+00> : vector<8x8xf32>
    %40 = tpu.matmul %37, %38, %cst_22 {dimension_numbers = #tpu.dot_dimension_numbers<[1], [1], [0], [0], [0, 0, 1, 0], [], []>} : vector<8x8xf32>, vector<8x8xf32>, vector<8x8xf32> -> vector<8x8xf32>
    %cst_23 = arith.constant dense<0xFF800000> : vector<8xf32>
    %41 = vector.multi_reduction <maximumf>, %40, %cst_23 [1] : vector<8x8xf32> to vector<8xf32>
    %42 = vector.shape_cast %41 : vector<8xf32> to vector<8x1xf32>
    %43 = vector.broadcast %42 : vector<8x1xf32> to vector<8x8xf32>
    %44 = arith.subf %40, %43 : vector<8x8xf32>
    %45 = math.exp %44 : vector<8x8xf32>
    %cst_24 = arith.constant dense<0.000000e+00> : vector<8xf32>
    %46 = vector.multi_reduction <add>, %45, %cst_24 [1] : vector<8x8xf32> to vector<8xf32>
    %47 = vector.shape_cast %46 : vector<8xf32> to vector<8x1xf32>
    %48 = tpu.reciprocal %47 {approx = true} : vector<8x1xf32> -> vector<8x1xf32>
    %cst_25 = arith.constant dense<0.000000e+00> : vector<8x8xf32>
    %49 = tpu.matmul %45, %39, %cst_25 {dimension_numbers = #tpu.dot_dimension_numbers<[1], [0], [0], [1], [0, 0, 1, 1], [], []>} : vector<8x8xf32>, vector<8x8xf32>, vector<8x8xf32> -> vector<8x8xf32>
    %50 = vector.broadcast %48 : vector<8x1xf32> to vector<8x8xf32>
    %51 = arith.mulf %49, %50 : vector<8x8xf32>
    %52 = vector.extract_strided_slice %34 {offsets = [0, 8], sizes = [8, 8], strides = [1, 1]} : vector<8x96xf32> to vector<8x8xf32>
    %53 = vector.extract_strided_slice %34 {offsets = [0, 40], sizes = [8, 8], strides = [1, 1]} : vector<8x96xf32> to vector<8x8xf32>
    %54 = vector.extract_strided_slice %34 {offsets = [0, 72], sizes = [8, 8], strides = [1, 1]} : vector<8x96xf32> to vector<8x8xf32>
    %cst_26 = arith.constant dense<0.000000e+00> : vector<8x8xf32>
    %55 = tpu.matmul %52, %53, %cst_26 {dimension_numbers = #tpu.dot_dimension_numbers<[1], [1], [0], [0], [0, 0, 1, 0], [], []>} : vector<8x8xf32>, vector<8x8xf32>, vector<8x8xf32> -> vector<8x8xf32>
    %cst_27 = arith.constant dense<0xFF800000> : vector<8xf32>
    %56 = vector.multi_reduction <maximumf>, %55, %cst_27 [1] : vector<8x8xf32> to vector<8xf32>
    %57 = vector.shape_cast %56 : vector<8xf32> to vector<8x1xf32>
    %58 = vector.broadcast %57 : vector<8x1xf32> to vector<8x8xf32>
    %59 = arith.subf %55, %58 : vector<8x8xf32>
    %60 = math.exp %59 : vector<8x8xf32>
    %cst_28 = arith.constant dense<0.000000e+00> : vector<8xf32>
    %61 = vector.multi_reduction <add>, %60, %cst_28 [1] : vector<8x8xf32> to vector<8xf32>
    %62 = vector.shape_cast %61 : vector<8xf32> to vector<8x1xf32>
    %63 = tpu.reciprocal %62 {approx = true} : vector<8x1xf32> -> vector<8x1xf32>
    %cst_29 = arith.constant dense<0.000000e+00> : vector<8x8xf32>
    %64 = tpu.matmul %60, %54, %cst_29 {dimension_numbers = #tpu.dot_dimension_numbers<[1], [0], [0], [1], [0, 0, 1, 1], [], []>} : vector<8x8xf32>, vector<8x8xf32>, vector<8x8xf32> -> vector<8x8xf32>
    %65 = vector.broadcast %63 : vector<8x1xf32> to vector<8x8xf32>
    %66 = arith.mulf %64, %65 : vector<8x8xf32>
    %67 = vector.extract_strided_slice %34 {offsets = [0, 16], sizes = [8, 8], strides = [1, 1]} : vector<8x96xf32> to vector<8x8xf32>
    %68 = vector.extract_strided_slice %34 {offsets = [0, 48], sizes = [8, 8], strides = [1, 1]} : vector<8x96xf32> to vector<8x8xf32>
    %69 = vector.extract_strided_slice %34 {offsets = [0, 80], sizes = [8, 8], strides = [1, 1]} : vector<8x96xf32> to vector<8x8xf32>
    %cst_30 = arith.constant dense<0.000000e+00> : vector<8x8xf32>
    %70 = tpu.matmul %67, %68, %cst_30 {dimension_numbers = #tpu.dot_dimension_numbers<[1], [1], [0], [0], [0, 0, 1, 0], [], []>} : vector<8x8xf32>, vector<8x8xf32>, vector<8x8xf32> -> vector<8x8xf32>
    %cst_31 = arith.constant dense<0xFF800000> : vector<8xf32>
    %71 = vector.multi_reduction <maximumf>, %70, %cst_31 [1] : vector<8x8xf32> to vector<8xf32>
    %72 = vector.shape_cast %71 : vector<8xf32> to vector<8x1xf32>
    %73 = vector.broadcast %72 : vector<8x1xf32> to vector<8x8xf32>
    %74 = arith.subf %70, %73 : vector<8x8xf32>
    %75 = math.exp %74 : vector<8x8xf32>
    %cst_32 = arith.constant dense<0.000000e+00> : vector<8xf32>
    %76 = vector.multi_reduction <add>, %75, %cst_32 [1] : vector<8x8xf32> to vector<8xf32>
    %77 = vector.shape_cast %76 : vector<8xf32> to vector<8x1xf32>
    %78 = tpu.reciprocal %77 {approx = true} : vector<8x1xf32> -> vector<8x1xf32>
    %cst_33 = arith.constant dense<0.000000e+00> : vector<8x8xf32>
    %79 = tpu.matmul %75, %69, %cst_33 {dimension_numbers = #tpu.dot_dimension_numbers<[1], [0], [0], [1], [0, 0, 1, 1], [], []>} : vector<8x8xf32>, vector<8x8xf32>, vector<8x8xf32> -> vector<8x8xf32>
    %80 = vector.broadcast %78 : vector<8x1xf32> to vector<8x8xf32>
    %81 = arith.mulf %79, %80 : vector<8x8xf32>
    %82 = vector.extract_strided_slice %34 {offsets = [0, 24], sizes = [8, 8], strides = [1, 1]} : vector<8x96xf32> to vector<8x8xf32>
    %83 = vector.extract_strided_slice %34 {offsets = [0, 56], sizes = [8, 8], strides = [1, 1]} : vector<8x96xf32> to vector<8x8xf32>
    %84 = vector.extract_strided_slice %34 {offsets = [0, 88], sizes = [8, 8], strides = [1, 1]} : vector<8x96xf32> to vector<8x8xf32>
    %cst_34 = arith.constant dense<0.000000e+00> : vector<8x8xf32>
    %85 = tpu.matmul %82, %83, %cst_34 {dimension_numbers = #tpu.dot_dimension_numbers<[1], [1], [0], [0], [0, 0, 1, 0], [], []>} : vector<8x8xf32>, vector<8x8xf32>, vector<8x8xf32> -> vector<8x8xf32>
    %cst_35 = arith.constant dense<0xFF800000> : vector<8xf32>
    %86 = vector.multi_reduction <maximumf>, %85, %cst_35 [1] : vector<8x8xf32> to vector<8xf32>
    %87 = vector.shape_cast %86 : vector<8xf32> to vector<8x1xf32>
    %88 = vector.broadcast %87 : vector<8x1xf32> to vector<8x8xf32>
    %89 = arith.subf %85, %88 : vector<8x8xf32>
    %90 = math.exp %89 : vector<8x8xf32>
    %cst_36 = arith.constant dense<0.000000e+00> : vector<8xf32>
    %91 = vector.multi_reduction <add>, %90, %cst_36 [1] : vector<8x8xf32> to vector<8xf32>
    %92 = vector.shape_cast %91 : vector<8xf32> to vector<8x1xf32>
    %93 = tpu.reciprocal %92 {approx = true} : vector<8x1xf32> -> vector<8x1xf32>
    %cst_37 = arith.constant dense<0.000000e+00> : vector<8x8xf32>
    %94 = tpu.matmul %90, %84, %cst_37 {dimension_numbers = #tpu.dot_dimension_numbers<[1], [0], [0], [1], [0, 0, 1, 1], [], []>} : vector<8x8xf32>, vector<8x8xf32>, vector<8x8xf32> -> vector<8x8xf32>
    %95 = vector.broadcast %93 : vector<8x1xf32> to vector<8x8xf32>
    %96 = arith.mulf %94, %95 : vector<8x8xf32>
    %97 = vector.extract_strided_slice %36 {offsets = [0, 0], sizes = [8, 32], strides = [1, 1]} : vector<32x32xf32> to vector<8x32xf32>
    %cst_38 = arith.constant dense<0.000000e+00> : vector<8x32xf32>
    %98 = tpu.matmul %51, %97, %cst_38 {dimension_numbers = #tpu.dot_dimension_numbers<[1], [0], [0], [1], [0, 0, 1, 1], [], []>} : vector<8x8xf32>, vector<8x32xf32>, vector<8x32xf32> -> vector<8x32xf32>
    %99 = vector.extract_strided_slice %36 {offsets = [8, 0], sizes = [8, 32], strides = [1, 1]} : vector<32x32xf32> to vector<8x32xf32>
    %cst_39 = arith.constant dense<0.000000e+00> : vector<8x32xf32>
    %100 = tpu.matmul %66, %99, %cst_39 {dimension_numbers = #tpu.dot_dimension_numbers<[1], [0], [0], [1], [0, 0, 1, 1], [], []>} : vector<8x8xf32>, vector<8x32xf32>, vector<8x32xf32> -> vector<8x32xf32>
    %101 = vector.extract_strided_slice %36 {offsets = [16, 0], sizes = [8, 32], strides = [1, 1]} : vector<32x32xf32> to vector<8x32xf32>
    %cst_40 = arith.constant dense<0.000000e+00> : vector<8x32xf32>
    %102 = tpu.matmul %81, %101, %cst_40 {dimension_numbers = #tpu.dot_dimension_numbers<[1], [0], [0], [1], [0, 0, 1, 1], [], []>} : vector<8x8xf32>, vector<8x32xf32>, vector<8x32xf32> -> vector<8x32xf32>
    %103 = vector.extract_strided_slice %36 {offsets = [24, 0], sizes = [8, 32], strides = [1, 1]} : vector<32x32xf32> to vector<8x32xf32>
    %cst_41 = arith.constant dense<0.000000e+00> : vector<8x32xf32>
    %104 = tpu.matmul %96, %103, %cst_41 {dimension_numbers = #tpu.dot_dimension_numbers<[1], [0], [0], [1], [0, 0, 1, 1], [], []>} : vector<8x8xf32>, vector<8x32xf32>, vector<8x32xf32> -> vector<8x32xf32>
    %105 = arith.addf %98, %100 : vector<8x32xf32>
    %106 = arith.addf %102, %104 : vector<8x32xf32>
    %107 = arith.addf %105, %106 : vector<8x32xf32>
    %c0_42 = arith.constant 0 : index
    %c0_43 = arith.constant 0 : index
    %c0_44 = arith.constant 0 : index
    %108 = vector.load %arg8[%c0_42, %c0_43, %c0_44] : memref<2x1x32xf32, #tpu.memory_space<vmem>>, vector<1x1x32xf32>
    %109 = vector.shape_cast %108 : vector<1x1x32xf32> to vector<1x32xf32>
    %110 = vector.broadcast %109 : vector<1x32xf32> to vector<8x32xf32>
    %111 = arith.addf %107, %110 : vector<8x32xf32>
    %112 = arith.addf %111, %27 : vector<8x32xf32>
    %c0_45 = arith.constant 0 : index
    %c0_46 = arith.constant 0 : index
    %c0_47 = arith.constant 0 : index
    %113 = vector.load %arg9[%c0_45, %c0_46, %c0_47] : memref<2x1x32xf32, #tpu.memory_space<vmem>>, vector<1x1x32xf32>
    %114 = vector.shape_cast %113 : vector<1x1x32xf32> to vector<1x32xf32>
    %c0_48 = arith.constant 0 : index
    %c0_49 = arith.constant 0 : index
    %c0_50 = arith.constant 0 : index
    %115 = vector.load %arg10[%c0_48, %c0_49, %c0_50] : memref<2x1x32xf32, #tpu.memory_space<vmem>>, vector<1x1x32xf32>
    %116 = vector.shape_cast %115 : vector<1x1x32xf32> to vector<1x32xf32>
    %cst_51 = arith.constant dense<0.000000e+00> : vector<8xf32>
    %117 = vector.multi_reduction <add>, %112, %cst_51 [1] : vector<8x32xf32> to vector<8xf32>
    %118 = vector.shape_cast %117 : vector<8xf32> to vector<8x1xf32>
    %cst_52 = arith.constant 3.200000e+01 : f32
    %119 = vector.broadcast %cst_52 : f32 to vector<8x1xf32>
    %120 = arith.divf %118, %119 : vector<8x1xf32>
    %121 = arith.mulf %112, %112 : vector<8x32xf32>
    %cst_53 = arith.constant dense<0.000000e+00> : vector<8xf32>
    %122 = vector.multi_reduction <add>, %121, %cst_53 [1] : vector<8x32xf32> to vector<8xf32>
    %123 = vector.shape_cast %122 : vector<8xf32> to vector<8x1xf32>
    %cst_54 = arith.constant 3.200000e+01 : f32
    %124 = vector.broadcast %cst_54 : f32 to vector<8x1xf32>
    %125 = arith.divf %123, %124 : vector<8x1xf32>
    %126 = arith.mulf %120, %120 : vector<8x1xf32>
    %127 = arith.subf %125, %126 : vector<8x1xf32>
    %cst_55 = arith.constant 9.99999996E-13 : f32
    %128 = vector.broadcast %cst_55 : f32 to vector<8x1xf32>
    %129 = arith.addf %127, %128 : vector<8x1xf32>
    %130 = math.rsqrt %129 : vector<8x1xf32>
    %131 = vector.broadcast %120 : vector<8x1xf32> to vector<8x32xf32>
    %132 = arith.subf %112, %131 : vector<8x32xf32>
    %133 = vector.broadcast %130 : vector<8x1xf32> to vector<8x32xf32>
    %134 = arith.mulf %132, %133 : vector<8x32xf32>
    %135 = vector.broadcast %114 : vector<1x32xf32> to vector<8x32xf32>
    %136 = arith.mulf %134, %135 : vector<8x32xf32>
    %137 = vector.broadcast %116 : vector<1x32xf32> to vector<8x32xf32>
    %138 = arith.addf %136, %137 : vector<8x32xf32>
    %c0_56 = arith.constant 0 : index
    %c0_57 = arith.constant 0 : index
    %c0_58 = arith.constant 0 : index
    %139 = vector.load %arg11[%c0_56, %c0_57, %c0_58] : memref<2x32x128xf32, #tpu.memory_space<vmem>>, vector<1x32x128xf32>
    %140 = vector.shape_cast %139 : vector<1x32x128xf32> to vector<32x128xf32>
    %cst_59 = arith.constant dense<0.000000e+00> : vector<8x128xf32>
    %141 = tpu.matmul %138, %140, %cst_59 {dimension_numbers = #tpu.dot_dimension_numbers<[1], [0], [0], [1], [0, 0, 1, 1], [], []>} : vector<8x32xf32>, vector<32x128xf32>, vector<8x128xf32> -> vector<8x128xf32>
    %c0_60 = arith.constant 0 : index
    %c0_61 = arith.constant 0 : index
    %c0_62 = arith.constant 0 : index
    %142 = vector.load %arg12[%c0_60, %c0_61, %c0_62] : memref<2x1x128xf32, #tpu.memory_space<vmem>>, vector<1x1x128xf32>
    %143 = vector.shape_cast %142 : vector<1x1x128xf32> to vector<1x128xf32>
    %144 = vector.broadcast %143 : vector<1x128xf32> to vector<8x128xf32>
    %145 = arith.addf %141, %144 : vector<8x128xf32>
    %cst_63 = arith.constant 5.000000e-01 : f32
    %146 = vector.broadcast %cst_63 : f32 to vector<8x128xf32>
    %147 = arith.mulf %146, %145 : vector<8x128xf32>
    %cst_64 = arith.constant 4.471500e-02 : f32
    %148 = vector.broadcast %cst_64 : f32 to vector<8x128xf32>
    %149 = arith.mulf %148, %145 : vector<8x128xf32>
    %150 = arith.mulf %149, %145 : vector<8x128xf32>
    %151 = arith.mulf %150, %145 : vector<8x128xf32>
    %152 = arith.addf %145, %151 : vector<8x128xf32>
    %cst_65 = arith.constant 0.797884583 : f32
    %153 = vector.broadcast %cst_65 : f32 to vector<8x128xf32>
    %154 = arith.mulf %153, %152 : vector<8x128xf32>
    %155 = math.tanh %154 : vector<8x128xf32>
    %cst_66 = arith.constant 1.000000e+00 : f32
    %156 = vector.broadcast %cst_66 : f32 to vector<8x128xf32>
    %157 = arith.addf %156, %155 : vector<8x128xf32>
    %158 = arith.mulf %147, %157 : vector<8x128xf32>
    %c0_67 = arith.constant 0 : index
    %c0_68 = arith.constant 0 : index
    %c0_69 = arith.constant 0 : index
    %159 = vector.load %arg13[%c0_67, %c0_68, %c0_69] : memref<2x128x32xf32, #tpu.memory_space<vmem>>, vector<1x128x32xf32>
    %160 = vector.shape_cast %159 : vector<1x128x32xf32> to vector<128x32xf32>
    %cst_70 = arith.constant dense<0.000000e+00> : vector<8x32xf32>
    %161 = tpu.matmul %158, %160, %cst_70 {dimension_numbers = #tpu.dot_dimension_numbers<[1], [0], [0], [1], [0, 0, 1, 1], [], []>} : vector<8x128xf32>, vector<128x32xf32>, vector<8x32xf32> -> vector<8x32xf32>
    %c0_71 = arith.constant 0 : index
    %c0_72 = arith.constant 0 : index
    %c0_73 = arith.constant 0 : index
    %162 = vector.load %arg14[%c0_71, %c0_72, %c0_73] : memref<2x1x32xf32, #tpu.memory_space<vmem>>, vector<1x1x32xf32>
    %163 = vector.shape_cast %162 : vector<1x1x32xf32> to vector<1x32xf32>
    %164 = vector.broadcast %163 : vector<1x32xf32> to vector<8x32xf32>
    %165 = arith.addf %161, %164 : vector<8x32xf32>
    %166 = arith.addf %165, %138 : vector<8x32xf32>
    %c0_74 = arith.constant 0 : index
    %c0_75 = arith.constant 0 : index
    %c0_76 = arith.constant 0 : index
    %167 = vector.load %arg15[%c0_74, %c0_75, %c0_76] : memref<2x1x32xf32, #tpu.memory_space<vmem>>, vector<1x1x32xf32>
    %168 = vector.shape_cast %167 : vector<1x1x32xf32> to vector<1x32xf32>
    %c0_77 = arith.constant 0 : index
    %c0_78 = arith.constant 0 : index
    %c0_79 = arith.constant 0 : index
    %169 = vector.load %arg16[%c0_77, %c0_78, %c0_79] : memref<2x1x32xf32, #tpu.memory_space<vmem>>, vector<1x1x32xf32>
    %170 = vector.shape_cast %169 : vector<1x1x32xf32> to vector<1x32xf32>
    %cst_80 = arith.constant dense<0.000000e+00> : vector<8xf32>
    %171 = vector.multi_reduction <add>, %166, %cst_80 [1] : vector<8x32xf32> to vector<8xf32>
    %172 = vector.shape_cast %171 : vector<8xf32> to vector<8x1xf32>
    %cst_81 = arith.constant 3.200000e+01 : f32
    %173 = vector.broadcast %cst_81 : f32 to vector<8x1xf32>
    %174 = arith.divf %172, %173 : vector<8x1xf32>
    %175 = arith.mulf %166, %166 : vector<8x32xf32>
    %cst_82 = arith.constant dense<0.000000e+00> : vector<8xf32>
    %176 = vector.multi_reduction <add>, %175, %cst_82 [1] : vector<8x32xf32> to vector<8xf32>
    %177 = vector.shape_cast %176 : vector<8xf32> to vector<8x1xf32>
    %cst_83 = arith.constant 3.200000e+01 : f32
    %178 = vector.broadcast %cst_83 : f32 to vector<8x1xf32>
    %179 = arith.divf %177, %178 : vector<8x1xf32>
    %180 = arith.mulf %174, %174 : vector<8x1xf32>
    %181 = arith.subf %179, %180 : vector<8x1xf32>
    %cst_84 = arith.constant 9.99999996E-13 : f32
    %182 = vector.broadcast %cst_84 : f32 to vector<8x1xf32>
    %183 = arith.addf %181, %182 : vector<8x1xf32>
    %184 = math.rsqrt %183 : vector<8x1xf32>
    %185 = vector.broadcast %174 : vector<8x1xf32> to vector<8x32xf32>
    %186 = arith.subf %166, %185 : vector<8x32xf32>
    %187 = vector.broadcast %184 : vector<8x1xf32> to vector<8x32xf32>
    %188 = arith.mulf %186, %187 : vector<8x32xf32>
    %189 = vector.broadcast %168 : vector<1x32xf32> to vector<8x32xf32>
    %190 = arith.mulf %188, %189 : vector<8x32xf32>
    %191 = vector.broadcast %170 : vector<1x32xf32> to vector<8x32xf32>
    %192 = arith.addf %190, %191 : vector<8x32xf32>
    %c1 = arith.constant 1 : index
    %c0_85 = arith.constant 0 : index
    %c0_86 = arith.constant 0 : index
    %193 = vector.load %arg5[%c1, %c0_85, %c0_86] : memref<2x32x96xf32, #tpu.memory_space<vmem>>, vector<1x32x96xf32>
    %194 = vector.shape_cast %193 : vector<1x32x96xf32> to vector<32x96xf32>
    %cst_87 = arith.constant dense<0.000000e+00> : vector<8x96xf32>
    %195 = tpu.matmul %192, %194, %cst_87 {dimension_numbers = #tpu.dot_dimension_numbers<[1], [0], [0], [1], [0, 0, 1, 1], [], []>} : vector<8x32xf32>, vector<32x96xf32>, vector<8x96xf32> -> vector<8x96xf32>
    %c1_88 = arith.constant 1 : index
    %c0_89 = arith.constant 0 : index
    %c0_90 = arith.constant 0 : index
    %196 = vector.load %arg6[%c1_88, %c0_89, %c0_90] : memref<2x1x96xf32, #tpu.memory_space<vmem>>, vector<1x1x96xf32>
    %197 = vector.shape_cast %196 : vector<1x1x96xf32> to vector<1x96xf32>
    %198 = vector.broadcast %197 : vector<1x96xf32> to vector<8x96xf32>
    %199 = arith.addf %195, %198 : vector<8x96xf32>
    %c1_91 = arith.constant 1 : index
    %c0_92 = arith.constant 0 : index
    %c0_93 = arith.constant 0 : index
    %200 = vector.load %arg7[%c1_91, %c0_92, %c0_93] : memref<2x32x32xf32, #tpu.memory_space<vmem>>, vector<1x32x32xf32>
    %201 = vector.shape_cast %200 : vector<1x32x32xf32> to vector<32x32xf32>
    %202 = vector.extract_strided_slice %199 {offsets = [0, 0], sizes = [8, 8], strides = [1, 1]} : vector<8x96xf32> to vector<8x8xf32>
    %203 = vector.extract_strided_slice %199 {offsets = [0, 32], sizes = [8, 8], strides = [1, 1]} : vector<8x96xf32> to vector<8x8xf32>
    %204 = vector.extract_strided_slice %199 {offsets = [0, 64], sizes = [8, 8], strides = [1, 1]} : vector<8x96xf32> to vector<8x8xf32>
    %cst_94 = arith.constant dense<0.000000e+00> : vector<8x8xf32>
    %205 = tpu.matmul %202, %203, %cst_94 {dimension_numbers = #tpu.dot_dimension_numbers<[1], [1], [0], [0], [0, 0, 1, 0], [], []>} : vector<8x8xf32>, vector<8x8xf32>, vector<8x8xf32> -> vector<8x8xf32>
    %cst_95 = arith.constant dense<0xFF800000> : vector<8xf32>
    %206 = vector.multi_reduction <maximumf>, %205, %cst_95 [1] : vector<8x8xf32> to vector<8xf32>
    %207 = vector.shape_cast %206 : vector<8xf32> to vector<8x1xf32>
    %208 = vector.broadcast %207 : vector<8x1xf32> to vector<8x8xf32>
    %209 = arith.subf %205, %208 : vector<8x8xf32>
    %210 = math.exp %209 : vector<8x8xf32>
    %cst_96 = arith.constant dense<0.000000e+00> : vector<8xf32>
    %211 = vector.multi_reduction <add>, %210, %cst_96 [1] : vector<8x8xf32> to vector<8xf32>
    %212 = vector.shape_cast %211 : vector<8xf32> to vector<8x1xf32>
    %213 = tpu.reciprocal %212 {approx = true} : vector<8x1xf32> -> vector<8x1xf32>
    %cst_97 = arith.constant dense<0.000000e+00> : vector<8x8xf32>
    %214 = tpu.matmul %210, %204, %cst_97 {dimension_numbers = #tpu.dot_dimension_numbers<[1], [0], [0], [1], [0, 0, 1, 1], [], []>} : vector<8x8xf32>, vector<8x8xf32>, vector<8x8xf32> -> vector<8x8xf32>
    %215 = vector.broadcast %213 : vector<8x1xf32> to vector<8x8xf32>
    %216 = arith.mulf %214, %215 : vector<8x8xf32>
    %217 = vector.extract_strided_slice %199 {offsets = [0, 8], sizes = [8, 8], strides = [1, 1]} : vector<8x96xf32> to vector<8x8xf32>
    %218 = vector.extract_strided_slice %199 {offsets = [0, 40], sizes = [8, 8], strides = [1, 1]} : vector<8x96xf32> to vector<8x8xf32>
    %219 = vector.extract_strided_slice %199 {offsets = [0, 72], sizes = [8, 8], strides = [1, 1]} : vector<8x96xf32> to vector<8x8xf32>
    %cst_98 = arith.constant dense<0.000000e+00> : vector<8x8xf32>
    %220 = tpu.matmul %217, %218, %cst_98 {dimension_numbers = #tpu.dot_dimension_numbers<[1], [1], [0], [0], [0, 0, 1, 0], [], []>} : vector<8x8xf32>, vector<8x8xf32>, vector<8x8xf32> -> vector<8x8xf32>
    %cst_99 = arith.constant dense<0xFF800000> : vector<8xf32>
    %221 = vector.multi_reduction <maximumf>, %220, %cst_99 [1] : vector<8x8xf32> to vector<8xf32>
    %222 = vector.shape_cast %221 : vector<8xf32> to vector<8x1xf32>
    %223 = vector.broadcast %222 : vector<8x1xf32> to vector<8x8xf32>
    %224 = arith.subf %220, %223 : vector<8x8xf32>
    %225 = math.exp %224 : vector<8x8xf32>
    %cst_100 = arith.constant dense<0.000000e+00> : vector<8xf32>
    %226 = vector.multi_reduction <add>, %225, %cst_100 [1] : vector<8x8xf32> to vector<8xf32>
    %227 = vector.shape_cast %226 : vector<8xf32> to vector<8x1xf32>
    %228 = tpu.reciprocal %227 {approx = true} : vector<8x1xf32> -> vector<8x1xf32>
    %cst_101 = arith.constant dense<0.000000e+00> : vector<8x8xf32>
    %229 = tpu.matmul %225, %219, %cst_101 {dimension_numbers = #tpu.dot_dimension_numbers<[1], [0], [0], [1], [0, 0, 1, 1], [], []>} : vector<8x8xf32>, vector<8x8xf32>, vector<8x8xf32> -> vector<8x8xf32>
    %230 = vector.broadcast %228 : vector<8x1xf32> to vector<8x8xf32>
    %231 = arith.mulf %229, %230 : vector<8x8xf32>
    %232 = vector.extract_strided_slice %199 {offsets = [0, 16], sizes = [8, 8], strides = [1, 1]} : vector<8x96xf32> to vector<8x8xf32>
    %233 = vector.extract_strided_slice %199 {offsets = [0, 48], sizes = [8, 8], strides = [1, 1]} : vector<8x96xf32> to vector<8x8xf32>
    %234 = vector.extract_strided_slice %199 {offsets = [0, 80], sizes = [8, 8], strides = [1, 1]} : vector<8x96xf32> to vector<8x8xf32>
    %cst_102 = arith.constant dense<0.000000e+00> : vector<8x8xf32>
    %235 = tpu.matmul %232, %233, %cst_102 {dimension_numbers = #tpu.dot_dimension_numbers<[1], [1], [0], [0], [0, 0, 1, 0], [], []>} : vector<8x8xf32>, vector<8x8xf32>, vector<8x8xf32> -> vector<8x8xf32>
    %cst_103 = arith.constant dense<0xFF800000> : vector<8xf32>
    %236 = vector.multi_reduction <maximumf>, %235, %cst_103 [1] : vector<8x8xf32> to vector<8xf32>
    %237 = vector.shape_cast %236 : vector<8xf32> to vector<8x1xf32>
    %238 = vector.broadcast %237 : vector<8x1xf32> to vector<8x8xf32>
    %239 = arith.subf %235, %238 : vector<8x8xf32>
    %240 = math.exp %239 : vector<8x8xf32>
    %cst_104 = arith.constant dense<0.000000e+00> : vector<8xf32>
    %241 = vector.multi_reduction <add>, %240, %cst_104 [1] : vector<8x8xf32> to vector<8xf32>
    %242 = vector.shape_cast %241 : vector<8xf32> to vector<8x1xf32>
    %243 = tpu.reciprocal %242 {approx = true} : vector<8x1xf32> -> vector<8x1xf32>
    %cst_105 = arith.constant dense<0.000000e+00> : vector<8x8xf32>
    %244 = tpu.matmul %240, %234, %cst_105 {dimension_numbers = #tpu.dot_dimension_numbers<[1], [0], [0], [1], [0, 0, 1, 1], [], []>} : vector<8x8xf32>, vector<8x8xf32>, vector<8x8xf32> -> vector<8x8xf32>
    %245 = vector.broadcast %243 : vector<8x1xf32> to vector<8x8xf32>
    %246 = arith.mulf %244, %245 : vector<8x8xf32>
    %247 = vector.extract_strided_slice %199 {offsets = [0, 24], sizes = [8, 8], strides = [1, 1]} : vector<8x96xf32> to vector<8x8xf32>
    %248 = vector.extract_strided_slice %199 {offsets = [0, 56], sizes = [8, 8], strides = [1, 1]} : vector<8x96xf32> to vector<8x8xf32>
    %249 = vector.extract_strided_slice %199 {offsets = [0, 88], sizes = [8, 8], strides = [1, 1]} : vector<8x96xf32> to vector<8x8xf32>
    %cst_106 = arith.constant dense<0.000000e+00> : vector<8x8xf32>
    %250 = tpu.matmul %247, %248, %cst_106 {dimension_numbers = #tpu.dot_dimension_numbers<[1], [1], [0], [0], [0, 0, 1, 0], [], []>} : vector<8x8xf32>, vector<8x8xf32>, vector<8x8xf32> -> vector<8x8xf32>
    %cst_107 = arith.constant dense<0xFF800000> : vector<8xf32>
    %251 = vector.multi_reduction <maximumf>, %250, %cst_107 [1] : vector<8x8xf32> to vector<8xf32>
    %252 = vector.shape_cast %251 : vector<8xf32> to vector<8x1xf32>
    %253 = vector.broadcast %252 : vector<8x1xf32> to vector<8x8xf32>
    %254 = arith.subf %250, %253 : vector<8x8xf32>
    %255 = math.exp %254 : vector<8x8xf32>
    %cst_108 = arith.constant dense<0.000000e+00> : vector<8xf32>
    %256 = vector.multi_reduction <add>, %255, %cst_108 [1] : vector<8x8xf32> to vector<8xf32>
    %257 = vector.shape_cast %256 : vector<8xf32> to vector<8x1xf32>
    %258 = tpu.reciprocal %257 {approx = true} : vector<8x1xf32> -> vector<8x1xf32>
    %cst_109 = arith.constant dense<0.000000e+00> : vector<8x8xf32>
    %259 = tpu.matmul %255, %249, %cst_109 {dimension_numbers = #tpu.dot_dimension_numbers<[1], [0], [0], [1], [0, 0, 1, 1], [], []>} : vector<8x8xf32>, vector<8x8xf32>, vector<8x8xf32> -> vector<8x8xf32>
    %260 = vector.broadcast %258 : vector<8x1xf32> to vector<8x8xf32>
    %261 = arith.mulf %259, %260 : vector<8x8xf32>
    %262 = vector.extract_strided_slice %201 {offsets = [0, 0], sizes = [8, 32], strides = [1, 1]} : vector<32x32xf32> to vector<8x32xf32>
    %cst_110 = arith.constant dense<0.000000e+00> : vector<8x32xf32>
    %263 = tpu.matmul %216, %262, %cst_110 {dimension_numbers = #tpu.dot_dimension_numbers<[1], [0], [0], [1], [0, 0, 1, 1], [], []>} : vector<8x8xf32>, vector<8x32xf32>, vector<8x32xf32> -> vector<8x32xf32>
    %264 = vector.extract_strided_slice %201 {offsets = [8, 0], sizes = [8, 32], strides = [1, 1]} : vector<32x32xf32> to vector<8x32xf32>
    %cst_111 = arith.constant dense<0.000000e+00> : vector<8x32xf32>
    %265 = tpu.matmul %231, %264, %cst_111 {dimension_numbers = #tpu.dot_dimension_numbers<[1], [0], [0], [1], [0, 0, 1, 1], [], []>} : vector<8x8xf32>, vector<8x32xf32>, vector<8x32xf32> -> vector<8x32xf32>
    %266 = vector.extract_strided_slice %201 {offsets = [16, 0], sizes = [8, 32], strides = [1, 1]} : vector<32x32xf32> to vector<8x32xf32>
    %cst_112 = arith.constant dense<0.000000e+00> : vector<8x32xf32>
    %267 = tpu.matmul %246, %266, %cst_112 {dimension_numbers = #tpu.dot_dimension_numbers<[1], [0], [0], [1], [0, 0, 1, 1], [], []>} : vector<8x8xf32>, vector<8x32xf32>, vector<8x32xf32> -> vector<8x32xf32>
    %268 = vector.extract_strided_slice %201 {offsets = [24, 0], sizes = [8, 32], strides = [1, 1]} : vector<32x32xf32> to vector<8x32xf32>
    %cst_113 = arith.constant dense<0.000000e+00> : vector<8x32xf32>
    %269 = tpu.matmul %261, %268, %cst_113 {dimension_numbers = #tpu.dot_dimension_numbers<[1], [0], [0], [1], [0, 0, 1, 1], [], []>} : vector<8x8xf32>, vector<8x32xf32>, vector<8x32xf32> -> vector<8x32xf32>
    %270 = arith.addf %263, %265 : vector<8x32xf32>
    %271 = arith.addf %267, %269 : vector<8x32xf32>
    %272 = arith.addf %270, %271 : vector<8x32xf32>
    %c1_114 = arith.constant 1 : index
    %c0_115 = arith.constant 0 : index
    %c0_116 = arith.constant 0 : index
    %273 = vector.load %arg8[%c1_114, %c0_115, %c0_116] : memref<2x1x32xf32, #tpu.memory_space<vmem>>, vector<1x1x32xf32>
    %274 = vector.shape_cast %273 : vector<1x1x32xf32> to vector<1x32xf32>
    %275 = vector.broadcast %274 : vector<1x32xf32> to vector<8x32xf32>
    %276 = arith.addf %272, %275 : vector<8x32xf32>
    %277 = arith.addf %276, %192 : vector<8x32xf32>
    %c1_117 = arith.constant 1 : index
    %c0_118 = arith.constant 0 : index
    %c0_119 = arith.constant 0 : index
    %278 = vector.load %arg9[%c1_117, %c0_118, %c0_119] : memref<2x1x32xf32, #tpu.memory_space<vmem>>, vector<1x1x32xf32>
    %279 = vector.shape_cast %278 : vector<1x1x32xf32> to vector<1x32xf32>
    %c1_120 = arith.constant 1 : index
    %c0_121 = arith.constant 0 : index
    %c0_122 = arith.constant 0 : index
    %280 = vector.load %arg10[%c1_120, %c0_121, %c0_122] : memref<2x1x32xf32, #tpu.memory_space<vmem>>, vector<1x1x32xf32>
    %281 = vector.shape_cast %280 : vector<1x1x32xf32> to vector<1x32xf32>
    %cst_123 = arith.constant dense<0.000000e+00> : vector<8xf32>
    %282 = vector.multi_reduction <add>, %277, %cst_123 [1] : vector<8x32xf32> to vector<8xf32>
    %283 = vector.shape_cast %282 : vector<8xf32> to vector<8x1xf32>
    %cst_124 = arith.constant 3.200000e+01 : f32
    %284 = vector.broadcast %cst_124 : f32 to vector<8x1xf32>
    %285 = arith.divf %283, %284 : vector<8x1xf32>
    %286 = arith.mulf %277, %277 : vector<8x32xf32>
    %cst_125 = arith.constant dense<0.000000e+00> : vector<8xf32>
    %287 = vector.multi_reduction <add>, %286, %cst_125 [1] : vector<8x32xf32> to vector<8xf32>
    %288 = vector.shape_cast %287 : vector<8xf32> to vector<8x1xf32>
    %cst_126 = arith.constant 3.200000e+01 : f32
    %289 = vector.broadcast %cst_126 : f32 to vector<8x1xf32>
    %290 = arith.divf %288, %289 : vector<8x1xf32>
    %291 = arith.mulf %285, %285 : vector<8x1xf32>
    %292 = arith.subf %290, %291 : vector<8x1xf32>
    %cst_127 = arith.constant 9.99999996E-13 : f32
    %293 = vector.broadcast %cst_127 : f32 to vector<8x1xf32>
    %294 = arith.addf %292, %293 : vector<8x1xf32>
    %295 = math.rsqrt %294 : vector<8x1xf32>
    %296 = vector.broadcast %285 : vector<8x1xf32> to vector<8x32xf32>
    %297 = arith.subf %277, %296 : vector<8x32xf32>
    %298 = vector.broadcast %295 : vector<8x1xf32> to vector<8x32xf32>
    %299 = arith.mulf %297, %298 : vector<8x32xf32>
    %300 = vector.broadcast %279 : vector<1x32xf32> to vector<8x32xf32>
    %301 = arith.mulf %299, %300 : vector<8x32xf32>
    %302 = vector.broadcast %281 : vector<1x32xf32> to vector<8x32xf32>
    %303 = arith.addf %301, %302 : vector<8x32xf32>
    %c1_128 = arith.constant 1 : index
    %c0_129 = arith.constant 0 : index
    %c0_130 = arith.constant 0 : index
    %304 = vector.load %arg11[%c1_128, %c0_129, %c0_130] : memref<2x32x128xf32, #tpu.memory_space<vmem>>, vector<1x32x128xf32>
    %305 = vector.shape_cast %304 : vector<1x32x128xf32> to vector<32x128xf32>
    %cst_131 = arith.constant dense<0.000000e+00> : vector<8x128xf32>
    %306 = tpu.matmul %303, %305, %cst_131 {dimension_numbers = #tpu.dot_dimension_numbers<[1], [0], [0], [1], [0, 0, 1, 1], [], []>} : vector<8x32xf32>, vector<32x128xf32>, vector<8x128xf32> -> vector<8x128xf32>
    %c1_132 = arith.constant 1 : index
    %c0_133 = arith.constant 0 : index
    %c0_134 = arith.constant 0 : index
    %307 = vector.load %arg12[%c1_132, %c0_133, %c0_134] : memref<2x1x128xf32, #tpu.memory_space<vmem>>, vector<1x1x128xf32>
    %308 = vector.shape_cast %307 : vector<1x1x128xf32> to vector<1x128xf32>
    %309 = vector.broadcast %308 : vector<1x128xf32> to vector<8x128xf32>
    %310 = arith.addf %306, %309 : vector<8x128xf32>
    %cst_135 = arith.constant 5.000000e-01 : f32
    %311 = vector.broadcast %cst_135 : f32 to vector<8x128xf32>
    %312 = arith.mulf %311, %310 : vector<8x128xf32>
    %cst_136 = arith.constant 4.471500e-02 : f32
    %313 = vector.broadcast %cst_136 : f32 to vector<8x128xf32>
    %314 = arith.mulf %313, %310 : vector<8x128xf32>
    %315 = arith.mulf %314, %310 : vector<8x128xf32>
    %316 = arith.mulf %315, %310 : vector<8x128xf32>
    %317 = arith.addf %310, %316 : vector<8x128xf32>
    %cst_137 = arith.constant 0.797884583 : f32
    %318 = vector.broadcast %cst_137 : f32 to vector<8x128xf32>
    %319 = arith.mulf %318, %317 : vector<8x128xf32>
    %320 = math.tanh %319 : vector<8x128xf32>
    %cst_138 = arith.constant 1.000000e+00 : f32
    %321 = vector.broadcast %cst_138 : f32 to vector<8x128xf32>
    %322 = arith.addf %321, %320 : vector<8x128xf32>
    %323 = arith.mulf %312, %322 : vector<8x128xf32>
    %c1_139 = arith.constant 1 : index
    %c0_140 = arith.constant 0 : index
    %c0_141 = arith.constant 0 : index
    %324 = vector.load %arg13[%c1_139, %c0_140, %c0_141] : memref<2x128x32xf32, #tpu.memory_space<vmem>>, vector<1x128x32xf32>
    %325 = vector.shape_cast %324 : vector<1x128x32xf32> to vector<128x32xf32>
    %cst_142 = arith.constant dense<0.000000e+00> : vector<8x32xf32>
    %326 = tpu.matmul %323, %325, %cst_142 {dimension_numbers = #tpu.dot_dimension_numbers<[1], [0], [0], [1], [0, 0, 1, 1], [], []>} : vector<8x128xf32>, vector<128x32xf32>, vector<8x32xf32> -> vector<8x32xf32>
    %c1_143 = arith.constant 1 : index
    %c0_144 = arith.constant 0 : index
    %c0_145 = arith.constant 0 : index
    %327 = vector.load %arg14[%c1_143, %c0_144, %c0_145] : memref<2x1x32xf32, #tpu.memory_space<vmem>>, vector<1x1x32xf32>
    %328 = vector.shape_cast %327 : vector<1x1x32xf32> to vector<1x32xf32>
    %329 = vector.broadcast %328 : vector<1x32xf32> to vector<8x32xf32>
    %330 = arith.addf %326, %329 : vector<8x32xf32>
    %331 = arith.addf %330, %303 : vector<8x32xf32>
    %c1_146 = arith.constant 1 : index
    %c0_147 = arith.constant 0 : index
    %c0_148 = arith.constant 0 : index
    %332 = vector.load %arg15[%c1_146, %c0_147, %c0_148] : memref<2x1x32xf32, #tpu.memory_space<vmem>>, vector<1x1x32xf32>
    %333 = vector.shape_cast %332 : vector<1x1x32xf32> to vector<1x32xf32>
    %c1_149 = arith.constant 1 : index
    %c0_150 = arith.constant 0 : index
    %c0_151 = arith.constant 0 : index
    %334 = vector.load %arg16[%c1_149, %c0_150, %c0_151] : memref<2x1x32xf32, #tpu.memory_space<vmem>>, vector<1x1x32xf32>
    %335 = vector.shape_cast %334 : vector<1x1x32xf32> to vector<1x32xf32>
    %cst_152 = arith.constant dense<0.000000e+00> : vector<8xf32>
    %336 = vector.multi_reduction <add>, %331, %cst_152 [1] : vector<8x32xf32> to vector<8xf32>
    %337 = vector.shape_cast %336 : vector<8xf32> to vector<8x1xf32>
    %cst_153 = arith.constant 3.200000e+01 : f32
    %338 = vector.broadcast %cst_153 : f32 to vector<8x1xf32>
    %339 = arith.divf %337, %338 : vector<8x1xf32>
    %340 = arith.mulf %331, %331 : vector<8x32xf32>
    %cst_154 = arith.constant dense<0.000000e+00> : vector<8xf32>
    %341 = vector.multi_reduction <add>, %340, %cst_154 [1] : vector<8x32xf32> to vector<8xf32>
    %342 = vector.shape_cast %341 : vector<8xf32> to vector<8x1xf32>
    %cst_155 = arith.constant 3.200000e+01 : f32
    %343 = vector.broadcast %cst_155 : f32 to vector<8x1xf32>
    %344 = arith.divf %342, %343 : vector<8x1xf32>
    %345 = arith.mulf %339, %339 : vector<8x1xf32>
    %346 = arith.subf %344, %345 : vector<8x1xf32>
    %cst_156 = arith.constant 9.99999996E-13 : f32
    %347 = vector.broadcast %cst_156 : f32 to vector<8x1xf32>
    %348 = arith.addf %346, %347 : vector<8x1xf32>
    %349 = math.rsqrt %348 : vector<8x1xf32>
    %350 = vector.broadcast %339 : vector<8x1xf32> to vector<8x32xf32>
    %351 = arith.subf %331, %350 : vector<8x32xf32>
    %352 = vector.broadcast %349 : vector<8x1xf32> to vector<8x32xf32>
    %353 = arith.mulf %351, %352 : vector<8x32xf32>
    %354 = vector.broadcast %333 : vector<1x32xf32> to vector<8x32xf32>
    %355 = arith.mulf %353, %354 : vector<8x32xf32>
    %356 = vector.broadcast %335 : vector<1x32xf32> to vector<8x32xf32>
    %357 = arith.addf %355, %356 : vector<8x32xf32>
    %c0_157 = arith.constant 0 : index
    %c0_158 = arith.constant 0 : index
    %358 = vector.load %arg17[%c0_157, %c0_158] : memref<32x128xf32, #tpu.memory_space<vmem>>, vector<32x128xf32>
    %cst_159 = arith.constant dense<0.000000e+00> : vector<8x128xf32>
    %359 = tpu.matmul %357, %358, %cst_159 {dimension_numbers = #tpu.dot_dimension_numbers<[1], [0], [0], [1], [0, 0, 1, 1], [], []>} : vector<8x32xf32>, vector<32x128xf32>, vector<8x128xf32> -> vector<8x128xf32>
    %c0_160 = arith.constant 0 : index
    %c0_161 = arith.constant 0 : index
    %360 = vector.load %arg18[%c0_160, %c0_161] : memref<1x128xf32, #tpu.memory_space<vmem>>, vector<1x128xf32>
    %361 = vector.broadcast %360 : vector<1x128xf32> to vector<8x128xf32>
    %362 = arith.addf %359, %361 : vector<8x128xf32>
    %c0_162 = arith.constant 0 : index
    %c0_163 = arith.constant 0 : index
    %c0_164 = arith.constant 0 : index
    %363 = vector.load %arg19[%c0_162, %c0_163, %c0_164] : memref<1x8x128xf32, #tpu.memory_space<vmem>>, vector<1x8x128xf32>
    %364 = vector.shape_cast %363 : vector<1x8x128xf32> to vector<8x128xf32>
    %365 = vector.shape_cast %362 : vector<8x128xf32> to vector<1x8x128xf32>
    tpu.vector_store %arg19[%c0_162, %c0_163, %c0_164], %365 {strides = array<i32>} : memref<1x8x128xf32, #tpu.memory_space<vmem>>, vector<1x8x128xf32>,
    return
  }
  func.func @transform_0(%arg0: i32) -> (i32, i32, i32) {
    %c0_i32 = arith.constant 0 : i32
    %c0_i32_0 = arith.constant 0 : i32
    %c0_i32_1 = arith.constant 0 : i32
    return %arg0, %c0_i32, %c0_i32_0 : i32, i32, i32
  }
  func.func @transform_1(%arg0: i32) -> (i32, i32) {
    %c0_i32 = arith.constant 0 : i32
    %c0_i32_0 = arith.constant 0 : i32
    %c0_i32_1 = arith.constant 0 : i32
    return %c0_i32, %c0_i32_0 : i32, i32
  }
  func.func @transform_2(%arg0: i32) -> (i32, i32) {
    %c0_i32 = arith.constant 0 : i32
    %c0_i32_0 = arith.constant 0 : i32
    %c0_i32_1 = arith.constant 0 : i32
    return %c0_i32, %c0_i32_0 : i32, i32
  }
  func.func @transform_3(%arg0: i32) -> (i32, i32) {
    %c0_i32 = arith.constant 0 : i32
    %c0_i32_0 = arith.constant 0 : i32
    %c0_i32_1 = arith.constant 0 : i32
    return %c0_i32, %c0_i32_0 : i32, i32
  }
  func.func @transform_4(%arg0: i32) -> (i32, i32, i32) {
    %c0_i32 = arith.constant 0 : i32
    %c0_i32_0 = arith.constant 0 : i32
    %c0_i32_1 = arith.constant 0 : i32
    %c0_i32_2 = arith.constant 0 : i32
    return %c0_i32, %c0_i32_0, %c0_i32_1 : i32, i32, i32
  }
  func.func @transform_5(%arg0: i32) -> (i32, i32, i32) {
    %c0_i32 = arith.constant 0 : i32
    %c0_i32_0 = arith.constant 0 : i32
    %c0_i32_1 = arith.constant 0 : i32
    %c0_i32_2 = arith.constant 0 : i32
    return %c0_i32, %c0_i32_0, %c0_i32_1 : i32, i32, i32
  }
  func.func @transform_6(%arg0: i32) -> (i32, i32, i32) {
    %c0_i32 = arith.constant 0 : i32
    %c0_i32_0 = arith.constant 0 : i32
    %c0_i32_1 = arith.constant 0 : i32
    %c0_i32_2 = arith.constant 0 : i32
    return %c0_i32, %c0_i32_0, %c0_i32_1 : i32, i32, i32
  }
  func.func @transform_7(%arg0: i32) -> (i32, i32, i32) {
    %c0_i32 = arith.constant 0 : i32
    %c0_i32_0 = arith.constant 0 : i32
    %c0_i32_1 = arith.constant 0 : i32
    %c0_i32_2 = arith.constant 0 : i32
    return %c0_i32, %c0_i32_0, %c0_i32_1 : i32, i32, i32
  }
  func.func @transform_8(%arg0: i32) -> (i32, i32, i32) {
    %c0_i32 = arith.constant 0 : i32
    %c0_i32_0 = arith.constant 0 : i32
    %c0_i32_1 = arith.constant 0 : i32
    %c0_i32_2 = arith.constant 0 : i32
    return %c0_i32, %c0_i32_0, %c0_i32_1 : i32, i32, i32
  }
  func.func @transform_9(%arg0: i32) -> (i32, i32, i32) {
    %c0_i32 = arith.constant 0 : i32
    %c0_i32_0 = arith.constant 0 : i32
    %c0_i32_1 = arith.constant 0 : i32
    %c0_i32_2 = arith.constant 0 : i32
    return %c0_i32, %c0_i32_0, %c0_i32_1 : i32, i32, i32
  }
  func.func @transform_10(%arg0: i32) -> (i32, i32, i32) {
    %c0_i32 = arith.constant 0 : i32
    %c0_i32_0 = arith.constant 0 : i32
    %c0_i32_1 = arith.constant 0 : i32
    %c0_i32_2 = arith.constant 0 : i32
    return %c0_i32, %c0_i32_0, %c0_i32_1 : i32, i32, i32
  }
  func.func @transform_11(%arg0: i32) -> (i32, i32, i32) {
    %c0_i32 = arith.constant 0 : i32
    %c0_i32_0 = arith.constant 0 : i32
    %c0_i32_1 = arith.constant 0 : i32
    %c0_i32_2 = arith.constant 0 : i32
    return %c0_i32, %c0_i32_0, %c0_i32_1 : i32, i32, i32
  }
  func.func @transform_12(%arg0: i32) -> (i32, i32, i32) {
    %c0_i32 = arith.constant 0 : i32
    %c0_i32_0 = arith.constant 0 : i32
    %c0_i32_1 = arith.constant 0 : i32
    %c0_i32_2 = arith.constant 0 : i32
    return %c0_i32, %c0_i32_0, %c0_i32_1 : i32, i32, i32
  }
  func.func @transform_13(%arg0: i32) -> (i32, i32, i32) {
    %c0_i32 = arith.constant 0 : i32
    %c0_i32_0 = arith.constant 0 : i32
    %c0_i32_1 = arith.constant 0 : i32
    %c0_i32_2 = arith.constant 0 : i32
    return %c0_i32, %c0_i32_0, %c0_i32_1 : i32, i32, i32
  }
  func.func @transform_14(%arg0: i32) -> (i32, i32, i32) {
    %c0_i32 = arith.constant 0 : i32
    %c0_i32_0 = arith.constant 0 : i32
    %c0_i32_1 = arith.constant 0 : i32
    %c0_i32_2 = arith.constant 0 : i32
    return %c0_i32, %c0_i32_0, %c0_i32_1 : i32, i32, i32
  }
  func.func @transform_15(%arg0: i32) -> (i32, i32, i32) {
    %c0_i32 = arith.constant 0 : i32
    %c0_i32_0 = arith.constant 0 : i32
    %c0_i32_1 = arith.constant 0 : i32
    %c0_i32_2 = arith.constant 0 : i32
    return %c0_i32, %c0_i32_0, %c0_i32_1 : i32, i32, i32
  }
  func.func @transform_16(%arg0: i32) -> (i32, i32) {
    %c0_i32 = arith.constant 0 : i32
    %c0_i32_0 = arith.constant 0 : i32
    %c0_i32_1 = arith.constant 0 : i32
    return %c0_i32, %c0_i32_0 : i32, i32
  }
  func.func @transform_17(%arg0: i32) -> (i32, i32) {
    %c0_i32 = arith.constant 0 : i32
    %c0_i32_0 = arith.constant 0 : i32
    %c0_i32_1 = arith.constant 0 : i32
    return %c0_i32, %c0_i32_0 : i32, i32
  }
  func.func @transform_18(%arg0: i32) -> (i32, i32, i32) {
    %c0_i32 = arith.constant 0 : i32
    %c0_i32_0 = arith.constant 0 : i32
    %c0_i32_1 = arith.constant 0 : i32
    return %arg0, %c0_i32, %c0_i32_0 : i32, i32, i32
  }
}

</mosaic_0001>

<llo_original>
// kernel: detectbert_line_classifier.1
$region0: #{detectbert_line_classifier.1}
  #allocation0 [shape = 'u32[]', space=smem, size = 0x4, offset = 0x4, fixed_abs, tag = 'smem constant byte address 0x4 - core index']
  #allocation1 [shape = 'u32[144,128]{1,0:T(1,128)}', space=vmem, size = 0x12000, scoped, tag = 'internal scratch']
  %s0 = inlined_call_operand.vmem [shape: f32[2,8,32], index: 0, kind: input, shape index: {}]
  %s1 = inlined_call_operand.vmem [shape: f32[8,32], index: 1, kind: input, shape index: {}]
  %s2 = inlined_call_operand.vmem [shape: f32[1,32], index: 2, kind: input, shape index: {}]
  %s3 = inlined_call_operand.vmem [shape: f32[1,32], index: 3, kind: input, shape index: {}]
  %s4 = inlined_call_operand.vmem [shape: f32[2,32,96], index: 4, kind: input, shape index: {}]
  %s5 = inlined_call_operand.vmem [shape: f32[2,1,96], index: 5, kind: input, shape index: {}]
  %s6 = inlined_call_operand.vmem [shape: f32[2,32,32], index: 6, kind: input, shape index: {}]
  %s7 = inlined_call_operand.vmem [shape: f32[2,1,32], index: 7, kind: input, shape index: {}]
  %s8 = inlined_call_operand.vmem [shape: f32[2,1,32], index: 8, kind: input, shape index: {}]
  %s9 = inlined_call_operand.vmem [shape: f32[2,1,32], index: 9, kind: input, shape index: {}]
  %s10 = inlined_call_operand.vmem [shape: f32[2,32,128], index: 10, kind: input, shape index: {}]
  %s11 = inlined_call_operand.vmem [shape: f32[2,1,128], index: 11, kind: input, shape index: {}]
  %s12 = inlined_call_operand.vmem [shape: f32[2,128,32], index: 12, kind: input, shape index: {}]
  %s13 = inlined_call_operand.vmem [shape: f32[2,1,32], index: 13, kind: input, shape index: {}]
  %s14 = inlined_call_operand.vmem [shape: f32[2,1,32], index: 14, kind: input, shape index: {}]
  %s15 = inlined_call_operand.vmem [shape: f32[2,1,32], index: 15, kind: input, shape index: {}]
  %s16 = inlined_call_operand.vmem [shape: f32[32,128], index: 16, kind: input, shape index: {}]
  %s17 = inlined_call_operand.vmem [shape: f32[1,128], index: 17, kind: input, shape index: {}]
  %s18 = inlined_call_operand.hbm [shape: f32[2,8,128], index: 18, kind: output, shape index: {}]
  %s19 = sld [smem:[#allocation0]]
  $region105: #{detectbert_line_classifier.1} parent=0
    _
  %s21 = ssub.s32 1, %s19
  %s22 = scalar_select 0, %s21, %s19
  $region1: #{detectbert_line_classifier.1} parent=0
    #allocation2 [shape = 'u8[8192]{0}', space=vmem, size = 0x2000, scoped, tag = 'output window, operand 0']
    #allocation3 [shape = 's32[2]{0}', space=sflag, size = 0x8, scoped, tag = 'scoped memory for detectbert_line_classifier.1']
    %23 = vsyncpa [#allocation3], 0
    %s24 = scalar_lea.sflag [#allocation3], 1
    %25 = vsyncpa %s24, 0
    loop: start=0, step=1, limit=4
    $region2: #{detectbert_line_classifier.1} parent=1 // loop_pre_header
      _
    $region3: #{detectbert_line_classifier.1} parent=1 // loop_header
      %s27 = sphi 0, %s31
      %p28 = scmp.ge.s32.totalorder %s27, 4
      %s37 = sphi 0, %s39
      %s40 = sphi 0, %s37
      %s41 = sphi 0, %s40
      %s57 = sphi 0, %s41
      %s61 = sphi 0, %s61
      %s63 = sphi 0, %s61
      %s64 = sphi 0, %s63
      %s78 = sphi 0, %s64
      %s82 = sphi 0, %s82
      %s84 = sphi 0, %s82
      %s85 = sphi 0, %s84
      %s99 = sphi 0, %s85
      %s103 = sphi 0, %s103
      %s105 = sphi 0, %s103
      %s106 = sphi 0, %s105
      %s120 = sphi 0, %s106
      %s124 = sphi 0, %s124
      %s126 = sphi 0, %s124
      %s127 = sphi 0, %s126
      %s141 = sphi 0, %s127
      %s145 = sphi 0, %s145
      %s147 = sphi 0, %s145
      %s148 = sphi 0, %s147
      %s162 = sphi 0, %s148
      %s166 = sphi 0, %s166
      %s168 = sphi 0, %s166
      %s169 = sphi 0, %s168
      %s183 = sphi 0, %s169
      %s187 = sphi 0, %s187
      %s189 = sphi 0, %s187
      %s190 = sphi 0, %s189
      %s204 = sphi 0, %s190
      %s208 = sphi 0, %s208
      %s210 = sphi 0, %s208
      %s211 = sphi 0, %s210
      %s225 = sphi 0, %s211
      %s229 = sphi 0, %s229
      %s231 = sphi 0, %s229
      %s232 = sphi 0, %s231
      %s246 = sphi 0, %s232
      %s250 = sphi 0, %s250
      %s252 = sphi 0, %s250
      %s253 = sphi 0, %s252
      %s267 = sphi 0, %s253
      %s271 = sphi 0, %s271
      %s273 = sphi 0, %s271
      %s274 = sphi 0, %s273
      %s288 = sphi 0, %s274
      %s292 = sphi 0, %s292
      %s294 = sphi 0, %s292
      %s295 = sphi 0, %s294
      %s309 = sphi 0, %s295
      %s313 = sphi 0, %s313
      %s315 = sphi 0, %s313
      %s316 = sphi 0, %s315
      %s330 = sphi 0, %s316
      %s334 = sphi 0, %s334
      %s336 = sphi 0, %s334
      %s337 = sphi 0, %s336
      %s351 = sphi 0, %s337
      %s355 = sphi 0, %s355
      %s357 = sphi 0, %s355
      %s358 = sphi 0, %s357
      %s372 = sphi 0, %s358
      %s376 = sphi 0, %s376
      %s378 = sphi 0, %s376
      %s379 = sphi 0, %s378
      %s393 = sphi 0, %s379
      %s397 = sphi 0, %s397
      %s399 = sphi 0, %s397
      %s400 = sphi 0, %s399
      %s414 = sphi 0, %s400
      %s420 = sphi 0, %s422
      %s423 = sphi 0, %s420
      %s424 = sphi 0, %s423
      %s440 = sphi 0, %s424
    $region4: #{detectbert_line_classifier.1} parent=1 // loop_header_branch
      %30 = sbr.rel (%p28) target = $region8
    $region5: #{detectbert_line_classifier.1} parent=1 // loop_body
      %s32 = ssub.s32 %s27, 1
      %s33 = ssub.s32 %s27, 2
      %s34 = sadd.s32 %s27, 1
      %s35 = ssub.s32 %s27, %s34
      %p36 = scmp.eq.s32.totalorder %s35, 0
      %s38 = sadd.s32 %s37, 1
      %s39 = scalar_select %p36, %s37, %s38
      %p42 = pneg %p36
      %p43 = scmp.eq.s32.totalorder %s27, 1
      %p44 = por %p42, %p43
      %p45 = scmp.ne.s32.totalorder %s37, %s40
      %p46 = scmp.eq.s32.totalorder %s27, 0
      %p47 = por %p45, %p46
      %p48 = scmp.ne.s32.totalorder %s37, %s40
      %p49 = scmp.eq.s32.totalorder %s32, 1
      %p50 = por %p48, %p49
      %p51 = scmp.ne.s32.totalorder %s40, %s41
      %p52 = scmp.eq.s32.totalorder %s32, 0
      %p53 = por %p51, %p52
      %p54 = scmp.ne.s32.totalorder %s40, %s41
      %p55 = scmp.eq.s32.totalorder %s33, 1
      %p56 = por %p54, %p55
      %p58 = scmp.ne.s32.totalorder %s41, %s57
      %p59 = scmp.eq.s32.totalorder %s33, 0
      %p60 = por %p58, %p59
      %s62 = sadd.s32 %s61, 1
      %p65 = scmp.eq.s32.totalorder %s27, 1
      %p66 = scmp.ne.s32.totalorder %s61, %s63
      %p67 = scmp.eq.s32.totalorder %s27, 0
      %p68 = por %p66, %p67
      %p69 = scmp.ne.s32.totalorder %s61, %s63
      %p70 = scmp.eq.s32.totalorder %s32, 1
      %p71 = por %p69, %p70
      %p72 = scmp.ne.s32.totalorder %s63, %s64
      %p73 = scmp.eq.s32.totalorder %s32, 0
      %p74 = por %p72, %p73
      %p75 = scmp.ne.s32.totalorder %s63, %s64
      %p76 = scmp.eq.s32.totalorder %s33, 1
      %p77 = por %p75, %p76
      %p79 = scmp.ne.s32.totalorder %s64, %s78
      %p80 = scmp.eq.s32.totalorder %s33, 0
      %p81 = por %p79, %p80
      %s83 = sadd.s32 %s82, 1
      %p86 = scmp.eq.s32.totalorder %s27, 1
      %p87 = scmp.ne.s32.totalorder %s82, %s84
      %p88 = scmp.eq.s32.totalorder %s27, 0
      %p89 = por %p87, %p88
      %p90 = scmp.ne.s32.totalorder %s82, %s84
      %p91 = scmp.eq.s32.totalorder %s32, 1
      %p92 = por %p90, %p91
      %p93 = scmp.ne.s32.totalorder %s84, %s85
      %p94 = scmp.eq.s32.totalorder %s32, 0
      %p95 = por %p93, %p94
      %p96 = scmp.ne.s32.totalorder %s84, %s85
      %p97 = scmp.eq.s32.totalorder %s33, 1
      %p98 = por %p96, %p97
      %p100 = scmp.ne.s32.totalorder %s85, %s99
      %p101 = scmp.eq.s32.totalorder %s33, 0
      %p102 = por %p100, %p101
      %s104 = sadd.s32 %s103, 1
      %p107 = scmp.eq.s32.totalorder %s27, 1
      %p108 = scmp.ne.s32.totalorder %s103, %s105
      %p109 = scmp.eq.s32.totalorder %s27, 0
      %p110 = por %p108, %p109
      %p111 = scmp.ne.s32.totalorder %s103, %s105
      %p112 = scmp.eq.s32.totalorder %s32, 1
      %p113 = por %p111, %p112
      %p114 = scmp.ne.s32.totalorder %s105, %s106
      %p115 = scmp.eq.s32.totalorder %s32, 0
      %p116 = por %p114, %p115
      %p117 = scmp.ne.s32.totalorder %s105, %s106
      %p118 = scmp.eq.s32.totalorder %s33, 1
      %p119 = por %p117, %p118
      %p121 = scmp.ne.s32.totalorder %s106, %s120
      %p122 = scmp.eq.s32.totalorder %s33, 0
      %p123 = por %p121, %p122
      %s125 = sadd.s32 %s124, 1
      %p128 = scmp.eq.s32.totalorder %s27, 1
      %p129 = scmp.ne.s32.totalorder %s124, %s126
      %p130 = scmp.eq.s32.totalorder %s27, 0
      %p131 = por %p129, %p130
      %p132 = scmp.ne.s32.totalorder %s124, %s126
      %p133 = scmp.eq.s32.totalorder %s32, 1
      %p134 = por %p132, %p133
      %p135 = scmp.ne.s32.totalorder %s126, %s127
      %p136 = scmp.eq.s32.totalorder %s32, 0
      %p137 = por %p135, %p136
      %p138 = scmp.ne.s32.totalorder %s126, %s127
      %p139 = scmp.eq.s32.totalorder %s33, 1
      %p140 = por %p138, %p139
      %p142 = scmp.ne.s32.totalorder %s127, %s141
      %p143 = scmp.eq.s32.totalorder %s33, 0
      %p144 = por %p142, %p143
      %s146 = sadd.s32 %s145, 1
      %p149 = scmp.eq.s32.totalorder %s27, 1
      %p150 = scmp.ne.s32.totalorder %s145, %s147
      %p151 = scmp.eq.s32.totalorder %s27, 0
      %p152 = por %p150, %p151
      %p153 = scmp.ne.s32.totalorder %s145, %s147
      %p154 = scmp.eq.s32.totalorder %s32, 1
      %p155 = por %p153, %p154
      %p156 = scmp.ne.s32.totalorder %s147, %s148
      %p157 = scmp.eq.s32.totalorder %s32, 0
      %p158 = por %p156, %p157
      %p159 = scmp.ne.s32.totalorder %s147, %s148
      %p160 = scmp.eq.s32.totalorder %s33, 1
      %p161 = por %p159, %p160
      %p163 = scmp.ne.s32.totalorder %s148, %s162
      %p164 = scmp.eq.s32.totalorder %s33, 0
      %p165 = por %p163, %p164
      %s167 = sadd.s32 %s166, 1
      %p170 = scmp.eq.s32.totalorder %s27, 1
      %p171 = scmp.ne.s32.totalorder %s166, %s168
      %p172 = scmp.eq.s32.totalorder %s27, 0
      %p173 = por %p171, %p172
      %p174 = scmp.ne.s32.totalorder %s166, %s168
      %p175 = scmp.eq.s32.totalorder %s32, 1
      %p176 = por %p174, %p175
      %p177 = scmp.ne.s32.totalorder %s168, %s169
      %p178 = scmp.eq.s32.totalorder %s32, 0
      %p179 = por %p177, %p178
      %p180 = scmp.ne.s32.totalorder %s168, %s169
      %p181 = scmp.eq.s32.totalorder %s33, 1
      %p182 = por %p180, %p181
      %p184 = scmp.ne.s32.totalorder %s169, %s183
      %p185 = scmp.eq.s32.totalorder %s33, 0
      %p186 = por %p184, %p185
      %s188 = sadd.s32 %s187, 1
      %p191 = scmp.eq.s32.totalorder %s27, 1
      %p192 = scmp.ne.s32.totalorder %s187, %s189
      %p193 = scmp.eq.s32.totalorder %s27, 0
      %p194 = por %p192, %p193
      %p195 = scmp.ne.s32.totalorder %s187, %s189
      %p196 = scmp.eq.s32.totalorder %s32, 1
      %p197 = por %p195, %p196
      %p198 = scmp.ne.s32.totalorder %s189, %s190
      %p199 = scmp.eq.s32.totalorder %s32, 0
      %p200 = por %p198, %p199
      %p201 = scmp.ne.s32.totalorder %s189, %s190
      %p202 = scmp.eq.s32.totalorder %s33, 1
      %p203 = por %p201, %p202
      %p205 = scmp.ne.s32.totalorder %s190, %s204
      %p206 = scmp.eq.s32.totalorder %s33, 0
      %p207 = por %p205, %p206
      %s209 = sadd.s32 %s208, 1
      %p212 = scmp.eq.s32.totalorder %s27, 1
      %p213 = scmp.ne.s32.totalorder %s208, %s210
      %p214 = scmp.eq.s32.totalorder %s27, 0
      %p215 = por %p213, %p214
      %p216 = scmp.ne.s32.totalorder %s208, %s210
      %p217 = scmp.eq.s32.totalorder %s32, 1
      %p218 = por %p216, %p217
      %p219 = scmp.ne.s32.totalorder %s210, %s211
      %p220 = scmp.eq.s32.totalorder %s32, 0
      %p221 = por %p219, %p220
      %p222 = scmp.ne.s32.totalorder %s210, %s211
      %p223 = scmp.eq.s32.totalorder %s33, 1
      %p224 = por %p222, %p223
      %p226 = scmp.ne.s32.totalorder %s211, %s225
      %p227 = scmp.eq.s32.totalorder %s33, 0
      %p228 = por %p226, %p227
      %s230 = sadd.s32 %s229, 1
      %p233 = scmp.eq.s32.totalorder %s27, 1
      %p234 = scmp.ne.s32.totalorder %s229, %s231
      %p235 = scmp.eq.s32.totalorder %s27, 0
      %p236 = por %p234, %p235
      %p237 = scmp.ne.s32.totalorder %s229, %s231
      %p238 = scmp.eq.s32.totalorder %s32, 1
      %p239 = por %p237, %p238
      %p240 = scmp.ne.s32.totalorder %s231, %s232
      %p241 = scmp.eq.s32.totalorder %s32, 0
      %p242 = por %p240, %p241
      %p243 = scmp.ne.s32.totalorder %s231, %s232
      %p244 = scmp.eq.s32.totalorder %s33, 1
      %p245 = por %p243, %p244
      %p247 = scmp.ne.s32.totalorder %s232, %s246
      %p248 = scmp.eq.s32.totalorder %s33, 0
      %p249 = por %p247, %p248
      %s251 = sadd.s32 %s250, 1
      %p254 = scmp.eq.s32.totalorder %s27, 1
      %p255 = scmp.ne.s32.totalorder %s250, %s252
      %p256 = scmp.eq.s32.totalorder %s27, 0
      %p257 = por %p255, %p256
      %p258 = scmp.ne.s32.totalorder %s250, %s252
      %p259 = scmp.eq.s32.totalorder %s32, 1
      %p260 = por %p258, %p259
      %p261 = scmp.ne.s32.totalorder %s252, %s253
      %p262 = scmp.eq.s32.totalorder %s32, 0
      %p263 = por %p261, %p262
      %p264 = scmp.ne.s32.totalorder %s252, %s253
      %p265 = scmp.eq.s32.totalorder %s33, 1
      %p266 = por %p264, %p265
      %p268 = scmp.ne.s32.totalorder %s253, %s267
      %p269 = scmp.eq.s32.totalorder %s33, 0
      %p270 = por %p268, %p269
      %s272 = sadd.s32 %s271, 1
      %p275 = scmp.eq.s32.totalorder %s27, 1
      %p276 = scmp.ne.s32.totalorder %s271, %s273
      %p277 = scmp.eq.s32.totalorder %s27, 0
      %p278 = por %p276, %p277
      %p279 = scmp.ne.s32.totalorder %s271, %s273
      %p280 = scmp.eq.s32.totalorder %s32, 1
      %p281 = por %p279, %p280
      %p282 = scmp.ne.s32.totalorder %s273, %s274
      %p283 = scmp.eq.s32.totalorder %s32, 0
      %p284 = por %p282, %p283
      %p285 = scmp.ne.s32.totalorder %s273, %s274
      %p286 = scmp.eq.s32.totalorder %s33, 1
      %p287 = por %p285, %p286
      %p289 = scmp.ne.s32.totalorder %s274, %s288
      %p290 = scmp.eq.s32.totalorder %s33, 0
      %p291 = por %p289, %p290
      %s293 = sadd.s32 %s292, 1
      %p296 = scmp.eq.s32.totalorder %s27, 1
      %p297 = scmp.ne.s32.totalorder %s292, %s294
      %p298 = scmp.eq.s32.totalorder %s27, 0
      %p299 = por %p297, %p298
      %p300 = scmp.ne.s32.totalorder %s292, %s294
      %p301 = scmp.eq.s32.totalorder %s32, 1
      %p302 = por %p300, %p301
      %p303 = scmp.ne.s32.totalorder %s294, %s295
      %p304 = scmp.eq.s32.totalorder %s32, 0
      %p305 = por %p303, %p304
      %p306 = scmp.ne.s32.totalorder %s294, %s295
      %p307 = scmp.eq.s32.totalorder %s33, 1
      %p308 = por %p306, %p307
      %p310 = scmp.ne.s32.totalorder %s295, %s309
      %p311 = scmp.eq.s32.totalorder %s33, 0
      %p312 = por %p310, %p311
      %s314 = sadd.s32 %s313, 1
      %p317 = scmp.eq.s32.totalorder %s27, 1
      %p318 = scmp.ne.s32.totalorder %s313, %s315
      %p319 = scmp.eq.s32.totalorder %s27, 0
      %p320 = por %p318, %p319
      %p321 = scmp.ne.s32.totalorder %s313, %s315
      %p322 = scmp.eq.s32.totalorder %s32, 1
      %p323 = por %p321, %p322
      %p324 = scmp.ne.s32.totalorder %s315, %s316
      %p325 = scmp.eq.s32.totalorder %s32, 0
      %p326 = por %p324, %p325
      %p327 = scmp.ne.s32.totalorder %s315, %s316
      %p328 = scmp.eq.s32.totalorder %s33, 1
      %p329 = por %p327, %p328
      %p331 = scmp.ne.s32.totalorder %s316, %s330
      %p332 = scmp.eq.s32.totalorder %s33, 0
      %p333 = por %p331, %p332
      %s335 = sadd.s32 %s334, 1
      %p338 = scmp.eq.s32.totalorder %s27, 1
      %p339 = scmp.ne.s32.totalorder %s334, %s336
      %p340 = scmp.eq.s32.totalorder %s27, 0
      %p341 = por %p339, %p340
      %p342 = scmp.ne.s32.totalorder %s334, %s336
      %p343 = scmp.eq.s32.totalorder %s32, 1
      %p344 = por %p342, %p343
      %p345 = scmp.ne.s32.totalorder %s336, %s337
      %p346 = scmp.eq.s32.totalorder %s32, 0
      %p347 = por %p345, %p346
      %p348 = scmp.ne.s32.totalorder %s336, %s337
      %p349 = scmp.eq.s32.totalorder %s33, 1
      %p350 = por %p348, %p349
      %p352 = scmp.ne.s32.totalorder %s337, %s351
      %p353 = scmp.eq.s32.totalorder %s33, 0
      %p354 = por %p352, %p353
      %s356 = sadd.s32 %s355, 1
      %p359 = scmp.eq.s32.totalorder %s27, 1
      %p360 = scmp.ne.s32.totalorder %s355, %s357
      %p361 = scmp.eq.s32.totalorder %s27, 0
      %p362 = por %p360, %p361
      %p363 = scmp.ne.s32.totalorder %s355, %s357
      %p364 = scmp.eq.s32.totalorder %s32, 1
      %p365 = por %p363, %p364
      %p366 = scmp.ne.s32.totalorder %s357, %s358
      %p367 = scmp.eq.s32.totalorder %s32, 0
      %p368 = por %p366, %p367
      %p369 = scmp.ne.s32.totalorder %s357, %s358
      %p370 = scmp.eq.s32.totalorder %s33, 1
      %p371 = por %p369, %p370
      %p373 = scmp.ne.s32.totalorder %s358, %s372
      %p374 = scmp.eq.s32.totalorder %s33, 0
      %p375 = por %p373, %p374
      %s377 = sadd.s32 %s376, 1
      %p380 = scmp.eq.s32.totalorder %s27, 1
      %p381 = scmp.ne.s32.totalorder %s376, %s378
      %p382 = scmp.eq.s32.totalorder %s27, 0
      %p383 = por %p381, %p382
      %p384 = scmp.ne.s32.totalorder %s376, %s378
      %p385 = scmp.eq.s32.totalorder %s32, 1
      %p386 = por %p384, %p385
      %p387 = scmp.ne.s32.totalorder %s378, %s379
      %p388 = scmp.eq.s32.totalorder %s32, 0
      %p389 = por %p387, %p388
      %p390 = scmp.ne.s32.totalorder %s378, %s379
      %p391 = scmp.eq.s32.totalorder %s33, 1
      %p392 = por %p390, %p391
      %p394 = scmp.ne.s32.totalorder %s379, %s393
      %p395 = scmp.eq.s32.totalorder %s33, 0
      %p396 = por %p394, %p395
      %s398 = sadd.s32 %s397, 1
      %p401 = scmp.eq.s32.totalorder %s27, 1
      %p402 = scmp.ne.s32.totalorder %s397, %s399
      %p403 = scmp.eq.s32.totalorder %s27, 0
      %p404 = por %p402, %p403
      %p405 = scmp.ne.s32.totalorder %s397, %s399
      %p406 = scmp.eq.s32.totalorder %s32, 1
      %p407 = por %p405, %p406
      %p408 = scmp.ne.s32.totalorder %s399, %s400
      %p409 = scmp.eq.s32.totalorder %s32, 0
      %p410 = por %p408, %p409
      %p411 = scmp.ne.s32.totalorder %s399, %s400
      %p412 = scmp.eq.s32.totalorder %s33, 1
      %p413 = por %p411, %p412
      %p415 = scmp.ne.s32.totalorder %s400, %s414
      %p416 = scmp.eq.s32.totalorder %s33, 0
      %p417 = por %p415, %p416
      %s418 = ssub.s32 %s27, %s34
      %p419 = scmp.eq.s32.totalorder %s418, 0
      %s421 = sadd.s32 %s420, 1
      %s422 = scalar_select %p419, %s420, %s421
      %p425 = pneg %p419
      %p426 = scmp.eq.s32.totalorder %s27, 1
      %p427 = por %p425, %p426
      %p428 = scmp.ne.s32.totalorder %s420, %s423
      %p429 = scmp.eq.s32.totalorder %s27, 0
      %p430 = por %p428, %p429
      %p431 = scmp.ne.s32.totalorder %s420, %s423
      %p432 = scmp.eq.s32.totalorder %s32, 1
      %p433 = por %p431, %p432
      %p434 = scmp.ne.s32.totalorder %s423, %s424
      %p435 = scmp.eq.s32.totalorder %s32, 0
      %p436 = por %p434, %p435
      %p437 = scmp.ne.s32.totalorder %s423, %s424
      %p438 = scmp.eq.s32.totalorder %s33, 1
      %p439 = por %p437, %p438
      %p441 = scmp.ne.s32.totalorder %s424, %s440
      %p442 = scmp.eq.s32.totalorder %s33, 0
      %p443 = por %p441, %p442
      %p444 = scmp.le.s32.totalorder 1, %s27
      %p445 = scmp.lt.s32.totalorder %s27, 3
      %p446 = pnand %p444, %p445
      %p447 = pneg %p446
      // Predicated region
      $region9: #{detectbert_line_classifier.1} parent=5 // pred_check
        _
      $region10: #{detectbert_line_classifier.1} parent=5 // pred_check_branch
        %449 = sbr.rel (%p446) target = $region12
      $region11: #{detectbert_line_classifier.1} parent=5 // pred_region
        %s450 = ssub.s32 %s27, 1
        // Predicated region
        $region13: #{detectbert_line_classifier.1} parent=11 // pred_check
          %p451 = pneg %p74
        $region14: #{detectbert_line_classifier.1} parent=11 // pred_check_branch
          %453 = sbr.rel (%p451) target = $region16
        $region15: #{detectbert_line_classifier.1} parent=11 // pred_region
          _
        $region16: #{detectbert_line_classifier.1} parent=11 // pred_fallthru
          _
        // Predicated region
        $region17: #{detectbert_line_classifier.1} parent=11 // pred_check
          %p454 = pneg %p95
        $region18: #{detectbert_line_classifier.1} parent=11 // pred_check_branch
          %456 = sbr.rel (%p454) target = $region20
        $region19: #{detectbert_line_classifier.1} parent=11 // pred_region
          _
        $region20: #{detectbert_line_classifier.1} parent=11 // pred_fallthru
          _
        // Predicated region
        $region21: #{detectbert_line_classifier.1} parent=11 // pred_check
          %p457 = pneg %p116
        $region22: #{detectbert_line_classifier.1} parent=11 // pred_check_branch
          %459 = sbr.rel (%p457) target = $region24
        $region23: #{detectbert_line_classifier.1} parent=11 // pred_region
          _
        $region24: #{detectbert_line_classifier.1} parent=11 // pred_fallthru
          _
        // Predicated region
        $region25: #{detectbert_line_classifier.1} parent=11 // pred_check
          %p460 = pneg %p137
        $region26: #{detectbert_line_classifier.1} parent=11 // pred_check_branch
          %462 = sbr.rel (%p460) target = $region28
        $region27: #{detectbert_line_classifier.1} parent=11 // pred_region
          _
        $region28: #{detectbert_line_classifier.1} parent=11 // pred_fallthru
          _
        // Predicated region
        $region29: #{detectbert_line_classifier.1} parent=11 // pred_check
          %p463 = pneg %p158
        $region30: #{detectbert_line_classifier.1} parent=11 // pred_check_branch
          %465 = sbr.rel (%p463) target = $region32
        $region31: #{detectbert_line_classifier.1} parent=11 // pred_region
          _
        $region32: #{detectbert_line_classifier.1} parent=11 // pred_fallthru
          _
        // Predicated region
        $region33: #{detectbert_line_classifier.1} parent=11 // pred_check
          %p466 = pneg %p179
        $region34: #{detectbert_line_classifier.1} parent=11 // pred_check_branch
          %468 = sbr.rel (%p466) target = $region36
        $region35: #{detectbert_line_classifier.1} parent=11 // pred_region
          _
        $region36: #{detectbert_line_classifier.1} parent=11 // pred_fallthru
          _
        // Predicated region
        $region37: #{detectbert_line_classifier.1} parent=11 // pred_check
          %p469 = pneg %p200
        $region38: #{detectbert_line_classifier.1} parent=11 // pred_check_branch
          %471 = sbr.rel (%p469) target = $region40
        $region39: #{detectbert_line_classifier.1} parent=11 // pred_region
          _
        $region40: #{detectbert_line_classifier.1} parent=11 // pred_fallthru
          _
        // Predicated region
        $region41: #{detectbert_line_classifier.1} parent=11 // pred_check
          %p472 = pneg %p221
        $region42: #{detectbert_line_classifier.1} parent=11 // pred_check_branch
          %474 = sbr.rel (%p472) target = $region44
        $region43: #{detectbert_line_classifier.1} parent=11 // pred_region
          _
        $region44: #{detectbert_line_classifier.1} parent=11 // pred_fallthru
          _
        // Predicated region
        $region45: #{detectbert_line_classifier.1} parent=11 // pred_check
          %p475 = pneg %p242
        $region46: #{detectbert_line_classifier.1} parent=11 // pred_check_branch
          %477 = sbr.rel (%p475) target = $region48
        $region47: #{detectbert_line_classifier.1} parent=11 // pred_region
          _
        $region48: #{detectbert_line_classifier.1} parent=11 // pred_fallthru
          _
        // Predicated region
        $region49: #{detectbert_line_classifier.1} parent=11 // pred_check
          %p478 = pneg %p263
        $region50: #{detectbert_line_classifier.1} parent=11 // pred_check_branch
          %480 = sbr.rel (%p478) target = $region52
        $region51: #{detectbert_line_classifier.1} parent=11 // pred_region
          _
        $region52: #{detectbert_line_classifier.1} parent=11 // pred_fallthru
          _
        // Predicated region
        $region53: #{detectbert_line_classifier.1} parent=11 // pred_check
          %p481 = pneg %p284
        $region54: #{detectbert_line_classifier.1} parent=11 // pred_check_branch
          %483 = sbr.rel (%p481) target = $region56
        $region55: #{detectbert_line_classifier.1} parent=11 // pred_region
          _
        $region56: #{detectbert_line_classifier.1} parent=11 // pred_fallthru
          _
        // Predicated region
        $region57: #{detectbert_line_classifier.1} parent=11 // pred_check
          %p484 = pneg %p305
        $region58: #{detectbert_line_classifier.1} parent=11 // pred_check_branch
          %486 = sbr.rel (%p484) target = $region60
        $region59: #{detectbert_line_classifier.1} parent=11 // pred_region
          _
        $region60: #{detectbert_line_classifier.1} parent=11 // pred_fallthru
          _
        // Predicated region
        $region61: #{detectbert_line_classifier.1} parent=11 // pred_check
          %p487 = pneg %p326
        $region62: #{detectbert_line_classifier.1} parent=11 // pred_check_branch
          %489 = sbr.rel (%p487) target = $region64
        $region63: #{detectbert_line_classifier.1} parent=11 // pred_region
          _
        $region64: #{detectbert_line_classifier.1} parent=11 // pred_fallthru
          _
        // Predicated region
        $region65: #{detectbert_line_classifier.1} parent=11 // pred_check
          %p490 = pneg %p347
        $region66: #{detectbert_line_classifier.1} parent=11 // pred_check_branch
          %492 = sbr.rel (%p490) target = $region68
        $region67: #{detectbert_line_classifier.1} parent=11 // pred_region
          _
        $region68: #{detectbert_line_classifier.1} parent=11 // pred_fallthru
          _
        // Predicated region
        $region69: #{detectbert_line_classifier.1} parent=11 // pred_check
          %p493 = pneg %p368
        $region70: #{detectbert_line_classifier.1} parent=11 // pred_check_branch
          %495 = sbr.rel (%p493) target = $region72
        $region71: #{detectbert_line_classifier.1} parent=11 // pred_region
          _
        $region72: #{detectbert_line_classifier.1} parent=11 // pred_fallthru
          _
        // Predicated region
        $region73: #{detectbert_line_classifier.1} parent=11 // pred_check
          %p496 = pneg %p389
        $region74: #{detectbert_line_classifier.1} parent=11 // pred_check_branch
          %498 = sbr.rel (%p496) target = $region76
        $region75: #{detectbert_line_classifier.1} parent=11 // pred_region
          _
        $region76: #{detectbert_line_classifier.1} parent=11 // pred_fallthru
          _
        // Predicated region
        $region77: #{detectbert_line_classifier.1} parent=11 // pred_check
          %p499 = pneg %p410
        $region78: #{detectbert_line_classifier.1} parent=11 // pred_check_branch
          %501 = sbr.rel (%p499) target = $region80
        $region79: #{detectbert_line_classifier.1} parent=11 // pred_region
          _
        $region80: #{detectbert_line_classifier.1} parent=11 // pred_fallthru
          _
      $region12: #{detectbert_line_classifier.1} parent=5 // pred_fallthru
        _
      %p502 = scmp.lt.s32.totalorder %s27, 2
      // Predicated region
      $region81: #{detectbert_line_classifier.1} parent=5 // pred_check
        %p503 = pneg %p502
      $region82: #{detectbert_line_classifier.1} parent=5 // pred_check_branch
        %505 = sbr.rel (%p503) target = $region84
      $region83: #{detectbert_line_classifier.1} parent=5 // pred_region
        // Predicated region
        $region85: #{detectbert_line_classifier.1} parent=83 // pred_check
          %p506 = pneg %p47
        $region86: #{detectbert_line_classifier.1} parent=83 // pred_check_branch
          %508 = sbr.rel (%p506) target = $region88
        $region87: #{detectbert_line_classifier.1} parent=83 // pred_region
          %p509 = scmp.lt.s32.totalorder %s27, 1
          %s510 = scalar_select %p509, %s27, 1
          %s511 = smul.addr %s510, 8
          %s512 = scalar_lea.vmem %s0, %s511
        $region88: #{detectbert_line_classifier.1} parent=83 // pred_fallthru
          _
      $region84: #{detectbert_line_classifier.1} parent=5 // pred_fallthru
        _
      %p513 = scmp.le.s32.totalorder 1, %s27
      %p514 = scmp.lt.s32.totalorder %s27, 3
      %p515 = pnand %p513, %p514
      %p516 = pneg %p515
      // Predicated region
      $region89: #{detectbert_line_classifier.1} parent=5 // pred_check
        _
      $region90: #{detectbert_line_classifier.1} parent=5 // pred_check_branch
        %518 = sbr.rel (%p515) target = $region92
      $region91: #{detectbert_line_classifier.1} parent=5 // pred_region
        %s519 = ssub.s32 %s27, 1
        %p520 = scmp.lt.s32.totalorder %s32, 1
        %s521 = scalar_select %p520, %s32, 1
        %s522 = smul.addr %s521, 8
        %s523 = scalar_lea.vmem %s0, %s522
        %p524 = pneg %p53
        %p525 = pneg %p50
        %p526 = pneg %p74
        %p527 = pneg %p71
        %p528 = pneg %p95
        %p529 = pneg %p92
        %p530 = pneg %p116
        %p531 = pneg %p113
        %p532 = pneg %p137
        %p533 = pneg %p134
        %p534 = pneg %p158
        %p535 = pneg %p155
        %p536 = pneg %p179
        %p537 = pneg %p176
        %p538 = pneg %p200
        %p539 = pneg %p197
        %p540 = pneg %p221
        %p541 = pneg %p218
        %p542 = pneg %p242
        %p543 = pneg %p239
        %p544 = pneg %p263
        %p545 = pneg %p260
        %p546 = pneg %p284
        %p547 = pneg %p281
        %p548 = pneg %p305
        %p549 = pneg %p302
        %p550 = pneg %p326
        %p551 = pneg %p323
        %p552 = pneg %p347
        %p553 = pneg %p344
        %p554 = pneg %p368
        %p555 = pneg %p365
        %p556 = pneg %p389
        %p557 = pneg %p386
        %p558 = pneg %p410
        %p559 = pneg %p407
        %p560 = pneg %p436
        %p561 = pneg %p433
        %s562 = sand.u32 %s423, 1
        %s563 = scalar_lea.sflag [#allocation3], %s562
        %s564 = sand.u32 %s423, 1
        %s565 = smul.addr %s564, 8
        %s566 = scalar_lea.vmem [#allocation2], %s565
        %p567 = scmp.lt.s32.totalorder %s32, 1
        %s568 = scalar_select %p567, %s32, 1
        %s569 = smul.addr %s568, 8
        %s570 = scalar_lea.vmem %s0, %s569
        %v571 = vld [vmem:[%s570] sm:$0xff]
        %v572 = vld [vmem:[%s1] sm:$0xff]
        %v573 = vadd.f32 %v571, %v572
        %v574 = vld [vmem:[%s2] sm:$0x1]
        %v575 = vld [vmem:[%s3] sm:$0x1]
        %vm576 = vcmask 261120
        %v577 = vsel %vm576, %v573, 0.0
        %578 = vadd.xlane.f32.xlu0 %v577
        %v579 = vpop.xlane.xlu0 %578
        %v580 = vrcp.pop 32.0
        %v581 = vmul.f32 %v579, %v580
        %v582 = vmul.f32 %v573, %v573
        %v583 = vsel %vm576, %v582, 0.0
        %584 = vadd.xlane.f32.xlu0 %v583
        %v585 = vpop.xlane.xlu0 %584
        %v586 = vmul.f32 %v585, %v580
        %v587 = vmul.f32 %v581, %v581
        %v588 = vsub.f32 %v586, %v587
        %v589 = vadd.f32 %v588, 1e-12
        %v590 = vrsqrt.pop %v589
        %v591 = vsub.f32 %v573, %v581
        %v592 = vmul.f32 %v591, %v590
        %v594 = vlaneseq
        %v595 = vshrl.u32 %v594, 7
        %v596 = vsub.s32 0, %v595
        %v597 = vrot.slane %v574, %v596
        %v599 = vmul.f32 %v592, %v597
        %v601 = vlaneseq
        %v602 = vshrl.u32 %v601, 7
        %v603 = vsub.s32 0, %v602
        %v604 = vrot.slane %v575, %v603
        %v606 = vadd.f32 %v599, %v604
        %v607 = vld [vmem:[%s4] sm:$0xff]
        %v608 = vld [vmem:[%s4 + $0x8] sm:$0xff]
        %v609 = vld [vmem:[%s4 + $0x10] sm:$0xff]
        %v610 = vld [vmem:[%s4 + $0x18] sm:$0xff]
        %v611 = vld [vmem:[%s5] sm:$0x1]
        %v613 = vlaneseq
        %v614 = vshrl.u32 %v613, 7
        %v615 = vsub.s32 0, %v614
        %v616 = vrot.slane %v611, %v615
        %v619 = vsel %vm576, %v606, 0
        %621 = vmatprep.subr.mxu0 0.0
        %622 = vmatpush1.msra.mxu0 %v607
        %623 = vmatprep.subr.mxu0 0.0
        %624 = vmatpush1.msra.mxu0 %v608
        %625 = vmatprep.subr.mxu0 0.0
        %626 = vmatpush1.msra.mxu0 %v609
        %627 = vmatprep.subr.mxu0 0.0
        %628 = vmatpush1.msra.mxu0 %v610
        %629 = vmatprep.subr.mxu0 0.0
        %630 = vmatpush1.msra.mxu0 0.0
        %631 = vmatprep.subr.mxu0 0.0
        %632 = vmatpush1.msra.mxu0 0.0
        %633 = vmatprep.subr.mxu0 0.0
        %634 = vmatpush1.msra.mxu0 0.0
        %635 = vmatprep.subr.mxu0 0.0
        %636 = vmatpush1.msra.mxu0 0.0
        %637 = vmatprep.subr.mxu0 0.0
        %638 = vmatpush1.msra.mxu0 0.0
        %639 = vmatprep.subr.mxu0 0.0
        %640 = vmatpush1.msra.mxu0 0.0
        %641 = vmatprep.subr.mxu0 0.0
        %642 = vmatpush1.msra.mxu0 0.0
        %643 = vmatprep.subr.mxu0 0.0
        %644 = vmatpush1.msra.mxu0 0.0
        %645 = vmatprep.subr.mxu0 0.0
        %646 = vmatpush1.msra.mxu0 0.0
        %647 = vmatprep.subr.mxu0 0.0
        %648 = vmatpush1.msra.mxu0 0.0
        %649 = vmatprep.subr.mxu0 0.0
        %650 = vmatpush1.msra.mxu0 0.0
        %651 = vmatprep.subr.mxu0 0.0
        %652 = vmatpush1.msra.mxu0 0.0
        %653 = vmatprep.subr.mxu0 0.0
        %654 = vmatpush1.msra.mxu0 0.0
        %655 = vmatprep.subr.mxu0 0.0
        %656 = vmatpush1.msra.mxu0 0.0
        %657 = vmatprep.subr.mxu0 0.0
        %658 = vmatpush1.msra.mxu0 0.0
        %659 = vmatprep.subr.mxu0 0.0
        %660 = vmatpush1.msra.mxu0 0.0
        %661 = vmatprep.subr.mxu0 0.0
        %662 = vmatpush1.msra.mxu0 0.0
        %663 = vmatprep.subr.mxu0 0.0
        %664 = vmatpush1.msra.mxu0 0.0
        %665 = vmatprep.subr.mxu0 0.0
        %666 = vmatpush1.msra.mxu0 0.0
        %667 = vmatprep.subr.mxu0 0.0
        %668 = vmatpush1.msra.mxu0 0.0
        %669 = vmatprep.subr.mxu0 0.0
        %670 = vmatpush1.msra.mxu0 0.0
        %671 = vmatprep.subr.mxu0 0.0
        %672 = vmatpush1.msra.mxu0 0.0
        %673 = vmatprep.subr.mxu0 0.0
        %674 = vmatpush1.msra.mxu0 0.0
        %675 = vmatprep.subr.mxu0 0.0
        %676 = vmatpush1.msra.mxu0 0.0
        %677 = vmatprep.subr.mxu0 0.0
        %678 = vmatpush1.msra.mxu0 0.0
        %679 = vmatprep.subr.mxu0 0.0
        %680 = vmatpush1.msra.mxu0 0.0
        %681 = vmatprep.subr.mxu0 0.0
        %682 = vmatpush1.msra.mxu0 0.0
        %683 = vmatprep.subr.mxu0 0.0
        %684 = vmatpush1.msra.mxu0 0.0
        %685 = vmatprep.mubr.f32.mxu0 0.0
        %686 = vmatmul.mubr.f32.gmra.mrb[0].mxu0 %v619
        %v687 = vpop.f32.mrb[0].mxu0
        %v688 = vadd.f32 %v616, %v687
        %v689 = vpop.f32.mrb[0].mxu0
        %690 = vdwg.mxu0
        %v691 = vld [vmem:[%s6] sm:$0xff]
        %v692 = vld [vmem:[%s6 + $0x8] sm:$0xff]
        %v693 = vld [vmem:[%s6 + $0x10] sm:$0xff]
        %v694 = vld [vmem:[%s6 + $0x18] sm:$0xff]
        %696 = vrot.lane.b32.xlu0 %v688, 96
        %v697 = vpop.permute.xlu0 %696
        %vm698 = vcmask 64512
        %v699 = vsel %vm698, %v688, 0
        %v701 = vsel %vm698, %v697, 0
        %703 = vmatprep.subr.mxu0 0.0
        %704 = vmatpush1.xpose.msra.mxu0 %v701
        %705 = vmatprep.subr.mxu0 0.0
        %706 = vmatpush1.xpose.msra.mxu0 0.0
        %707 = vmatprep.subr.mxu0 0.0
        %708 = vmatpush1.xpose.msra.mxu0 0.0
        %709 = vmatprep.subr.mxu0 0.0
        %710 = vmatpush1.xpose.msra.mxu0 0.0
        %711 = vmatprep.subr.mxu0 0.0
        %712 = vmatpush1.xpose.msra.mxu0 0.0
        %713 = vmatprep.subr.mxu0 0.0
        %714 = vmatpush1.xpose.msra.mxu0 0.0
        %715 = vmatprep.subr.mxu0 0.0
        %716 = vmatpush1.xpose.msra.mxu0 0.0
        %717 = vmatprep.subr.mxu0 0.0
        %718 = vmatpush1.xpose.msra.mxu0 0.0
        %719 = vmatprep.subr.mxu0 0.0
        %720 = vmatpush1.xpose.msra.mxu0 0.0
        %721 = vmatprep.subr.mxu0 0.0
        %722 = vmatpush1.xpose.msra.mxu0 0.0
        %723 = vmatprep.subr.mxu0 0.0
        %724 = vmatpush1.xpose.msra.mxu0 0.0
        %725 = vmatprep.subr.mxu0 0.0
        %726 = vmatpush1.xpose.msra.mxu0 0.0
        %727 = vmatprep.subr.mxu0 0.0
        %728 = vmatpush1.xpose.msra.mxu0 0.0
        %729 = vmatprep.subr.mxu0 0.0
        %730 = vmatpush1.xpose.msra.mxu0 0.0
        %731 = vmatprep.subr.mxu0 0.0
        %732 = vmatpush1.xpose.msra.mxu0 0.0
        %733 = vmatprep.subr.mxu0 0.0
        %734 = vmatpush1.xpose.msra.mxu0 0.0
        %735 = vmatprep.subr.mxu0 0.0
        %736 = vmatpush1.xpose.msra.mxu0 0.0
        %737 = vmatprep.subr.mxu0 0.0
        %738 = vmatpush1.xpose.msra.mxu0 0.0
        %739 = vmatprep.subr.mxu0 0.0
        %740 = vmatpush1.xpose.msra.mxu0 0.0
        %741 = vmatprep.subr.mxu0 0.0
        %742 = vmatpush1.xpose.msra.mxu0 0.0
        %743 = vmatprep.subr.mxu0 0.0
        %744 = vmatpush1.xpose.msra.mxu0 0.0
        %745 = vmatprep.subr.mxu0 0.0
        %746 = vmatpush1.xpose.msra.mxu0 0.0
        %747 = vmatprep.subr.mxu0 0.0
        %748 = vmatpush1.xpose.msra.mxu0 0.0
        %749 = vmatprep.subr.mxu0 0.0
        %750 = vmatpush1.xpose.msra.mxu0 0.0
        %751 = vmatprep.subr.mxu0 0.0
        %752 = vmatpush1.xpose.msra.mxu0 0.0
        %753 = vmatprep.subr.mxu0 0.0
        %754 = vmatpush1.xpose.msra.mxu0 0.0
        %755 = vmatprep.subr.mxu0 0.0
        %756 = vmatpush1.xpose.msra.mxu0 0.0
        %757 = vmatprep.subr.mxu0 0.0
        %758 = vmatpush1.xpose.msra.mxu0 0.0
        %759 = vmatprep.subr.mxu0 0.0
        %760 = vmatpush1.xpose.msra.mxu0 0.0
        %761 = vmatprep.subr.mxu0 0.0
        %762 = vmatpush1.xpose.msra.mxu0 0.0
        %763 = vmatprep.subr.mxu0 0.0
        %764 = vmatpush1.xpose.msra.mxu0 0.0
        %765 = vmatprep.subr.mxu0 0.0
        %766 = vmatpush1.xpose.msra.mxu0 0.0
        %767 = vmatprep.mubr.f32.mxu0 0.0
        %768 = vmatmul.mubr.f32.gmra.mrb[0].mxu0 %v699
        %v769 = vpop.f32.mrb[0].mxu0
        %v770 = vadd.f32 0.0, %v769
        %v771 = vpop.f32.mrb[0].mxu0
        %772 = vdwg.mxu0
        %v773 = vsel %vm698, %v770, -inf
        %774 = vmax.xlane.f32.xlu0 %v773
        %v775 = vpop.xlane.xlu0 %774
        %v776 = vsub.f32 %v770, %v775
        %v777 = vmul.f32 %v776, 1.442695
        %v778 = vpow.pop %v777
        %v779 = vsel %vm698, %v778, 0.0
        %780 = vadd.xlane.f32.xlu0 %v779
        %v781 = vpop.xlane.xlu0 %780
        %v782 = vrcp.pop %v781
        %783 = vrot.lane.b32.xlu0 %v688, 64
        %v784 = vpop.permute.xlu0 %783
        %v787 = vsel %vm698, %v778, 0
        %789 = vmatprep.subr.mxu0 0.0
        %790 = vmatpush1.msra.mxu0 %v784
        %791 = vmatprep.subr.mxu0 0.0
        %792 = vmatpush1.msra.mxu0 0.0
        %793 = vmatprep.subr.mxu0 0.0
        %794 = vmatpush1.msra.mxu0 0.0
        %795 = vmatprep.subr.mxu0 0.0
        %796 = vmatpush1.msra.mxu0 0.0
        %797 = vmatprep.subr.mxu0 0.0
        %798 = vmatpush1.msra.mxu0 0.0
        %799 = vmatprep.subr.mxu0 0.0
        %800 = vmatpush1.msra.mxu0 0.0
        %801 = vmatprep.subr.mxu0 0.0
        %802 = vmatpush1.msra.mxu0 0.0
        %803 = vmatprep.subr.mxu0 0.0
        %804 = vmatpush1.msra.mxu0 0.0
        %805 = vmatprep.subr.mxu0 0.0
        %806 = vmatpush1.msra.mxu0 0.0
        %807 = vmatprep.subr.mxu0 0.0
        %808 = vmatpush1.msra.mxu0 0.0
        %809 = vmatprep.subr.mxu0 0.0
        %810 = vmatpush1.msra.mxu0 0.0
        %811 = vmatprep.subr.mxu0 0.0
        %812 = vmatpush1.msra.mxu0 0.0
        %813 = vmatprep.subr.mxu0 0.0
        %814 = vmatpush1.msra.mxu0 0.0
        %815 = vmatprep.subr.mxu0 0.0
        %816 = vmatpush1.msra.mxu0 0.0
        %817 = vmatprep.subr.mxu0 0.0
        %818 = vmatpush1.msra.mxu0 0.0
        %819 = vmatprep.subr.mxu0 0.0
        %820 = vmatpush1.msra.mxu0 0.0
        %821 = vmatprep.subr.mxu0 0.0
        %822 = vmatpush1.msra.mxu0 0.0
        %823 = vmatprep.subr.mxu0 0.0
        %824 = vmatpush1.msra.mxu0 0.0
        %825 = vmatprep.subr.mxu0 0.0
        %826 = vmatpush1.msra.mxu0 0.0
        %827 = vmatprep.subr.mxu0 0.0
        %828 = vmatpush1.msra.mxu0 0.0
        %829 = vmatprep.subr.mxu0 0.0
        %830 = vmatpush1.msra.mxu0 0.0
        %831 = vmatprep.subr.mxu0 0.0
        %832 = vmatpush1.msra.mxu0 0.0
        %833 = vmatprep.subr.mxu0 0.0
        %834 = vmatpush1.msra.mxu0 0.0
        %835 = vmatprep.subr.mxu0 0.0
        %836 = vmatpush1.msra.mxu0 0.0
        %837 = vmatprep.subr.mxu0 0.0
        %838 = vmatpush1.msra.mxu0 0.0
        %839 = vmatprep.subr.mxu0 0.0
        %840 = vmatpush1.msra.mxu0 0.0
        %841 = vmatprep.subr.mxu0 0.0
        %842 = vmatpush1.msra.mxu0 0.0
        %843 = vmatprep.subr.mxu0 0.0
        %844 = vmatpush1.msra.mxu0 0.0
        %845 = vmatprep.subr.mxu0 0.0
        %846 = vmatpush1.msra.mxu0 0.0
        %847 = vmatprep.subr.mxu0 0.0
        %848 = vmatpush1.msra.mxu0 0.0
        %849 = vmatprep.subr.mxu0 0.0
        %850 = vmatpush1.msra.mxu0 0.0
        %851 = vmatprep.subr.mxu0 0.0
        %852 = vmatpush1.msra.mxu0 0.0
        %853 = vmatprep.mubr.f32.mxu0 0.0
        %854 = vmatmul.mubr.f32.gmra.mrb[0].mxu0 %v787
        %v855 = vpop.f32.mrb[0].mxu0
        %v856 = vadd.f32 0.0, %v855
        %v857 = vpop.f32.mrb[0].mxu0
        %858 = vdwg.mxu0
        %v859 = vmul.f32 %v856, %v782
        %860 = vrot.lane.b32.xlu0 %v688, 120
        %v861 = vpop.permute.xlu0 %860
        %862 = vrot.lane.b32.xlu0 %v688, 88
        %v863 = vpop.permute.xlu0 %862
        %v864 = vsel %vm698, %v861, 0
        %v866 = vsel %vm698, %v863, 0
        %868 = vmatprep.subr.mxu0 0.0
        %869 = vmatpush1.xpose.msra.mxu0 %v866
        %870 = vmatprep.subr.mxu0 0.0
        %871 = vmatpush1.xpose.msra.mxu0 0.0
        %872 = vmatprep.subr.mxu0 0.0
        %873 = vmatpush1.xpose.msra.mxu0 0.0
        %874 = vmatprep.subr.mxu0 0.0
        %875 = vmatpush1.xpose.msra.mxu0 0.0
        %876 = vmatprep.subr.mxu0 0.0
        %877 = vmatpush1.xpose.msra.mxu0 0.0
        %878 = vmatprep.subr.mxu0 0.0
        %879 = vmatpush1.xpose.msra.mxu0 0.0
        %880 = vmatprep.subr.mxu0 0.0
        %881 = vmatpush1.xpose.msra.mxu0 0.0
        %882 = vmatprep.subr.mxu0 0.0
        %883 = vmatpush1.xpose.msra.mxu0 0.0
        %884 = vmatprep.subr.mxu0 0.0
        %885 = vmatpush1.xpose.msra.mxu0 0.0
        %886 = vmatprep.subr.mxu0 0.0
        %887 = vmatpush1.xpose.msra.mxu0 0.0
        %888 = vmatprep.subr.mxu0 0.0
        %889 = vmatpush1.xpose.msra.mxu0 0.0
        %890 = vmatprep.subr.mxu0 0.0
        %891 = vmatpush1.xpose.msra.mxu0 0.0
        %892 = vmatprep.subr.mxu0 0.0
        %893 = vmatpush1.xpose.msra.mxu0 0.0
        %894 = vmatprep.subr.mxu0 0.0
        %895 = vmatpush1.xpose.msra.mxu0 0.0
        %896 = vmatprep.subr.mxu0 0.0
        %897 = vmatpush1.xpose.msra.mxu0 0.0
        %898 = vmatprep.subr.mxu0 0.0
        %899 = vmatpush1.xpose.msra.mxu0 0.0
        %900 = vmatprep.subr.mxu0 0.0
        %901 = vmatpush1.xpose.msra.mxu0 0.0
        %902 = vmatprep.subr.mxu0 0.0
        %903 = vmatpush1.xpose.msra.mxu0 0.0
        %904 = vmatprep.subr.mxu0 0.0
        %905 = vmatpush1.xpose.msra.mxu0 0.0
        %906 = vmatprep.subr.mxu0 0.0
        %907 = vmatpush1.xpose.msra.mxu0 0.0
        %908 = vmatprep.subr.mxu0 0.0
        %909 = vmatpush1.xpose.msra.mxu0 0.0
        %910 = vmatprep.subr.mxu0 0.0
        %911 = vmatpush1.xpose.msra.mxu0 0.0
        %912 = vmatprep.subr.mxu0 0.0
        %913 = vmatpush1.xpose.msra.mxu0 0.0
        %914 = vmatprep.subr.mxu0 0.0
        %915 = vmatpush1.xpose.msra.mxu0 0.0
        %916 = vmatprep.subr.mxu0 0.0
        %917 = vmatpush1.xpose.msra.mxu0 0.0
        %918 = vmatprep.subr.mxu0 0.0
        %919 = vmatpush1.xpose.msra.mxu0 0.0
        %920 = vmatprep.subr.mxu0 0.0
        %921 = vmatpush1.xpose.msra.mxu0 0.0
        %922 = vmatprep.subr.mxu0 0.0
        %923 = vmatpush1.xpose.msra.mxu0 0.0
        %924 = vmatprep.subr.mxu0 0.0
        %925 = vmatpush1.xpose.msra.mxu0 0.0
        %926 = vmatprep.subr.mxu0 0.0
        %927 = vmatpush1.xpose.msra.mxu0 0.0
        %928 = vmatprep.subr.mxu0 0.0
        %929 = vmatpush1.xpose.msra.mxu0 0.0
        %930 = vmatprep.subr.mxu0 0.0
        %931 = vmatpush1.xpose.msra.mxu0 0.0
        %932 = vmatprep.mubr.f32.mxu0 0.0
        %933 = vmatmul.mubr.f32.gmra.mrb[0].mxu0 %v864
        %v934 = vpop.f32.mrb[0].mxu0
        %v935 = vadd.f32 0.0, %v934
        %v936 = vpop.f32.mrb[0].mxu0
        %937 = vdwg.mxu0
        %v938 = vsel %vm698, %v935, -inf
        %939 = vmax.xlane.f32.xlu0 %v938
        %v940 = vpop.xlane.xlu0 %939
        %v941 = vsub.f32 %v935, %v940
        %v942 = vmul.f32 %v941, 1.442695
        %v943 = vpow.pop %v942
        %v944 = vsel %vm698, %v943, 0.0
        %945 = vadd.xlane.f32.xlu0 %v944
        %v946 = vpop.xlane.xlu0 %945
        %v947 = vrcp.pop %v946
        %948 = vrot.lane.b32.xlu0 %v688, 56
        %v949 = vpop.permute.xlu0 %948
        %v952 = vsel %vm698, %v943, 0
        %954 = vmatprep.subr.mxu0 0.0
        %955 = vmatpush1.msra.mxu0 %v949
        %956 = vmatprep.subr.mxu0 0.0
        %957 = vmatpush1.msra.mxu0 0.0
        %958 = vmatprep.subr.mxu0 0.0
        %959 = vmatpush1.msra.mxu0 0.0
        %960 = vmatprep.subr.mxu0 0.0
        %961 = vmatpush1.msra.mxu0 0.0
        %962 = vmatprep.subr.mxu0 0.0
        %963 = vmatpush1.msra.mxu0 0.0
        %964 = vmatprep.subr.mxu0 0.0
        %965 = vmatpush1.msra.mxu0 0.0
        %966 = vmatprep.subr.mxu0 0.0
        %967 = vmatpush1.msra.mxu0 0.0
        %968 = vmatprep.subr.mxu0 0.0
        %969 = vmatpush1.msra.mxu0 0.0
        %970 = vmatprep.subr.mxu0 0.0
        %971 = vmatpush1.msra.mxu0 0.0
        %972 = vmatprep.subr.mxu0 0.0
        %973 = vmatpush1.msra.mxu0 0.0
        %974 = vmatprep.subr.mxu0 0.0
        %975 = vmatpush1.msra.mxu0 0.0
        %976 = vmatprep.subr.mxu0 0.0
        %977 = vmatpush1.msra.mxu0 0.0
        %978 = vmatprep.subr.mxu0 0.0
        %979 = vmatpush1.msra.mxu0 0.0
        %980 = vmatprep.subr.mxu0 0.0
        %981 = vmatpush1.msra.mxu0 0.0
        %982 = vmatprep.subr.mxu0 0.0
        %983 = vmatpush1.msra.mxu0 0.0
        %984 = vmatprep.subr.mxu0 0.0
        %985 = vmatpush1.msra.mxu0 0.0
        %986 = vmatprep.subr.mxu0 0.0
        %987 = vmatpush1.msra.mxu0 0.0
        %988 = vmatprep.subr.mxu0 0.0
        %989 = vmatpush1.msra.mxu0 0.0
        %990 = vmatprep.subr.mxu0 0.0
        %991 = vmatpush1.msra.mxu0 0.0
        %992 = vmatprep.subr.mxu0 0.0
        %993 = vmatpush1.msra.mxu0 0.0
        %994 = vmatprep.subr.mxu0 0.0
        %995 = vmatpush1.msra.mxu0 0.0
        %996 = vmatprep.subr.mxu0 0.0
        %997 = vmatpush1.msra.mxu0 0.0
        %998 = vmatprep.subr.mxu0 0.0
        %999 = vmatpush1.msra.mxu0 0.0
        %1000 = vmatprep.subr.mxu0 0.0
        %1001 = vmatpush1.msra.mxu0 0.0
        %1002 = vmatprep.subr.mxu0 0.0
        %1003 = vmatpush1.msra.mxu0 0.0
        %1004 = vmatprep.subr.mxu0 0.0
        %1005 = vmatpush1.msra.mxu0 0.0
        %1006 = vmatprep.subr.mxu0 0.0
        %1007 = vmatpush1.msra.mxu0 0.0
        %1008 = vmatprep.subr.mxu0 0.0
        %1009 = vmatpush1.msra.mxu0 0.0
        %1010 = vmatprep.subr.mxu0 0.0
        %1011 = vmatpush1.msra.mxu0 0.0
        %1012 = vmatprep.subr.mxu0 0.0
        %1013 = vmatpush1.msra.mxu0 0.0
        %1014 = vmatprep.subr.mxu0 0.0
        %1015 = vmatpush1.msra.mxu0 0.0
        %1016 = vmatprep.subr.mxu0 0.0
        %1017 = vmatpush1.msra.mxu0 0.0
        %1018 = vmatprep.mubr.f32.mxu0 0.0
        %1019 = vmatmul.mubr.f32.gmra.mrb[0].mxu0 %v952
        %v1020 = vpop.f32.mrb[0].mxu0
        %v1021 = vadd.f32 0.0, %v1020
        %v1022 = vpop.f32.mrb[0].mxu0
        %1023 = vdwg.mxu0
        %v1024 = vmul.f32 %v1021, %v947
        %1025 = vrot.lane.b32.xlu0 %v688, 112
        %v1026 = vpop.permute.xlu0 %1025
        %1027 = vrot.lane.b32.xlu0 %v688, 80
        %v1028 = vpop.permute.xlu0 %1027
        %v1029 = vsel %vm698, %v1026, 0
        %v1031 = vsel %vm698, %v1028, 0
        %1033 = vmatprep.subr.mxu0 0.0
        %1034 = vmatpush1.xpose.msra.mxu0 %v1031
        %1035 = vmatprep.subr.mxu0 0.0
        %1036 = vmatpush1.xpose.msra.mxu0 0.0
        %1037 = vmatprep.subr.mxu0 0.0
        %1038 = vmatpush1.xpose.msra.mxu0 0.0
        %1039 = vmatprep.subr.mxu0 0.0
        %1040 = vmatpush1.xpose.msra.mxu0 0.0
        %1041 = vmatprep.subr.mxu0 0.0
        %1042 = vmatpush1.xpose.msra.mxu0 0.0
        %1043 = vmatprep.subr.mxu0 0.0
        %1044 = vmatpush1.xpose.msra.mxu0 0.0
        %1045 = vmatprep.subr.mxu0 0.0
        %1046 = vmatpush1.xpose.msra.mxu0 0.0
        %1047 = vmatprep.subr.mxu0 0.0
        %1048 = vmatpush1.xpose.msra.mxu0 0.0
        %1049 = vmatprep.subr.mxu0 0.0
        %1050 = vmatpush1.xpose.msra.mxu0 0.0
        %1051 = vmatprep.subr.mxu0 0.0
        %1052 = vmatpush1.xpose.msra.mxu0 0.0
        %1053 = vmatprep.subr.mxu0 0.0
        %1054 = vmatpush1.xpose.msra.mxu0 0.0
        %1055 = vmatprep.subr.mxu0 0.0
        %1056 = vmatpush1.xpose.msra.mxu0 0.0
        %1057 = vmatprep.subr.mxu0 0.0
        %1058 = vmatpush1.xpose.msra.mxu0 0.0
        %1059 = vmatprep.subr.mxu0 0.0
        %1060 = vmatpush1.xpose.msra.mxu0 0.0
        %1061 = vmatprep.subr.mxu0 0.0
        %1062 = vmatpush1.xpose.msra.mxu0 0.0
        %1063 = vmatprep.subr.mxu0 0.0
        %1064 = vmatpush1.xpose.msra.mxu0 0.0
        %1065 = vmatprep.subr.mxu0 0.0
        %1066 = vmatpush1.xpose.msra.mxu0 0.0
        %1067 = vmatprep.subr.mxu0 0.0
        %1068 = vmatpush1.xpose.msra.mxu0 0.0
        %1069 = vmatprep.subr.mxu0 0.0
        %1070 = vmatpush1.xpose.msra.mxu0 0.0
        %1071 = vmatprep.subr.mxu0 0.0
        %1072 = vmatpush1.xpose.msra.mxu0 0.0
        %1073 = vmatprep.subr.mxu0 0.0
        %1074 = vmatpush1.xpose.msra.mxu0 0.0
        %1075 = vmatprep.subr.mxu0 0.0
        %1076 = vmatpush1.xpose.msra.mxu0 0.0
        %1077 = vmatprep.subr.mxu0 0.0
        %1078 = vmatpush1.xpose.msra.mxu0 0.0
        %1079 = vmatprep.subr.mxu0 0.0
        %1080 = vmatpush1.xpose.msra.mxu0 0.0
        %1081 = vmatprep.subr.mxu0 0.0
        %1082 = vmatpush1.xpose.msra.mxu0 0.0
        %1083 = vmatprep.subr.mxu0 0.0
        %1084 = vmatpush1.xpose.msra.mxu0 0.0
        %1085 = vmatprep.subr.mxu0 0.0
        %1086 = vmatpush1.xpose.msra.mxu0 0.0
        %1087 = vmatprep.subr.mxu0 0.0
        %1088 = vmatpush1.xpose.msra.mxu0 0.0
        %1089 = vmatprep.subr.mxu0 0.0
        %1090 = vmatpush1.xpose.msra.mxu0 0.0
        %1091 = vmatprep.subr.mxu0 0.0
        %1092 = vmatpush1.xpose.msra.mxu0 0.0
        %1093 = vmatprep.subr.mxu0 0.0
        %1094 = vmatpush1.xpose.msra.mxu0 0.0
        %1095 = vmatprep.subr.mxu0 0.0
        %1096 = vmatpush1.xpose.msra.mxu0 0.0
        %1097 = vmatprep.mubr.f32.mxu0 0.0
        %1098 = vmatmul.mubr.f32.gmra.mrb[0].mxu0 %v1029
        %v1099 = vpop.f32.mrb[0].mxu0
        %v1100 = vadd.f32 0.0, %v1099
        %v1101 = vpop.f32.mrb[0].mxu0
        %1102 = vdwg.mxu0
        %v1103 = vsel %vm698, %v1100, -inf
        %1104 = vmax.xlane.f32.xlu0 %v1103
        %v1105 = vpop.xlane.xlu0 %1104
        %v1106 = vsub.f32 %v1100, %v1105
        %v1107 = vmul.f32 %v1106, 1.442695
        %v1108 = vpow.pop %v1107
        %v1109 = vsel %vm698, %v1108, 0.0
        %1110 = vadd.xlane.f32.xlu0 %v1109
        %v1111 = vpop.xlane.xlu0 %1110
        %v1112 = vrcp.pop %v1111
        %1113 = vrot.lane.b32.xlu0 %v688, 48
        %v1114 = vpop.permute.xlu0 %1113
        %v1117 = vsel %vm698, %v1108, 0
        %1119 = vmatprep.subr.mxu0 0.0
        %1120 = vmatpush1.msra.mxu0 %v1114
        %1121 = vmatprep.subr.mxu0 0.0
        %1122 = vmatpush1.msra.mxu0 0.0
        %1123 = vmatprep.subr.mxu0 0.0
        %1124 = vmatpush1.msra.mxu0 0.0
        %1125 = vmatprep.subr.mxu0 0.0
        %1126 = vmatpush1.msra.mxu0 0.0
        %1127 = vmatprep.subr.mxu0 0.0
        %1128 = vmatpush1.msra.mxu0 0.0
        %1129 = vmatprep.subr.mxu0 0.0
        %1130 = vmatpush1.msra.mxu0 0.0
        %1131 = vmatprep.subr.mxu0 0.0
        %1132 = vmatpush1.msra.mxu0 0.0
        %1133 = vmatprep.subr.mxu0 0.0
        %1134 = vmatpush1.msra.mxu0 0.0
        %1135 = vmatprep.subr.mxu0 0.0
        %1136 = vmatpush1.msra.mxu0 0.0
        %1137 = vmatprep.subr.mxu0 0.0
        %1138 = vmatpush1.msra.mxu0 0.0
        %1139 = vmatprep.subr.mxu0 0.0
        %1140 = vmatpush1.msra.mxu0 0.0
        %1141 = vmatprep.subr.mxu0 0.0
        %1142 = vmatpush1.msra.mxu0 0.0
        %1143 = vmatprep.subr.mxu0 0.0
        %1144 = vmatpush1.msra.mxu0 0.0
        %1145 = vmatprep.subr.mxu0 0.0
        %1146 = vmatpush1.msra.mxu0 0.0
        %1147 = vmatprep.subr.mxu0 0.0
        %1148 = vmatpush1.msra.mxu0 0.0
        %1149 = vmatprep.subr.mxu0 0.0
        %1150 = vmatpush1.msra.mxu0 0.0
        %1151 = vmatprep.subr.mxu0 0.0
        %1152 = vmatpush1.msra.mxu0 0.0
        %1153 = vmatprep.subr.mxu0 0.0
        %1154 = vmatpush1.msra.mxu0 0.0
        %1155 = vmatprep.subr.mxu0 0.0
        %1156 = vmatpush1.msra.mxu0 0.0
        %1157 = vmatprep.subr.mxu0 0.0
        %1158 = vmatpush1.msra.mxu0 0.0
        %1159 = vmatprep.subr.mxu0 0.0
        %1160 = vmatpush1.msra.mxu0 0.0
        %1161 = vmatprep.subr.mxu0 0.0
        %1162 = vmatpush1.msra.mxu0 0.0
        %1163 = vmatprep.subr.mxu0 0.0
        %1164 = vmatpush1.msra.mxu0 0.0
        %1165 = vmatprep.subr.mxu0 0.0
        %1166 = vmatpush1.msra.mxu0 0.0
        %1167 = vmatprep.subr.mxu0 0.0
        %1168 = vmatpush1.msra.mxu0 0.0
        %1169 = vmatprep.subr.mxu0 0.0
        %1170 = vmatpush1.msra.mxu0 0.0
        %1171 = vmatprep.subr.mxu0 0.0
        %1172 = vmatpush1.msra.mxu0 0.0
        %1173 = vmatprep.subr.mxu0 0.0
        %1174 = vmatpush1.msra.mxu0 0.0
        %1175 = vmatprep.subr.mxu0 0.0
        %1176 = vmatpush1.msra.mxu0 0.0
        %1177 = vmatprep.subr.mxu0 0.0
        %1178 = vmatpush1.msra.mxu0 0.0
        %1179 = vmatprep.subr.mxu0 0.0
        %1180 = vmatpush1.msra.mxu0 0.0
        %1181 = vmatprep.subr.mxu0 0.0
        %1182 = vmatpush1.msra.mxu0 0.0
        %1183 = vmatprep.mubr.f32.mxu0 0.0
        %1184 = vmatmul.mubr.f32.gmra.mrb[0].mxu0 %v1117
        %v1185 = vpop.f32.mrb[0].mxu0
        %v1186 = vadd.f32 0.0, %v1185
        %v1187 = vpop.f32.mrb[0].mxu0
        %1188 = vdwg.mxu0
        %v1189 = vmul.f32 %v1186, %v1112
        %1190 = vrot.lane.b32.xlu0 %v688, 104
        %v1191 = vpop.permute.xlu0 %1190
        %1192 = vrot.lane.b32.xlu0 %v688, 72
        %v1193 = vpop.permute.xlu0 %1192
        %v1194 = vsel %vm698, %v1191, 0
        %v1196 = vsel %vm698, %v1193, 0
        %1198 = vmatprep.subr.mxu0 0.0
        %1199 = vmatpush1.xpose.msra.mxu0 %v1196
        %1200 = vmatprep.subr.mxu0 0.0
        %1201 = vmatpush1.xpose.msra.mxu0 0.0
        %1202 = vmatprep.subr.mxu0 0.0
        %1203 = vmatpush1.xpose.msra.mxu0 0.0
        %1204 = vmatprep.subr.mxu0 0.0
        %1205 = vmatpush1.xpose.msra.mxu0 0.0
        %1206 = vmatprep.subr.mxu0 0.0
        %1207 = vmatpush1.xpose.msra.mxu0 0.0
        %1208 = vmatprep.subr.mxu0 0.0
        %1209 = vmatpush1.xpose.msra.mxu0 0.0
        %1210 = vmatprep.subr.mxu0 0.0
        %1211 = vmatpush1.xpose.msra.mxu0 0.0
        %1212 = vmatprep.subr.mxu0 0.0
        %1213 = vmatpush1.xpose.msra.mxu0 0.0
        %1214 = vmatprep.subr.mxu0 0.0
        %1215 = vmatpush1.xpose.msra.mxu0 0.0
        %1216 = vmatprep.subr.mxu0 0.0
        %1217 = vmatpush1.xpose.msra.mxu0 0.0
        %1218 = vmatprep.subr.mxu0 0.0
        %1219 = vmatpush1.xpose.msra.mxu0 0.0
        %1220 = vmatprep.subr.mxu0 0.0
        %1221 = vmatpush1.xpose.msra.mxu0 0.0
        %1222 = vmatprep.subr.mxu0 0.0
        %1223 = vmatpush1.xpose.msra.mxu0 0.0
        %1224 = vmatprep.subr.mxu0 0.0
        %1225 = vmatpush1.xpose.msra.mxu0 0.0
        %1226 = vmatprep.subr.mxu0 0.0
        %1227 = vmatpush1.xpose.msra.mxu0 0.0
        %1228 = vmatprep.subr.mxu0 0.0
        %1229 = vmatpush1.xpose.msra.mxu0 0.0
        %1230 = vmatprep.subr.mxu0 0.0
        %1231 = vmatpush1.xpose.msra.mxu0 0.0
        %1232 = vmatprep.subr.mxu0 0.0
        %1233 = vmatpush1.xpose.msra.mxu0 0.0
        %1234 = vmatprep.subr.mxu0 0.0
        %1235 = vmatpush1.xpose.msra.mxu0 0.0
        %1236 = vmatprep.subr.mxu0 0.0
        %1237 = vmatpush1.xpose.msra.mxu0 0.0
        %1238 = vmatprep.subr.mxu0 0.0
        %1239 = vmatpush1.xpose.msra.mxu0 0.0
        %1240 = vmatprep.subr.mxu0 0.0
        %1241 = vmatpush1.xpose.msra.mxu0 0.0
        %1242 = vmatprep.subr.mxu0 0.0
        %1243 = vmatpush1.xpose.msra.mxu0 0.0
        %1244 = vmatprep.subr.mxu0 0.0
        %1245 = vmatpush1.xpose.msra.mxu0 0.0
        %1246 = vmatprep.subr.mxu0 0.0
        %1247 = vmatpush1.xpose.msra.mxu0 0.0
        %1248 = vmatprep.subr.mxu0 0.0
        %1249 = vmatpush1.xpose.msra.mxu0 0.0
        %1250 = vmatprep.subr.mxu0 0.0
        %1251 = vmatpush1.xpose.msra.mxu0 0.0
        %1252 = vmatprep.subr.mxu0 0.0
        %1253 = vmatpush1.xpose.msra.mxu0 0.0
        %1254 = vmatprep.subr.mxu0 0.0
        %1255 = vmatpush1.xpose.msra.mxu0 0.0
        %1256 = vmatprep.subr.mxu0 0.0
        %1257 = vmatpush1.xpose.msra.mxu0 0.0
        %1258 = vmatprep.subr.mxu0 0.0
        %1259 = vmatpush1.xpose.msra.mxu0 0.0
        %1260 = vmatprep.subr.mxu0 0.0
        %1261 = vmatpush1.xpose.msra.mxu0 0.0
        %1262 = vmatprep.mubr.f32.mxu0 0.0
        %1263 = vmatmul.mubr.f32.gmra.mrb[0].mxu0 %v1194
        %v1264 = vpop.f32.mrb[0].mxu0
        %v1265 = vadd.f32 0.0, %v1264
        %v1266 = vpop.f32.mrb[0].mxu0
        %1267 = vdwg.mxu0
        %v1268 = vsel %vm698, %v1265, -inf
        %1269 = vmax.xlane.f32.xlu0 %v1268
        %v1270 = vpop.xlane.xlu0 %1269
        %v1271 = vsub.f32 %v1265, %v1270
        %v1272 = vmul.f32 %v1271, 1.442695
        %v1273 = vpow.pop %v1272
        %v1274 = vsel %vm698, %v1273, 0.0
        %1275 = vadd.xlane.f32.xlu0 %v1274
        %v1276 = vpop.xlane.xlu0 %1275
        %v1277 = vrcp.pop %v1276
        %1278 = vrot.lane.b32.xlu0 %v688, 40
        %v1279 = vpop.permute.xlu0 %1278
        %v1282 = vsel %vm698, %v1273, 0
        %1284 = vmatprep.subr.mxu0 0.0
        %1285 = vmatpush1.msra.mxu0 %v1279
        %1286 = vmatprep.subr.mxu0 0.0
        %1287 = vmatpush1.msra.mxu0 0.0
        %1288 = vmatprep.subr.mxu0 0.0
        %1289 = vmatpush1.msra.mxu0 0.0
        %1290 = vmatprep.subr.mxu0 0.0
        %1291 = vmatpush1.msra.mxu0 0.0
        %1292 = vmatprep.subr.mxu0 0.0
        %1293 = vmatpush1.msra.mxu0 0.0
        %1294 = vmatprep.subr.mxu0 0.0
        %1295 = vmatpush1.msra.mxu0 0.0
        %1296 = vmatprep.subr.mxu0 0.0
        %1297 = vmatpush1.msra.mxu0 0.0
        %1298 = vmatprep.subr.mxu0 0.0
        %1299 = vmatpush1.msra.mxu0 0.0
        %1300 = vmatprep.subr.mxu0 0.0
        %1301 = vmatpush1.msra.mxu0 0.0
        %1302 = vmatprep.subr.mxu0 0.0
        %1303 = vmatpush1.msra.mxu0 0.0
        %1304 = vmatprep.subr.mxu0 0.0
        %1305 = vmatpush1.msra.mxu0 0.0
        %1306 = vmatprep.subr.mxu0 0.0
        %1307 = vmatpush1.msra.mxu0 0.0
        %1308 = vmatprep.subr.mxu0 0.0
        %1309 = vmatpush1.msra.mxu0 0.0
        %1310 = vmatprep.subr.mxu0 0.0
        %1311 = vmatpush1.msra.mxu0 0.0
        %1312 = vmatprep.subr.mxu0 0.0
        %1313 = vmatpush1.msra.mxu0 0.0
        %1314 = vmatprep.subr.mxu0 0.0
        %1315 = vmatpush1.msra.mxu0 0.0
        %1316 = vmatprep.subr.mxu0 0.0
        %1317 = vmatpush1.msra.mxu0 0.0
        %1318 = vmatprep.subr.mxu0 0.0
        %1319 = vmatpush1.msra.mxu0 0.0
        %1320 = vmatprep.subr.mxu0 0.0
        %1321 = vmatpush1.msra.mxu0 0.0
        %1322 = vmatprep.subr.mxu0 0.0
        %1323 = vmatpush1.msra.mxu0 0.0
        %1324 = vmatprep.subr.mxu0 0.0
        %1325 = vmatpush1.msra.mxu0 0.0
        %1326 = vmatprep.subr.mxu0 0.0
        %1327 = vmatpush1.msra.mxu0 0.0
        %1328 = vmatprep.subr.mxu0 0.0
        %1329 = vmatpush1.msra.mxu0 0.0
        %1330 = vmatprep.subr.mxu0 0.0
        %1331 = vmatpush1.msra.mxu0 0.0
        %1332 = vmatprep.subr.mxu0 0.0
        %1333 = vmatpush1.msra.mxu0 0.0
        %1334 = vmatprep.subr.mxu0 0.0
        %1335 = vmatpush1.msra.mxu0 0.0
        %1336 = vmatprep.subr.mxu0 0.0
        %1337 = vmatpush1.msra.mxu0 0.0
        %1338 = vmatprep.subr.mxu0 0.0
        %1339 = vmatpush1.msra.mxu0 0.0
        %1340 = vmatprep.subr.mxu0 0.0
        %1341 = vmatpush1.msra.mxu0 0.0
        %1342 = vmatprep.subr.mxu0 0.0
        %1343 = vmatpush1.msra.mxu0 0.0
        %1344 = vmatprep.subr.mxu0 0.0
        %1345 = vmatpush1.msra.mxu0 0.0
        %1346 = vmatprep.subr.mxu0 0.0
        %1347 = vmatpush1.msra.mxu0 0.0
        %1348 = vmatprep.mubr.f32.mxu0 0.0
        %1349 = vmatmul.mubr.f32.gmra.mrb[0].mxu0 %v1282
        %v1350 = vpop.f32.mrb[0].mxu0
        %v1351 = vadd.f32 0.0, %v1350
        %v1352 = vpop.f32.mrb[0].mxu0
        %1353 = vdwg.mxu0
        %v1354 = vmul.f32 %v1351, %v1277
        %v1356 = vsel %vm698, %v1024, 0
        %1358 = vmatprep.subr.mxu0 0.0
        %1359 = vmatpush1.msra.mxu0 %v692
        %1360 = vmatprep.subr.mxu0 0.0
        %1361 = vmatpush1.msra.mxu0 0.0
        %1362 = vmatprep.subr.mxu0 0.0
        %1363 = vmatpush1.msra.mxu0 0.0
        %1364 = vmatprep.subr.mxu0 0.0
        %1365 = vmatpush1.msra.mxu0 0.0
        %1366 = vmatprep.subr.mxu0 0.0
        %1367 = vmatpush1.msra.mxu0 0.0
        %1368 = vmatprep.subr.mxu0 0.0
        %1369 = vmatpush1.msra.mxu0 0.0
        %1370 = vmatprep.subr.mxu0 0.0
        %1371 = vmatpush1.msra.mxu0 0.0
        %1372 = vmatprep.subr.mxu0 0.0
        %1373 = vmatpush1.msra.mxu0 0.0
        %1374 = vmatprep.subr.mxu0 0.0
        %1375 = vmatpush1.msra.mxu0 0.0
        %1376 = vmatprep.subr.mxu0 0.0
        %1377 = vmatpush1.msra.mxu0 0.0
        %1378 = vmatprep.subr.mxu0 0.0
        %1379 = vmatpush1.msra.mxu0 0.0
        %1380 = vmatprep.subr.mxu0 0.0
        %1381 = vmatpush1.msra.mxu0 0.0
        %1382 = vmatprep.subr.mxu0 0.0
        %1383 = vmatpush1.msra.mxu0 0.0
        %1384 = vmatprep.subr.mxu0 0.0
        %1385 = vmatpush1.msra.mxu0 0.0
        %1386 = vmatprep.subr.mxu0 0.0
        %1387 = vmatpush1.msra.mxu0 0.0
        %1388 = vmatprep.subr.mxu0 0.0
        %1389 = vmatpush1.msra.mxu0 0.0
        %1390 = vmatprep.subr.mxu0 0.0
        %1391 = vmatpush1.msra.mxu0 0.0
        %1392 = vmatprep.subr.mxu0 0.0
        %1393 = vmatpush1.msra.mxu0 0.0
        %1394 = vmatprep.subr.mxu0 0.0
        %1395 = vmatpush1.msra.mxu0 0.0
        %1396 = vmatprep.subr.mxu0 0.0
        %1397 = vmatpush1.msra.mxu0 0.0
        %1398 = vmatprep.subr.mxu0 0.0
        %1399 = vmatpush1.msra.mxu0 0.0
        %1400 = vmatprep.subr.mxu0 0.0
        %1401 = vmatpush1.msra.mxu0 0.0
        %1402 = vmatprep.subr.mxu0 0.0
        %1403 = vmatpush1.msra.mxu0 0.0
        %1404 = vmatprep.subr.mxu0 0.0
        %1405 = vmatpush1.msra.mxu0 0.0
        %1406 = vmatprep.subr.mxu0 0.0
        %1407 = vmatpush1.msra.mxu0 0.0
        %1408 = vmatprep.subr.mxu0 0.0
        %1409 = vmatpush1.msra.mxu0 0.0
        %1410 = vmatprep.subr.mxu0 0.0
        %1411 = vmatpush1.msra.mxu0 0.0
        %1412 = vmatprep.subr.mxu0 0.0
        %1413 = vmatpush1.msra.mxu0 0.0
        %1414 = vmatprep.subr.mxu0 0.0
        %1415 = vmatpush1.msra.mxu0 0.0
        %1416 = vmatprep.subr.mxu0 0.0
        %1417 = vmatpush1.msra.mxu0 0.0
        %1418 = vmatprep.subr.mxu0 0.0
        %1419 = vmatpush1.msra.mxu0 0.0
        %1420 = vmatprep.subr.mxu0 0.0
        %1421 = vmatpush1.msra.mxu0 0.0
        %1422 = vmatprep.mubr.f32.mxu0 0.0
        %1423 = vmatmul.mubr.f32.gmra.mrb[0].mxu0 %v1356
        %v1424 = vpop.f32.mrb[0].mxu0
        %v1425 = vadd.f32 0.0, %v1424
        %v1426 = vpop.f32.mrb[0].mxu0
        %1427 = vdwg.mxu0
        %v1429 = vsel %vm698, %v1354, 0
        %1431 = vmatprep.subr.mxu0 0.0
        %1432 = vmatpush1.msra.mxu0 %v694
        %1433 = vmatprep.subr.mxu0 0.0
        %1434 = vmatpush1.msra.mxu0 0.0
        %1435 = vmatprep.subr.mxu0 0.0
        %1436 = vmatpush1.msra.mxu0 0.0
        %1437 = vmatprep.subr.mxu0 0.0
        %1438 = vmatpush1.msra.mxu0 0.0
        %1439 = vmatprep.subr.mxu0 0.0
        %1440 = vmatpush1.msra.mxu0 0.0
        %1441 = vmatprep.subr.mxu0 0.0
        %1442 = vmatpush1.msra.mxu0 0.0
        %1443 = vmatprep.subr.mxu0 0.0
        %1444 = vmatpush1.msra.mxu0 0.0
        %1445 = vmatprep.subr.mxu0 0.0
        %1446 = vmatpush1.msra.mxu0 0.0
        %1447 = vmatprep.subr.mxu0 0.0
        %1448 = vmatpush1.msra.mxu0 0.0
        %1449 = vmatprep.subr.mxu0 0.0
        %1450 = vmatpush1.msra.mxu0 0.0
        %1451 = vmatprep.subr.mxu0 0.0
        %1452 = vmatpush1.msra.mxu0 0.0
        %1453 = vmatprep.subr.mxu0 0.0
        %1454 = vmatpush1.msra.mxu0 0.0
        %1455 = vmatprep.subr.mxu0 0.0
        %1456 = vmatpush1.msra.mxu0 0.0
        %1457 = vmatprep.subr.mxu0 0.0
        %1458 = vmatpush1.msra.mxu0 0.0
        %1459 = vmatprep.subr.mxu0 0.0
        %1460 = vmatpush1.msra.mxu0 0.0
        %1461 = vmatprep.subr.mxu0 0.0
        %1462 = vmatpush1.msra.mxu0 0.0
        %1463 = vmatprep.subr.mxu0 0.0
        %1464 = vmatpush1.msra.mxu0 0.0
        %1465 = vmatprep.subr.mxu0 0.0
        %1466 = vmatpush1.msra.mxu0 0.0
        %1467 = vmatprep.subr.mxu0 0.0
        %1468 = vmatpush1.msra.mxu0 0.0
        %1469 = vmatprep.subr.mxu0 0.0
        %1470 = vmatpush1.msra.mxu0 0.0
        %1471 = vmatprep.subr.mxu0 0.0
        %1472 = vmatpush1.msra.mxu0 0.0
        %1473 = vmatprep.subr.mxu0 0.0
        %1474 = vmatpush1.msra.mxu0 0.0
        %1475 = vmatprep.subr.mxu0 0.0
        %1476 = vmatpush1.msra.mxu0 0.0
        %1477 = vmatprep.subr.mxu0 0.0
        %1478 = vmatpush1.msra.mxu0 0.0
        %1479 = vmatprep.subr.mxu0 0.0
        %1480 = vmatpush1.msra.mxu0 0.0
        %1481 = vmatprep.subr.mxu0 0.0
        %1482 = vmatpush1.msra.mxu0 0.0
        %1483 = vmatprep.subr.mxu0 0.0
        %1484 = vmatpush1.msra.mxu0 0.0
        %1485 = vmatprep.subr.mxu0 0.0
        %1486 = vmatpush1.msra.mxu0 0.0
        %1487 = vmatprep.subr.mxu0 0.0
        %1488 = vmatpush1.msra.mxu0 0.0
        %1489 = vmatprep.subr.mxu0 0.0
        %1490 = vmatpush1.msra.mxu0 0.0
        %1491 = vmatprep.subr.mxu0 0.0
        %1492 = vmatpush1.msra.mxu0 0.0
        %1493 = vmatprep.subr.mxu0 0.0
        %1494 = vmatpush1.msra.mxu0 0.0
        %1495 = vmatprep.mubr.f32.mxu0 0.0
        %1496 = vmatmul.mubr.f32.gmra.mrb[0].mxu0 %v1429
        %v1497 = vpop.f32.mrb[0].mxu0
        %v1498 = vadd.f32 0.0, %v1497
        %v1499 = vpop.f32.mrb[0].mxu0
        %1500 = vdwg.mxu0
        %v1502 = vsel %vm698, %v859, 0
        %1504 = vmatprep.subr.mxu0 0.0
        %1505 = vmatpush1.msra.mxu0 %v691
        %1506 = vmatprep.subr.mxu0 0.0
        %1507 = vmatpush1.msra.mxu0 0.0
        %1508 = vmatprep.subr.mxu0 0.0
        %1509 = vmatpush1.msra.mxu0 0.0
        %1510 = vmatprep.subr.mxu0 0.0
        %1511 = vmatpush1.msra.mxu0 0.0
        %1512 = vmatprep.subr.mxu0 0.0
        %1513 = vmatpush1.msra.mxu0 0.0
        %1514 = vmatprep.subr.mxu0 0.0
        %1515 = vmatpush1.msra.mxu0 0.0
        %1516 = vmatprep.subr.mxu0 0.0
        %1517 = vmatpush1.msra.mxu0 0.0
        %1518 = vmatprep.subr.mxu0 0.0
        %1519 = vmatpush1.msra.mxu0 0.0
        %1520 = vmatprep.subr.mxu0 0.0
        %1521 = vmatpush1.msra.mxu0 0.0
        %1522 = vmatprep.subr.mxu0 0.0
        %1523 = vmatpush1.msra.mxu0 0.0
        %1524 = vmatprep.subr.mxu0 0.0
        %1525 = vmatpush1.msra.mxu0 0.0
        %1526 = vmatprep.subr.mxu0 0.0
        %1527 = vmatpush1.msra.mxu0 0.0
        %1528 = vmatprep.subr.mxu0 0.0
        %1529 = vmatpush1.msra.mxu0 0.0
        %1530 = vmatprep.subr.mxu0 0.0
        %1531 = vmatpush1.msra.mxu0 0.0
        %1532 = vmatprep.subr.mxu0 0.0
        %1533 = vmatpush1.msra.mxu0 0.0
        %1534 = vmatprep.subr.mxu0 0.0
        %1535 = vmatpush1.msra.mxu0 0.0
        %1536 = vmatprep.subr.mxu0 0.0
        %1537 = vmatpush1.msra.mxu0 0.0
        %1538 = vmatprep.subr.mxu0 0.0
        %1539 = vmatpush1.msra.mxu0 0.0
        %1540 = vmatprep.subr.mxu0 0.0
        %1541 = vmatpush1.msra.mxu0 0.0
        %1542 = vmatprep.subr.mxu0 0.0
        %1543 = vmatpush1.msra.mxu0 0.0
        %1544 = vmatprep.subr.mxu0 0.0
        %1545 = vmatpush1.msra.mxu0 0.0
        %1546 = vmatprep.subr.mxu0 0.0
        %1547 = vmatpush1.msra.mxu0 0.0
        %1548 = vmatprep.subr.mxu0 0.0
        %1549 = vmatpush1.msra.mxu0 0.0
        %1550 = vmatprep.subr.mxu0 0.0
        %1551 = vmatpush1.msra.mxu0 0.0
        %1552 = vmatprep.subr.mxu0 0.0
        %1553 = vmatpush1.msra.mxu0 0.0
        %1554 = vmatprep.subr.mxu0 0.0
        %1555 = vmatpush1.msra.mxu0 0.0
        %1556 = vmatprep.subr.mxu0 0.0
        %1557 = vmatpush1.msra.mxu0 0.0
        %1558 = vmatprep.subr.mxu0 0.0
        %1559 = vmatpush1.msra.mxu0 0.0
        %1560 = vmatprep.subr.mxu0 0.0
        %1561 = vmatpush1.msra.mxu0 0.0
        %1562 = vmatprep.subr.mxu0 0.0
        %1563 = vmatpush1.msra.mxu0 0.0
        %1564 = vmatprep.subr.mxu0 0.0
        %1565 = vmatpush1.msra.mxu0 0.0
        %1566 = vmatprep.subr.mxu0 0.0
        %1567 = vmatpush1.msra.mxu0 0.0
        %1568 = vmatprep.mubr.f32.mxu0 0.0
        %1569 = vmatmul.mubr.f32.gmra.mrb[0].mxu0 %v1502
        %v1570 = vpop.f32.mrb[0].mxu0
        %v1571 = vadd.f32 %v1425, %v1570
        %v1572 = vpop.f32.mrb[0].mxu0
        %1573 = vdwg.mxu0
        %v1575 = vsel %vm698, %v1189, 0
        %1577 = vmatprep.subr.mxu0 0.0
        %1578 = vmatpush1.msra.mxu0 %v693
        %1579 = vmatprep.subr.mxu0 0.0
        %1580 = vmatpush1.msra.mxu0 0.0
        %1581 = vmatprep.subr.mxu0 0.0
        %1582 = vmatpush1.msra.mxu0 0.0
        %1583 = vmatprep.subr.mxu0 0.0
        %1584 = vmatpush1.msra.mxu0 0.0
        %1585 = vmatprep.subr.mxu0 0.0
        %1586 = vmatpush1.msra.mxu0 0.0
        %1587 = vmatprep.subr.mxu0 0.0
        %1588 = vmatpush1.msra.mxu0 0.0
        %1589 = vmatprep.subr.mxu0 0.0
        %1590 = vmatpush1.msra.mxu0 0.0
        %1591 = vmatprep.subr.mxu0 0.0
        %1592 = vmatpush1.msra.mxu0 0.0
        %1593 = vmatprep.subr.mxu0 0.0
        %1594 = vmatpush1.msra.mxu0 0.0
        %1595 = vmatprep.subr.mxu0 0.0
        %1596 = vmatpush1.msra.mxu0 0.0
        %1597 = vmatprep.subr.mxu0 0.0
        %1598 = vmatpush1.msra.mxu0 0.0
        %1599 = vmatprep.subr.mxu0 0.0
        %1600 = vmatpush1.msra.mxu0 0.0
        %1601 = vmatprep.subr.mxu0 0.0
        %1602 = vmatpush1.msra.mxu0 0.0
        %1603 = vmatprep.subr.mxu0 0.0
        %1604 = vmatpush1.msra.mxu0 0.0
        %1605 = vmatprep.subr.mxu0 0.0
        %1606 = vmatpush1.msra.mxu0 0.0
        %1607 = vmatprep.subr.mxu0 0.0
        %1608 = vmatpush1.msra.mxu0 0.0
        %1609 = vmatprep.subr.mxu0 0.0
        %1610 = vmatpush1.msra.mxu0 0.0
        %1611 = vmatprep.subr.mxu0 0.0
        %1612 = vmatpush1.msra.mxu0 0.0
        %1613 = vmatprep.subr.mxu0 0.0
        %1614 = vmatpush1.msra.mxu0 0.0
        %1615 = vmatprep.subr.mxu0 0.0
        %1616 = vmatpush1.msra.mxu0 0.0
        %1617 = vmatprep.subr.mxu0 0.0
        %1618 = vmatpush1.msra.mxu0 0.0
        %1619 = vmatprep.subr.mxu0 0.0
        %1620 = vmatpush1.msra.mxu0 0.0
        %1621 = vmatprep.subr.mxu0 0.0
        %1622 = vmatpush1.msra.mxu0 0.0
        %1623 = vmatprep.subr.mxu0 0.0
        %1624 = vmatpush1.msra.mxu0 0.0
        %1625 = vmatprep.subr.mxu0 0.0
        %1626 = vmatpush1.msra.mxu0 0.0
        %1627 = vmatprep.subr.mxu0 0.0
        %1628 = vmatpush1.msra.mxu0 0.0
        %1629 = vmatprep.subr.mxu0 0.0
        %1630 = vmatpush1.msra.mxu0 0.0
        %1631 = vmatprep.subr.mxu0 0.0
        %1632 = vmatpush1.msra.mxu0 0.0
        %1633 = vmatprep.subr.mxu0 0.0
        %1634 = vmatpush1.msra.mxu0 0.0
        %1635 = vmatprep.subr.mxu0 0.0
        %1636 = vmatpush1.msra.mxu0 0.0
        %1637 = vmatprep.subr.mxu0 0.0
        %1638 = vmatpush1.msra.mxu0 0.0
        %1639 = vmatprep.subr.mxu0 0.0
        %1640 = vmatpush1.msra.mxu0 0.0
        %1641 = vmatprep.mubr.f32.mxu0 0.0
        %1642 = vmatmul.mubr.f32.gmra.mrb[0].mxu0 %v1575
        %v1643 = vpop.f32.mrb[0].mxu0
        %v1644 = vadd.f32 %v1498, %v1643
        %v1645 = vpop.f32.mrb[0].mxu0
        %1646 = vdwg.mxu0
        %v1647 = vadd.f32 %v1571, %v1644
        %v1648 = vld [vmem:[%s7] sm:$0x1]
        %v1650 = vlaneseq
        %v1651 = vshrl.u32 %v1650, 7
        %v1652 = vsub.s32 0, %v1651
        %v1653 = vrot.slane %v1648, %v1652
        %v1655 = vadd.f32 %v1647, %v1653
        %v1656 = vadd.f32 %v1655, %v606
        %v1657 = vld [vmem:[%s8] sm:$0x1]
        %v1658 = vld [vmem:[%s9] sm:$0x1]
        %v1659 = vsel %vm576, %v1656, 0.0
        %1660 = vadd.xlane.f32.xlu0 %v1659
        %v1661 = vpop.xlane.xlu0 %1660
        %v1662 = vmul.f32 %v1661, %v580
        %v1663 = vmul.f32 %v1656, %v1656
        %v1664 = vsel %vm576, %v1663, 0.0
        %1665 = vadd.xlane.f32.xlu0 %v1664
        %v1666 = vpop.xlane.xlu0 %1665
        %v1667 = vmul.f32 %v1666, %v580
        %v1668 = vmul.f32 %v1662, %v1662
        %v1669 = vsub.f32 %v1667, %v1668
        %v1670 = vadd.f32 %v1669, 1e-12
        %v1671 = vrsqrt.pop %v1670
        %v1672 = vsub.f32 %v1656, %v1662
        %v1673 = vmul.f32 %v1672, %v1671
        %v1675 = vlaneseq
        %v1676 = vshrl.u32 %v1675, 7
        %v1677 = vsub.s32 0, %v1676
        %v1678 = vrot.slane %v1657, %v1677
        %v1680 = vmul.f32 %v1673, %v1678
        %v1682 = vlaneseq
        %v1683 = vshrl.u32 %v1682, 7
        %v1684 = vsub.s32 0, %v1683
        %v1685 = vrot.slane %v1658, %v1684
        %v1687 = vadd.f32 %v1680, %v1685
        %v1688 = vld [vmem:[%s10] sm:$0xff]
        %v1689 = vld [vmem:[%s10 + $0x8] sm:$0xff]
        %v1690 = vld [vmem:[%s10 + $0x10] sm:$0xff]
        %v1691 = vld [vmem:[%s10 + $0x18] sm:$0xff]
        %v1692 = vld [vmem:[%s11] sm:$0x1]
        %v1694 = vlaneseq
        %v1695 = vshrl.u32 %v1694, 7
        %v1696 = vsub.s32 0, %v1695
        %v1697 = vrot.slane %v1692, %v1696
        %v1700 = vsel %vm576, %v1687, 0
        %1702 = vmatprep.subr.mxu0 0.0
        %1703 = vmatpush1.msra.mxu0 %v1688
        %1704 = vmatprep.subr.mxu0 0.0
        %1705 = vmatpush1.msra.mxu0 %v1689
        %1706 = vmatprep.subr.mxu0 0.0
        %1707 = vmatpush1.msra.mxu0 %v1690
        %1708 = vmatprep.subr.mxu0 0.0
        %1709 = vmatpush1.msra.mxu0 %v1691
        %1710 = vmatprep.subr.mxu0 0.0
        %1711 = vmatpush1.msra.mxu0 0.0
        %1712 = vmatprep.subr.mxu0 0.0
        %1713 = vmatpush1.msra.mxu0 0.0
        %1714 = vmatprep.subr.mxu0 0.0
        %1715 = vmatpush1.msra.mxu0 0.0
        %1716 = vmatprep.subr.mxu0 0.0
        %1717 = vmatpush1.msra.mxu0 0.0
        %1718 = vmatprep.subr.mxu0 0.0
        %1719 = vmatpush1.msra.mxu0 0.0
        %1720 = vmatprep.subr.mxu0 0.0
        %1721 = vmatpush1.msra.mxu0 0.0
        %1722 = vmatprep.subr.mxu0 0.0
        %1723 = vmatpush1.msra.mxu0 0.0
        %1724 = vmatprep.subr.mxu0 0.0
        %1725 = vmatpush1.msra.mxu0 0.0
        %1726 = vmatprep.subr.mxu0 0.0
        %1727 = vmatpush1.msra.mxu0 0.0
        %1728 = vmatprep.subr.mxu0 0.0
        %1729 = vmatpush1.msra.mxu0 0.0
        %1730 = vmatprep.subr.mxu0 0.0
        %1731 = vmatpush1.msra.mxu0 0.0
        %1732 = vmatprep.subr.mxu0 0.0
        %1733 = vmatpush1.msra.mxu0 0.0
        %1734 = vmatprep.subr.mxu0 0.0
        %1735 = vmatpush1.msra.mxu0 0.0
        %1736 = vmatprep.subr.mxu0 0.0
        %1737 = vmatpush1.msra.mxu0 0.0
        %1738 = vmatprep.subr.mxu0 0.0
        %1739 = vmatpush1.msra.mxu0 0.0
        %1740 = vmatprep.subr.mxu0 0.0
        %1741 = vmatpush1.msra.mxu0 0.0
        %1742 = vmatprep.subr.mxu0 0.0
        %1743 = vmatpush1.msra.mxu0 0.0
        %1744 = vmatprep.subr.mxu0 0.0
        %1745 = vmatpush1.msra.mxu0 0.0
        %1746 = vmatprep.subr.mxu0 0.0
        %1747 = vmatpush1.msra.mxu0 0.0
        %1748 = vmatprep.subr.mxu0 0.0
        %1749 = vmatpush1.msra.mxu0 0.0
        %1750 = vmatprep.subr.mxu0 0.0
        %1751 = vmatpush1.msra.mxu0 0.0
        %1752 = vmatprep.subr.mxu0 0.0
        %1753 = vmatpush1.msra.mxu0 0.0
        %1754 = vmatprep.subr.mxu0 0.0
        %1755 = vmatpush1.msra.mxu0 0.0
        %1756 = vmatprep.subr.mxu0 0.0
        %1757 = vmatpush1.msra.mxu0 0.0
        %1758 = vmatprep.subr.mxu0 0.0
        %1759 = vmatpush1.msra.mxu0 0.0
        %1760 = vmatprep.subr.mxu0 0.0
        %1761 = vmatpush1.msra.mxu0 0.0
        %1762 = vmatprep.subr.mxu0 0.0
        %1763 = vmatpush1.msra.mxu0 0.0
        %1764 = vmatprep.subr.mxu0 0.0
        %1765 = vmatpush1.msra.mxu0 0.0
        %1766 = vmatprep.mubr.f32.mxu0 0.0
        %1767 = vmatmul.mubr.f32.gmra.mrb[0].mxu0 %v1700
        %v1768 = vpop.f32.mrb[0].mxu0
        %v1769 = vadd.f32 %v1697, %v1768
        %v1770 = vpop.f32.mrb[0].mxu0
        %1771 = vdwg.mxu0
        %v1772 = vmul.f32 %v1769, 0.5
        %v1773 = vmul.f32 %v1769, 0.044715
        %v1774 = vmul.f32 %v1773, %v1769
        %v1775 = vmul.f32 %v1774, %v1769
        %v1776 = vadd.f32 %v1769, %v1775
        %v1777 = vmul.f32 %v1776, 0.7978846
        %v1778 = vtanh.pop %v1777
        %v1779 = vadd.f32 %v1778, 1.0
        %v1780 = vmul.f32 %v1772, %v1779
        %v1781 = vld [vmem:[%s12] sm:$0xff]
        %v1782 = vld [vmem:[%s12 + $0x8] sm:$0xff]
        %v1783 = vld [vmem:[%s12 + $0x10] sm:$0xff]
        %v1784 = vld [vmem:[%s12 + $0x18] sm:$0xff]
        %v1785 = vld [vmem:[%s12 + $0x20] sm:$0xff]
        %v1786 = vld [vmem:[%s12 + $0x28] sm:$0xff]
        %v1787 = vld [vmem:[%s12 + $0x30] sm:$0xff]
        %v1788 = vld [vmem:[%s12 + $0x38] sm:$0xff]
        %v1789 = vld [vmem:[%s12 + $0x40] sm:$0xff]
        %v1790 = vld [vmem:[%s12 + $0x48] sm:$0xff]
        %v1791 = vld [vmem:[%s12 + $0x50] sm:$0xff]
        %v1792 = vld [vmem:[%s12 + $0x58] sm:$0xff]
        %v1793 = vld [vmem:[%s12 + $0x60] sm:$0xff]
        %v1794 = vld [vmem:[%s12 + $0x68] sm:$0xff]
        %v1795 = vld [vmem:[%s12 + $0x70] sm:$0xff]
        %v1796 = vld [vmem:[%s12 + $0x78] sm:$0xff]
        %v1797 = vld [vmem:[%s13] sm:$0x1]
        %v1799 = vlaneseq
        %v1800 = vshrl.u32 %v1799, 7
        %v1801 = vsub.s32 0, %v1800
        %v1802 = vrot.slane %v1797, %v1801
        %1804 = vmatprep.subr.mxu0 0.0
        %1805 = vmatpush1.msra.mxu0 %v1781
        %1806 = vmatprep.subr.mxu0 0.0
        %1807 = vmatpush1.msra.mxu0 %v1782
        %1808 = vmatprep.subr.mxu0 0.0
        %1809 = vmatpush1.msra.mxu0 %v1783
        %1810 = vmatprep.subr.mxu0 0.0
        %1811 = vmatpush1.msra.mxu0 %v1784
        %1812 = vmatprep.subr.mxu0 0.0
        %1813 = vmatpush1.msra.mxu0 %v1785
        %1814 = vmatprep.subr.mxu0 0.0
        %1815 = vmatpush1.msra.mxu0 %v1786
        %1816 = vmatprep.subr.mxu0 0.0
        %1817 = vmatpush1.msra.mxu0 %v1787
        %1818 = vmatprep.subr.mxu0 0.0
        %1819 = vmatpush1.msra.mxu0 %v1788
        %1820 = vmatprep.subr.mxu0 0.0
        %1821 = vmatpush1.msra.mxu0 %v1789
        %1822 = vmatprep.subr.mxu0 0.0
        %1823 = vmatpush1.msra.mxu0 %v1790
        %1824 = vmatprep.subr.mxu0 0.0
        %1825 = vmatpush1.msra.mxu0 %v1791
        %1826 = vmatprep.subr.mxu0 0.0
        %1827 = vmatpush1.msra.mxu0 %v1792
        %1828 = vmatprep.subr.mxu0 0.0
        %1829 = vmatpush1.msra.mxu0 %v1793
        %1830 = vmatprep.subr.mxu0 0.0
        %1831 = vmatpush1.msra.mxu0 %v1794
        %1832 = vmatprep.subr.mxu0 0.0
        %1833 = vmatpush1.msra.mxu0 %v1795
        %1834 = vmatprep.subr.mxu0 0.0
        %1835 = vmatpush1.msra.mxu0 %v1796
        %1836 = vmatprep.subr.mxu0 0.0
        %1837 = vmatpush1.msra.mxu0 0.0
        %1838 = vmatprep.subr.mxu0 0.0
        %1839 = vmatpush1.msra.mxu0 0.0
        %1840 = vmatprep.subr.mxu0 0.0
        %1841 = vmatpush1.msra.mxu0 0.0
        %1842 = vmatprep.subr.mxu0 0.0
        %1843 = vmatpush1.msra.mxu0 0.0
        %1844 = vmatprep.subr.mxu0 0.0
        %1845 = vmatpush1.msra.mxu0 0.0
        %1846 = vmatprep.subr.mxu0 0.0
        %1847 = vmatpush1.msra.mxu0 0.0
        %1848 = vmatprep.subr.mxu0 0.0
        %1849 = vmatpush1.msra.mxu0 0.0
        %1850 = vmatprep.subr.mxu0 0.0
        %1851 = vmatpush1.msra.mxu0 0.0
        %1852 = vmatprep.subr.mxu0 0.0
        %1853 = vmatpush1.msra.mxu0 0.0
        %1854 = vmatprep.subr.mxu0 0.0
        %1855 = vmatpush1.msra.mxu0 0.0
        %1856 = vmatprep.subr.mxu0 0.0
        %1857 = vmatpush1.msra.mxu0 0.0
        %1858 = vmatprep.subr.mxu0 0.0
        %1859 = vmatpush1.msra.mxu0 0.0
        %1860 = vmatprep.subr.mxu0 0.0
        %1861 = vmatpush1.msra.mxu0 0.0
        %1862 = vmatprep.subr.mxu0 0.0
        %1863 = vmatpush1.msra.mxu0 0.0
        %1864 = vmatprep.subr.mxu0 0.0
        %1865 = vmatpush1.msra.mxu0 0.0
        %1866 = vmatprep.subr.mxu0 0.0
        %1867 = vmatpush1.msra.mxu0 0.0
        %1868 = vmatprep.mubr.f32.mxu0 0.0
        %1869 = vmatmul.mubr.f32.gmra.mrb[0].mxu0 %v1780
        %v1870 = vpop.f32.mrb[0].mxu0
        %v1871 = vadd.f32 %v1802, %v1870
        %v1872 = vpop.f32.mrb[0].mxu0
        %1873 = vdwg.mxu0
        %v1874 = vadd.f32 %v1871, %v1687
        %v1875 = vld [vmem:[%s14] sm:$0x1]
        %v1876 = vld [vmem:[%s15] sm:$0x1]
        %v1877 = vsel %vm576, %v1874, 0.0
        %1878 = vadd.xlane.f32.xlu0 %v1877
        %v1879 = vpop.xlane.xlu0 %1878
        %v1880 = vmul.f32 %v1879, %v580
        %v1881 = vmul.f32 %v1874, %v1874
        %v1882 = vsel %vm576, %v1881, 0.0
        %1883 = vadd.xlane.f32.xlu0 %v1882
        %v1884 = vpop.xlane.xlu0 %1883
        %v1885 = vmul.f32 %v1884, %v580
        %v1886 = vmul.f32 %v1880, %v1880
        %v1887 = vsub.f32 %v1885, %v1886
        %v1888 = vadd.f32 %v1887, 1e-12
        %v1889 = vrsqrt.pop %v1888
        %v1890 = vsub.f32 %v1874, %v1880
        %v1891 = vmul.f32 %v1890, %v1889
        %v1893 = vlaneseq
        %v1894 = vshrl.u32 %v1893, 7
        %v1895 = vsub.s32 0, %v1894
        %v1896 = vrot.slane %v1875, %v1895
        %v1898 = vmul.f32 %v1891, %v1896
        %v1900 = vlaneseq
        %v1901 = vshrl.u32 %v1900, 7
        %v1902 = vsub.s32 0, %v1901
        %v1903 = vrot.slane %v1876, %v1902
        %v1905 = vadd.f32 %v1898, %v1903
        %s1906 = scalar_lea.vmem %s4, 32
        %v1907 = vld [vmem:[%s1906] sm:$0xff]
        %v1908 = vld [vmem:[%s1906 + $0x8] sm:$0xff]
        %v1909 = vld [vmem:[%s1906 + $0x10] sm:$0xff]
        %v1910 = vld [vmem:[%s1906 + $0x18] sm:$0xff]
        %s1911 = scalar_lea.vmem %s5, 1
        %v1912 = vld [vmem:[%s1911] sm:$0x1]
        %v1914 = vlaneseq
        %v1915 = vshrl.u32 %v1914, 7
        %v1916 = vsub.s32 0, %v1915
        %v1917 = vrot.slane %v1912, %v1916
        %v1920 = vsel %vm576, %v1905, 0
        %1922 = vmatprep.subr.mxu0 0.0
        %1923 = vmatpush1.msra.mxu0 %v1907
        %1924 = vmatprep.subr.mxu0 0.0
        %1925 = vmatpush1.msra.mxu0 %v1908
        %1926 = vmatprep.subr.mxu0 0.0
        %1927 = vmatpush1.msra.mxu0 %v1909
        %1928 = vmatprep.subr.mxu0 0.0
        %1929 = vmatpush1.msra.mxu0 %v1910
        %1930 = vmatprep.subr.mxu0 0.0
        %1931 = vmatpush1.msra.mxu0 0.0
        %1932 = vmatprep.subr.mxu0 0.0
        %1933 = vmatpush1.msra.mxu0 0.0
        %1934 = vmatprep.subr.mxu0 0.0
        %1935 = vmatpush1.msra.mxu0 0.0
        %1936 = vmatprep.subr.mxu0 0.0
        %1937 = vmatpush1.msra.mxu0 0.0
        %1938 = vmatprep.subr.mxu0 0.0
        %1939 = vmatpush1.msra.mxu0 0.0
        %1940 = vmatprep.subr.mxu0 0.0
        %1941 = vmatpush1.msra.mxu0 0.0
        %1942 = vmatprep.subr.mxu0 0.0
        %1943 = vmatpush1.msra.mxu0 0.0
        %1944 = vmatprep.subr.mxu0 0.0
        %1945 = vmatpush1.msra.mxu0 0.0
        %1946 = vmatprep.subr.mxu0 0.0
        %1947 = vmatpush1.msra.mxu0 0.0
        %1948 = vmatprep.subr.mxu0 0.0
        %1949 = vmatpush1.msra.mxu0 0.0
        %1950 = vmatprep.subr.mxu0 0.0
        %1951 = vmatpush1.msra.mxu0 0.0
        %1952 = vmatprep.subr.mxu0 0.0
        %1953 = vmatpush1.msra.mxu0 0.0
        %1954 = vmatprep.subr.mxu0 0.0
        %1955 = vmatpush1.msra.mxu0 0.0
        %1956 = vmatprep.subr.mxu0 0.0
        %1957 = vmatpush1.msra.mxu0 0.0
        %1958 = vmatprep.subr.mxu0 0.0
        %1959 = vmatpush1.msra.mxu0 0.0
        %1960 = vmatprep.subr.mxu0 0.0
        %1961 = vmatpush1.msra.mxu0 0.0
        %1962 = vmatprep.subr.mxu0 0.0
        %1963 = vmatpush1.msra.mxu0 0.0
        %1964 = vmatprep.subr.mxu0 0.0
        %1965 = vmatpush1.msra.mxu0 0.0
        %1966 = vmatprep.subr.mxu0 0.0
        %1967 = vmatpush1.msra.mxu0 0.0
        %1968 = vmatprep.subr.mxu0 0.0
        %1969 = vmatpush1.msra.mxu0 0.0
        %1970 = vmatprep.subr.mxu0 0.0
        %1971 = vmatpush1.msra.mxu0 0.0
        %1972 = vmatprep.subr.mxu0 0.0
        %1973 = vmatpush1.msra.mxu0 0.0
        %1974 = vmatprep.subr.mxu0 0.0
        %1975 = vmatpush1.msra.mxu0 0.0
        %1976 = vmatprep.subr.mxu0 0.0
        %1977 = vmatpush1.msra.mxu0 0.0
        %1978 = vmatprep.subr.mxu0 0.0
        %1979 = vmatpush1.msra.mxu0 0.0
        %1980 = vmatprep.subr.mxu0 0.0
        %1981 = vmatpush1.msra.mxu0 0.0
        %1982 = vmatprep.subr.mxu0 0.0
        %1983 = vmatpush1.msra.mxu0 0.0
        %1984 = vmatprep.subr.mxu0 0.0
        %1985 = vmatpush1.msra.mxu0 0.0
        %1986 = vmatprep.mubr.f32.mxu0 0.0
        %1987 = vmatmul.mubr.f32.gmra.mrb[0].mxu0 %v1920
        %v1988 = vpop.f32.mrb[0].mxu0
        %v1989 = vadd.f32 %v1917, %v1988
        %v1990 = vpop.f32.mrb[0].mxu0
        %1991 = vdwg.mxu0
        %s1992 = scalar_lea.vmem %s6, 32
        %v1993 = vld [vmem:[%s1992] sm:$0xff]
        %v1994 = vld [vmem:[%s1992 + $0x8] sm:$0xff]
        %v1995 = vld [vmem:[%s1992 + $0x10] sm:$0xff]
        %v1996 = vld [vmem:[%s1992 + $0x18] sm:$0xff]
        %1998 = vrot.lane.b32.xlu0 %v1989, 96
        %v1999 = vpop.permute.xlu0 %1998
        %v2000 = vsel %vm698, %v1989, 0
        %v2002 = vsel %vm698, %v1999, 0
        %2004 = vmatprep.subr.mxu0 0.0
        %2005 = vmatpush1.xpose.msra.mxu0 %v2002
        %2006 = vmatprep.subr.mxu0 0.0
        %2007 = vmatpush1.xpose.msra.mxu0 0.0
        %2008 = vmatprep.subr.mxu0 0.0
        %2009 = vmatpush1.xpose.msra.mxu0 0.0
        %2010 = vmatprep.subr.mxu0 0.0
        %2011 = vmatpush1.xpose.msra.mxu0 0.0
        %2012 = vmatprep.subr.mxu0 0.0
        %2013 = vmatpush1.xpose.msra.mxu0 0.0
        %2014 = vmatprep.subr.mxu0 0.0
        %2015 = vmatpush1.xpose.msra.mxu0 0.0
        %2016 = vmatprep.subr.mxu0 0.0
        %2017 = vmatpush1.xpose.msra.mxu0 0.0
        %2018 = vmatprep.subr.mxu0 0.0
        %2019 = vmatpush1.xpose.msra.mxu0 0.0
        %2020 = vmatprep.subr.mxu0 0.0
        %2021 = vmatpush1.xpose.msra.mxu0 0.0
        %2022 = vmatprep.subr.mxu0 0.0
        %2023 = vmatpush1.xpose.msra.mxu0 0.0
        %2024 = vmatprep.subr.mxu0 0.0
        %2025 = vmatpush1.xpose.msra.mxu0 0.0
        %2026 = vmatprep.subr.mxu0 0.0
        %2027 = vmatpush1.xpose.msra.mxu0 0.0
        %2028 = vmatprep.subr.mxu0 0.0
        %2029 = vmatpush1.xpose.msra.mxu0 0.0
        %2030 = vmatprep.subr.mxu0 0.0
        %2031 = vmatpush1.xpose.msra.mxu0 0.0
        %2032 = vmatprep.subr.mxu0 0.0
        %2033 = vmatpush1.xpose.msra.mxu0 0.0
        %2034 = vmatprep.subr.mxu0 0.0
        %2035 = vmatpush1.xpose.msra.mxu0 0.0
        %2036 = vmatprep.subr.mxu0 0.0
        %2037 = vmatpush1.xpose.msra.mxu0 0.0
        %2038 = vmatprep.subr.mxu0 0.0
        %2039 = vmatpush1.xpose.msra.mxu0 0.0
        %2040 = vmatprep.subr.mxu0 0.0
        %2041 = vmatpush1.xpose.msra.mxu0 0.0
        %2042 = vmatprep.subr.mxu0 0.0
        %2043 = vmatpush1.xpose.msra.mxu0 0.0
        %2044 = vmatprep.subr.mxu0 0.0
        %2045 = vmatpush1.xpose.msra.mxu0 0.0
        %2046 = vmatprep.subr.mxu0 0.0
        %2047 = vmatpush1.xpose.msra.mxu0 0.0
        %2048 = vmatprep.subr.mxu0 0.0
        %2049 = vmatpush1.xpose.msra.mxu0 0.0
        %2050 = vmatprep.subr.mxu0 0.0
        %2051 = vmatpush1.xpose.msra.mxu0 0.0
        %2052 = vmatprep.subr.mxu0 0.0
        %2053 = vmatpush1.xpose.msra.mxu0 0.0
        %2054 = vmatprep.subr.mxu0 0.0
        %2055 = vmatpush1.xpose.msra.mxu0 0.0
        %2056 = vmatprep.subr.mxu0 0.0
        %2057 = vmatpush1.xpose.msra.mxu0 0.0
        %2058 = vmatprep.subr.mxu0 0.0
        %2059 = vmatpush1.xpose.msra.mxu0 0.0
        %2060 = vmatprep.subr.mxu0 0.0
        %2061 = vmatpush1.xpose.msra.mxu0 0.0
        %2062 = vmatprep.subr.mxu0 0.0
        %2063 = vmatpush1.xpose.msra.mxu0 0.0
        %2064 = vmatprep.subr.mxu0 0.0
        %2065 = vmatpush1.xpose.msra.mxu0 0.0
        %2066 = vmatprep.subr.mxu0 0.0
        %2067 = vmatpush1.xpose.msra.mxu0 0.0
        %2068 = vmatprep.mubr.f32.mxu0 0.0
        %2069 = vmatmul.mubr.f32.gmra.mrb[0].mxu0 %v2000
        %v2070 = vpop.f32.mrb[0].mxu0
        %v2071 = vadd.f32 0.0, %v2070
        %v2072 = vpop.f32.mrb[0].mxu0
        %2073 = vdwg.mxu0
        %v2074 = vsel %vm698, %v2071, -inf
        %2075 = vmax.xlane.f32.xlu0 %v2074
        %v2076 = vpop.xlane.xlu0 %2075
        %v2077 = vsub.f32 %v2071, %v2076
        %v2078 = vmul.f32 %v2077, 1.442695
        %v2079 = vpow.pop %v2078
        %v2080 = vsel %vm698, %v2079, 0.0
        %2081 = vadd.xlane.f32.xlu0 %v2080
        %v2082 = vpop.xlane.xlu0 %2081
        %v2083 = vrcp.pop %v2082
        %2084 = vrot.lane.b32.xlu0 %v1989, 64
        %v2085 = vpop.permute.xlu0 %2084
        %v2088 = vsel %vm698, %v2079, 0
        %2090 = vmatprep.subr.mxu0 0.0
        %2091 = vmatpush1.msra.mxu0 %v2085
        %2092 = vmatprep.subr.mxu0 0.0
        %2093 = vmatpush1.msra.mxu0 0.0
        %2094 = vmatprep.subr.mxu0 0.0
        %2095 = vmatpush1.msra.mxu0 0.0
        %2096 = vmatprep.subr.mxu0 0.0
        %2097 = vmatpush1.msra.mxu0 0.0
        %2098 = vmatprep.subr.mxu0 0.0
        %2099 = vmatpush1.msra.mxu0 0.0
        %2100 = vmatprep.subr.mxu0 0.0
        %2101 = vmatpush1.msra.mxu0 0.0
        %2102 = vmatprep.subr.mxu0 0.0
        %2103 = vmatpush1.msra.mxu0 0.0
        %2104 = vmatprep.subr.mxu0 0.0
        %2105 = vmatpush1.msra.mxu0 0.0
        %2106 = vmatprep.subr.mxu0 0.0
        %2107 = vmatpush1.msra.mxu0 0.0
        %2108 = vmatprep.subr.mxu0 0.0
        %2109 = vmatpush1.msra.mxu0 0.0
        %2110 = vmatprep.subr.mxu0 0.0
        %2111 = vmatpush1.msra.mxu0 0.0
        %2112 = vmatprep.subr.mxu0 0.0
        %2113 = vmatpush1.msra.mxu0 0.0
        %2114 = vmatprep.subr.mxu0 0.0
        %2115 = vmatpush1.msra.mxu0 0.0
        %2116 = vmatprep.subr.mxu0 0.0
        %2117 = vmatpush1.msra.mxu0 0.0
        %2118 = vmatprep.subr.mxu0 0.0
        %2119 = vmatpush1.msra.mxu0 0.0
        %2120 = vmatprep.subr.mxu0 0.0
        %2121 = vmatpush1.msra.mxu0 0.0
        %2122 = vmatprep.subr.mxu0 0.0
        %2123 = vmatpush1.msra.mxu0 0.0
        %2124 = vmatprep.subr.mxu0 0.0
        %2125 = vmatpush1.msra.mxu0 0.0
        %2126 = vmatprep.subr.mxu0 0.0
        %2127 = vmatpush1.msra.mxu0 0.0
        %2128 = vmatprep.subr.mxu0 0.0
        %2129 = vmatpush1.msra.mxu0 0.0
        %2130 = vmatprep.subr.mxu0 0.0
        %2131 = vmatpush1.msra.mxu0 0.0
        %2132 = vmatprep.subr.mxu0 0.0
        %2133 = vmatpush1.msra.mxu0 0.0
        %2134 = vmatprep.subr.mxu0 0.0
        %2135 = vmatpush1.msra.mxu0 0.0
        %2136 = vmatprep.subr.mxu0 0.0
        %2137 = vmatpush1.msra.mxu0 0.0
        %2138 = vmatprep.subr.mxu0 0.0
        %2139 = vmatpush1.msra.mxu0 0.0
        %2140 = vmatprep.subr.mxu0 0.0
        %2141 = vmatpush1.msra.mxu0 0.0
        %2142 = vmatprep.subr.mxu0 0.0
        %2143 = vmatpush1.msra.mxu0 0.0
        %2144 = vmatprep.subr.mxu0 0.0
        %2145 = vmatpush1.msra.mxu0 0.0
        %2146 = vmatprep.subr.mxu0 0.0
        %2147 = vmatpush1.msra.mxu0 0.0
        %2148 = vmatprep.subr.mxu0 0.0
        %2149 = vmatpush1.msra.mxu0 0.0
        %2150 = vmatprep.subr.mxu0 0.0
        %2151 = vmatpush1.msra.mxu0 0.0
        %2152 = vmatprep.subr.mxu0 0.0
        %2153 = vmatpush1.msra.mxu0 0.0
        %2154 = vmatprep.mubr.f32.mxu0 0.0
        %2155 = vmatmul.mubr.f32.gmra.mrb[0].mxu0 %v2088
        %v2156 = vpop.f32.mrb[0].mxu0
        %v2157 = vadd.f32 0.0, %v2156
        %v2158 = vpop.f32.mrb[0].mxu0
        %2159 = vdwg.mxu0
        %v2160 = vmul.f32 %v2157, %v2083
        %2161 = vrot.lane.b32.xlu0 %v1989, 120
        %v2162 = vpop.permute.xlu0 %2161
        %2163 = vrot.lane.b32.xlu0 %v1989, 88
        %v2164 = vpop.permute.xlu0 %2163
        %v2165 = vsel %vm698, %v2162, 0
        %v2167 = vsel %vm698, %v2164, 0
        %2169 = vmatprep.subr.mxu0 0.0
        %2170 = vmatpush1.xpose.msra.mxu0 %v2167
        %2171 = vmatprep.subr.mxu0 0.0
        %2172 = vmatpush1.xpose.msra.mxu0 0.0
        %2173 = vmatprep.subr.mxu0 0.0
        %2174 = vmatpush1.xpose.msra.mxu0 0.0
        %2175 = vmatprep.subr.mxu0 0.0
        %2176 = vmatpush1.xpose.msra.mxu0 0.0
        %2177 = vmatprep.subr.mxu0 0.0
        %2178 = vmatpush1.xpose.msra.mxu0 0.0
        %2179 = vmatprep.subr.mxu0 0.0
        %2180 = vmatpush1.xpose.msra.mxu0 0.0
        %2181 = vmatprep.subr.mxu0 0.0
        %2182 = vmatpush1.xpose.msra.mxu0 0.0
        %2183 = vmatprep.subr.mxu0 0.0
        %2184 = vmatpush1.xpose.msra.mxu0 0.0
        %2185 = vmatprep.subr.mxu0 0.0
        %2186 = vmatpush1.xpose.msra.mxu0 0.0
        %2187 = vmatprep.subr.mxu0 0.0
        %2188 = vmatpush1.xpose.msra.mxu0 0.0
        %2189 = vmatprep.subr.mxu0 0.0
        %2190 = vmatpush1.xpose.msra.mxu0 0.0
        %2191 = vmatprep.subr.mxu0 0.0
        %2192 = vmatpush1.xpose.msra.mxu0 0.0
        %2193 = vmatprep.subr.mxu0 0.0
        %2194 = vmatpush1.xpose.msra.mxu0 0.0
        %2195 = vmatprep.subr.mxu0 0.0
        %2196 = vmatpush1.xpose.msra.mxu0 0.0
        %2197 = vmatprep.subr.mxu0 0.0
        %2198 = vmatpush1.xpose.msra.mxu0 0.0
        %2199 = vmatprep.subr.mxu0 0.0
        %2200 = vmatpush1.xpose.msra.mxu0 0.0
        %2201 = vmatprep.subr.mxu0 0.0
        %2202 = vmatpush1.xpose.msra.mxu0 0.0
        %2203 = vmatprep.subr.mxu0 0.0
        %2204 = vmatpush1.xpose.msra.mxu0 0.0
        %2205 = vmatprep.subr.mxu0 0.0
        %2206 = vmatpush1.xpose.msra.mxu0 0.0
        %2207 = vmatprep.subr.mxu0 0.0
        %2208 = vmatpush1.xpose.msra.mxu0 0.0
        %2209 = vmatprep.subr.mxu0 0.0
        %2210 = vmatpush1.xpose.msra.mxu0 0.0
        %2211 = vmatprep.subr.mxu0 0.0
        %2212 = vmatpush1.xpose.msra.mxu0 0.0
        %2213 = vmatprep.subr.mxu0 0.0
        %2214 = vmatpush1.xpose.msra.mxu0 0.0
        %2215 = vmatprep.subr.mxu0 0.0
        %2216 = vmatpush1.xpose.msra.mxu0 0.0
        %2217 = vmatprep.subr.mxu0 0.0
        %2218 = vmatpush1.xpose.msra.mxu0 0.0
        %2219 = vmatprep.subr.mxu0 0.0
        %2220 = vmatpush1.xpose.msra.mxu0 0.0
        %2221 = vmatprep.subr.mxu0 0.0
        %2222 = vmatpush1.xpose.msra.mxu0 0.0
        %2223 = vmatprep.subr.mxu0 0.0
        %2224 = vmatpush1.xpose.msra.mxu0 0.0
        %2225 = vmatprep.subr.mxu0 0.0
        %2226 = vmatpush1.xpose.msra.mxu0 0.0
        %2227 = vmatprep.subr.mxu0 0.0
        %2228 = vmatpush1.xpose.msra.mxu0 0.0
        %2229 = vmatprep.subr.mxu0 0.0
        %2230 = vmatpush1.xpose.msra.mxu0 0.0
        %2231 = vmatprep.subr.mxu0 0.0
        %2232 = vmatpush1.xpose.msra.mxu0 0.0
        %2233 = vmatprep.mubr.f32.mxu0 0.0
        %2234 = vmatmul.mubr.f32.gmra.mrb[0].mxu0 %v2165
        %v2235 = vpop.f32.mrb[0].mxu0
        %v2236 = vadd.f32 0.0, %v2235
        %v2237 = vpop.f32.mrb[0].mxu0
        %2238 = vdwg.mxu0
        %v2239 = vsel %vm698, %v2236, -inf
        %2240 = vmax.xlane.f32.xlu0 %v2239
        %v2241 = vpop.xlane.xlu0 %2240
        %v2242 = vsub.f32 %v2236, %v2241
        %v2243 = vmul.f32 %v2242, 1.442695
        %v2244 = vpow.pop %v2243
        %v2245 = vsel %vm698, %v2244, 0.0
        %2246 = vadd.xlane.f32.xlu0 %v2245
        %v2247 = vpop.xlane.xlu0 %2246
        %v2248 = vrcp.pop %v2247
        %2249 = vrot.lane.b32.xlu0 %v1989, 56
        %v2250 = vpop.permute.xlu0 %2249
        %v2253 = vsel %vm698, %v2244, 0
        %2255 = vmatprep.subr.mxu0 0.0
        %2256 = vmatpush1.msra.mxu0 %v2250
        %2257 = vmatprep.subr.mxu0 0.0
        %2258 = vmatpush1.msra.mxu0 0.0
        %2259 = vmatprep.subr.mxu0 0.0
        %2260 = vmatpush1.msra.mxu0 0.0
        %2261 = vmatprep.subr.mxu0 0.0
        %2262 = vmatpush1.msra.mxu0 0.0
        %2263 = vmatprep.subr.mxu0 0.0
        %2264 = vmatpush1.msra.mxu0 0.0
        %2265 = vmatprep.subr.mxu0 0.0
        %2266 = vmatpush1.msra.mxu0 0.0
        %2267 = vmatprep.subr.mxu0 0.0
        %2268 = vmatpush1.msra.mxu0 0.0
        %2269 = vmatprep.subr.mxu0 0.0
        %2270 = vmatpush1.msra.mxu0 0.0
        %2271 = vmatprep.subr.mxu0 0.0
        %2272 = vmatpush1.msra.mxu0 0.0
        %2273 = vmatprep.subr.mxu0 0.0
        %2274 = vmatpush1.msra.mxu0 0.0
        %2275 = vmatprep.subr.mxu0 0.0
        %2276 = vmatpush1.msra.mxu0 0.0
        %2277 = vmatprep.subr.mxu0 0.0
        %2278 = vmatpush1.msra.mxu0 0.0
        %2279 = vmatprep.subr.mxu0 0.0
        %2280 = vmatpush1.msra.mxu0 0.0
        %2281 = vmatprep.subr.mxu0 0.0
        %2282 = vmatpush1.msra.mxu0 0.0
        %2283 = vmatprep.subr.mxu0 0.0
        %2284 = vmatpush1.msra.mxu0 0.0
        %2285 = vmatprep.subr.mxu0 0.0
        %2286 = vmatpush1.msra.mxu0 0.0
        %2287 = vmatprep.subr.mxu0 0.0
        %2288 = vmatpush1.msra.mxu0 0.0
        %2289 = vmatprep.subr.mxu0 0.0
        %2290 = vmatpush1.msra.mxu0 0.0
        %2291 = vmatprep.subr.mxu0 0.0
        %2292 = vmatpush1.msra.mxu0 0.0
        %2293 = vmatprep.subr.mxu0 0.0
        %2294 = vmatpush1.msra.mxu0 0.0
        %2295 = vmatprep.subr.mxu0 0.0
        %2296 = vmatpush1.msra.mxu0 0.0
        %2297 = vmatprep.subr.mxu0 0.0
        %2298 = vmatpush1.msra.mxu0 0.0
        %2299 = vmatprep.subr.mxu0 0.0
        %2300 = vmatpush1.msra.mxu0 0.0
        %2301 = vmatprep.subr.mxu0 0.0
        %2302 = vmatpush1.msra.mxu0 0.0
        %2303 = vmatprep.subr.mxu0 0.0
        %2304 = vmatpush1.msra.mxu0 0.0
        %2305 = vmatprep.subr.mxu0 0.0
        %2306 = vmatpush1.msra.mxu0 0.0
        %2307 = vmatprep.subr.mxu0 0.0
        %2308 = vmatpush1.msra.mxu0 0.0
        %2309 = vmatprep.subr.mxu0 0.0
        %2310 = vmatpush1.msra.mxu0 0.0
        %2311 = vmatprep.subr.mxu0 0.0
        %2312 = vmatpush1.msra.mxu0 0.0
        %2313 = vmatprep.subr.mxu0 0.0
        %2314 = vmatpush1.msra.mxu0 0.0
        %2315 = vmatprep.subr.mxu0 0.0
        %2316 = vmatpush1.msra.mxu0 0.0
        %2317 = vmatprep.subr.mxu0 0.0
        %2318 = vmatpush1.msra.mxu0 0.0
        %2319 = vmatprep.mubr.f32.mxu0 0.0
        %2320 = vmatmul.mubr.f32.gmra.mrb[0].mxu0 %v2253
        %v2321 = vpop.f32.mrb[0].mxu0
        %v2322 = vadd.f32 0.0, %v2321
        %v2323 = vpop.f32.mrb[0].mxu0
        %2324 = vdwg.mxu0
        %v2325 = vmul.f32 %v2322, %v2248
        %2326 = vrot.lane.b32.xlu0 %v1989, 112
        %v2327 = vpop.permute.xlu0 %2326
        %2328 = vrot.lane.b32.xlu0 %v1989, 80
        %v2329 = vpop.permute.xlu0 %2328
        %v2330 = vsel %vm698, %v2327, 0
        %v2332 = vsel %vm698, %v2329, 0
        %2334 = vmatprep.subr.mxu0 0.0
        %2335 = vmatpush1.xpose.msra.mxu0 %v2332
        %2336 = vmatprep.subr.mxu0 0.0
        %2337 = vmatpush1.xpose.msra.mxu0 0.0
        %2338 = vmatprep.subr.mxu0 0.0
        %2339 = vmatpush1.xpose.msra.mxu0 0.0
        %2340 = vmatprep.subr.mxu0 0.0
        %2341 = vmatpush1.xpose.msra.mxu0 0.0
        %2342 = vmatprep.subr.mxu0 0.0
        %2343 = vmatpush1.xpose.msra.mxu0 0.0
        %2344 = vmatprep.subr.mxu0 0.0
        %2345 = vmatpush1.xpose.msra.mxu0 0.0
        %2346 = vmatprep.subr.mxu0 0.0
        %2347 = vmatpush1.xpose.msra.mxu0 0.0
        %2348 = vmatprep.subr.mxu0 0.0
        %2349 = vmatpush1.xpose.msra.mxu0 0.0
        %2350 = vmatprep.subr.mxu0 0.0
        %2351 = vmatpush1.xpose.msra.mxu0 0.0
        %2352 = vmatprep.subr.mxu0 0.0
        %2353 = vmatpush1.xpose.msra.mxu0 0.0
        %2354 = vmatprep.subr.mxu0 0.0
        %2355 = vmatpush1.xpose.msra.mxu0 0.0
        %2356 = vmatprep.subr.mxu0 0.0
        %2357 = vmatpush1.xpose.msra.mxu0 0.0
        %2358 = vmatprep.subr.mxu0 0.0
        %2359 = vmatpush1.xpose.msra.mxu0 0.0
        %2360 = vmatprep.subr.mxu0 0.0
        %2361 = vmatpush1.xpose.msra.mxu0 0.0
        %2362 = vmatprep.subr.mxu0 0.0
        %2363 = vmatpush1.xpose.msra.mxu0 0.0
        %2364 = vmatprep.subr.mxu0 0.0
        %2365 = vmatpush1.xpose.msra.mxu0 0.0
        %2366 = vmatprep.subr.mxu0 0.0
        %2367 = vmatpush1.xpose.msra.mxu0 0.0
        %2368 = vmatprep.subr.mxu0 0.0
        %2369 = vmatpush1.xpose.msra.mxu0 0.0
        %2370 = vmatprep.subr.mxu0 0.0
        %2371 = vmatpush1.xpose.msra.mxu0 0.0
        %2372 = vmatprep.subr.mxu0 0.0
        %2373 = vmatpush1.xpose.msra.mxu0 0.0
        %2374 = vmatprep.subr.mxu0 0.0
        %2375 = vmatpush1.xpose.msra.mxu0 0.0
        %2376 = vmatprep.subr.mxu0 0.0
        %2377 = vmatpush1.xpose.msra.mxu0 0.0
        %2378 = vmatprep.subr.mxu0 0.0
        %2379 = vmatpush1.xpose.msra.mxu0 0.0
        %2380 = vmatprep.subr.mxu0 0.0
        %2381 = vmatpush1.xpose.msra.mxu0 0.0
        %2382 = vmatprep.subr.mxu0 0.0
        %2383 = vmatpush1.xpose.msra.mxu0 0.0
        %2384 = vmatprep.subr.mxu0 0.0
        %2385 = vmatpush1.xpose.msra.mxu0 0.0
        %2386 = vmatprep.subr.mxu0 0.0
        %2387 = vmatpush1.xpose.msra.mxu0 0.0
        %2388 = vmatprep.subr.mxu0 0.0
        %2389 = vmatpush1.xpose.msra.mxu0 0.0
        %2390 = vmatprep.subr.mxu0 0.0
        %2391 = vmatpush1.xpose.msra.mxu0 0.0
        %2392 = vmatprep.subr.mxu0 0.0
        %2393 = vmatpush1.xpose.msra.mxu0 0.0
        %2394 = vmatprep.subr.mxu0 0.0
        %2395 = vmatpush1.xpose.msra.mxu0 0.0
        %2396 = vmatprep.subr.mxu0 0.0
        %2397 = vmatpush1.xpose.msra.mxu0 0.0
        %2398 = vmatprep.mubr.f32.mxu0 0.0
        %2399 = vmatmul.mubr.f32.gmra.mrb[0].mxu0 %v2330
        %v2400 = vpop.f32.mrb[0].mxu0
        %v2401 = vadd.f32 0.0, %v2400
        %v2402 = vpop.f32.mrb[0].mxu0
        %2403 = vdwg.mxu0
        %v2404 = vsel %vm698, %v2401, -inf
        %2405 = vmax.xlane.f32.xlu0 %v2404
        %v2406 = vpop.xlane.xlu0 %2405
        %v2407 = vsub.f32 %v2401, %v2406
        %v2408 = vmul.f32 %v2407, 1.442695
        %v2409 = vpow.pop %v2408
        %v2410 = vsel %vm698, %v2409, 0.0
        %2411 = vadd.xlane.f32.xlu0 %v2410
        %v2412 = vpop.xlane.xlu0 %2411
        %v2413 = vrcp.pop %v2412
        %2414 = vrot.lane.b32.xlu0 %v1989, 48
        %v2415 = vpop.permute.xlu0 %2414
        %v2418 = vsel %vm698, %v2409, 0
        %2420 = vmatprep.subr.mxu0 0.0
        %2421 = vmatpush1.msra.mxu0 %v2415
        %2422 = vmatprep.subr.mxu0 0.0
        %2423 = vmatpush1.msra.mxu0 0.0
        %2424 = vmatprep.subr.mxu0 0.0
        %2425 = vmatpush1.msra.mxu0 0.0
        %2426 = vmatprep.subr.mxu0 0.0
        %2427 = vmatpush1.msra.mxu0 0.0
        %2428 = vmatprep.subr.mxu0 0.0
        %2429 = vmatpush1.msra.mxu0 0.0
        %2430 = vmatprep.subr.mxu0 0.0
        %2431 = vmatpush1.msra.mxu0 0.0
        %2432 = vmatprep.subr.mxu0 0.0
        %2433 = vmatpush1.msra.mxu0 0.0
        %2434 = vmatprep.subr.mxu0 0.0
        %2435 = vmatpush1.msra.mxu0 0.0
        %2436 = vmatprep.subr.mxu0 0.0
        %2437 = vmatpush1.msra.mxu0 0.0
        %2438 = vmatprep.subr.mxu0 0.0
        %2439 = vmatpush1.msra.mxu0 0.0
        %2440 = vmatprep.subr.mxu0 0.0
        %2441 = vmatpush1.msra.mxu0 0.0
        %2442 = vmatprep.subr.mxu0 0.0
        %2443 = vmatpush1.msra.mxu0 0.0
        %2444 = vmatprep.subr.mxu0 0.0
        %2445 = vmatpush1.msra.mxu0 0.0
        %2446 = vmatprep.subr.mxu0 0.0
        %2447 = vmatpush1.msra.mxu0 0.0
        %2448 = vmatprep.subr.mxu0 0.0
        %2449 = vmatpush1.msra.mxu0 0.0
        %2450 = vmatprep.subr.mxu0 0.0
        %2451 = vmatpush1.msra.mxu0 0.0
        %2452 = vmatprep.subr.mxu0 0.0
        %2453 = vmatpush1.msra.mxu0 0.0
        %2454 = vmatprep.subr.mxu0 0.0
        %2455 = vmatpush1.msra.mxu0 0.0
        %2456 = vmatprep.subr.mxu0 0.0
        %2457 = vmatpush1.msra.mxu0 0.0
        %2458 = vmatprep.subr.mxu0 0.0
        %2459 = vmatpush1.msra.mxu0 0.0
        %2460 = vmatprep.subr.mxu0 0.0
        %2461 = vmatpush1.msra.mxu0 0.0
        %2462 = vmatprep.subr.mxu0 0.0
        %2463 = vmatpush1.msra.mxu0 0.0
        %2464 = vmatprep.subr.mxu0 0.0
        %2465 = vmatpush1.msra.mxu0 0.0
        %2466 = vmatprep.subr.mxu0 0.0
        %2467 = vmatpush1.msra.mxu0 0.0
        %2468 = vmatprep.subr.mxu0 0.0
        %2469 = vmatpush1.msra.mxu0 0.0
        %2470 = vmatprep.subr.mxu0 0.0
        %2471 = vmatpush1.msra.mxu0 0.0
        %2472 = vmatprep.subr.mxu0 0.0
        %2473 = vmatpush1.msra.mxu0 0.0
        %2474 = vmatprep.subr.mxu0 0.0
        %2475 = vmatpush1.msra.mxu0 0.0
        %2476 = vmatprep.subr.mxu0 0.0
        %2477 = vmatpush1.msra.mxu0 0.0
        %2478 = vmatprep.subr.mxu0 0.0
        %2479 = vmatpush1.msra.mxu0 0.0
        %2480 = vmatprep.subr.mxu0 0.0
        %2481 = vmatpush1.msra.mxu0 0.0
        %2482 = vmatprep.subr.mxu0 0.0
        %2483 = vmatpush1.msra.mxu0 0.0
        %2484 = vmatprep.mubr.f32.mxu0 0.0
        %2485 = vmatmul.mubr.f32.gmra.mrb[0].mxu0 %v2418
        %v2486 = vpop.f32.mrb[0].mxu0
        %v2487 = vadd.f32 0.0, %v2486
        %v2488 = vpop.f32.mrb[0].mxu0
        %2489 = vdwg.mxu0
        %v2490 = vmul.f32 %v2487, %v2413
        %2491 = vrot.lane.b32.xlu0 %v1989, 104
        %v2492 = vpop.permute.xlu0 %2491
        %2493 = vrot.lane.b32.xlu0 %v1989, 72
        %v2494 = vpop.permute.xlu0 %2493
        %v2495 = vsel %vm698, %v2492, 0
        %v2497 = vsel %vm698, %v2494, 0
        %2499 = vmatprep.subr.mxu0 0.0
        %2500 = vmatpush1.xpose.msra.mxu0 %v2497
        %2501 = vmatprep.subr.mxu0 0.0
        %2502 = vmatpush1.xpose.msra.mxu0 0.0
        %2503 = vmatprep.subr.mxu0 0.0
        %2504 = vmatpush1.xpose.msra.mxu0 0.0
        %2505 = vmatprep.subr.mxu0 0.0
        %2506 = vmatpush1.xpose.msra.mxu0 0.0
        %2507 = vmatprep.subr.mxu0 0.0
        %2508 = vmatpush1.xpose.msra.mxu0 0.0
        %2509 = vmatprep.subr.mxu0 0.0
        %2510 = vmatpush1.xpose.msra.mxu0 0.0
        %2511 = vmatprep.subr.mxu0 0.0
        %2512 = vmatpush1.xpose.msra.mxu0 0.0
        %2513 = vmatprep.subr.mxu0 0.0
        %2514 = vmatpush1.xpose.msra.mxu0 0.0
        %2515 = vmatprep.subr.mxu0 0.0
        %2516 = vmatpush1.xpose.msra.mxu0 0.0
        %2517 = vmatprep.subr.mxu0 0.0
        %2518 = vmatpush1.xpose.msra.mxu0 0.0
        %2519 = vmatprep.subr.mxu0 0.0
        %2520 = vmatpush1.xpose.msra.mxu0 0.0
        %2521 = vmatprep.subr.mxu0 0.0
        %2522 = vmatpush1.xpose.msra.mxu0 0.0
        %2523 = vmatprep.subr.mxu0 0.0
        %2524 = vmatpush1.xpose.msra.mxu0 0.0
        %2525 = vmatprep.subr.mxu0 0.0
        %2526 = vmatpush1.xpose.msra.mxu0 0.0
        %2527 = vmatprep.subr.mxu0 0.0
        %2528 = vmatpush1.xpose.msra.mxu0 0.0
        %2529 = vmatprep.subr.mxu0 0.0
        %2530 = vmatpush1.xpose.msra.mxu0 0.0
        %2531 = vmatprep.subr.mxu0 0.0
        %2532 = vmatpush1.xpose.msra.mxu0 0.0
        %2533 = vmatprep.subr.mxu0 0.0
        %2534 = vmatpush1.xpose.msra.mxu0 0.0
        %2535 = vmatprep.subr.mxu0 0.0
        %2536 = vmatpush1.xpose.msra.mxu0 0.0
        %2537 = vmatprep.subr.mxu0 0.0
        %2538 = vmatpush1.xpose.msra.mxu0 0.0
        %2539 = vmatprep.subr.mxu0 0.0
        %2540 = vmatpush1.xpose.msra.mxu0 0.0
        %2541 = vmatprep.subr.mxu0 0.0
        %2542 = vmatpush1.xpose.msra.mxu0 0.0
        %2543 = vmatprep.subr.mxu0 0.0
        %2544 = vmatpush1.xpose.msra.mxu0 0.0
        %2545 = vmatprep.subr.mxu0 0.0
        %2546 = vmatpush1.xpose.msra.mxu0 0.0
        %2547 = vmatprep.subr.mxu0 0.0
        %2548 = vmatpush1.xpose.msra.mxu0 0.0
        %2549 = vmatprep.subr.mxu0 0.0
        %2550 = vmatpush1.xpose.msra.mxu0 0.0
        %2551 = vmatprep.subr.mxu0 0.0
        %2552 = vmatpush1.xpose.msra.mxu0 0.0
        %2553 = vmatprep.subr.mxu0 0.0
        %2554 = vmatpush1.xpose.msra.mxu0 0.0
        %2555 = vmatprep.subr.mxu0 0.0
        %2556 = vmatpush1.xpose.msra.mxu0 0.0
        %2557 = vmatprep.subr.mxu0 0.0
        %2558 = vmatpush1.xpose.msra.mxu0 0.0
        %2559 = vmatprep.subr.mxu0 0.0
        %2560 = vmatpush1.xpose.msra.mxu0 0.0
        %2561 = vmatprep.subr.mxu0 0.0
        %2562 = vmatpush1.xpose.msra.mxu0 0.0
        %2563 = vmatprep.mubr.f32.mxu0 0.0
        %2564 = vmatmul.mubr.f32.gmra.mrb[0].mxu0 %v2495
        %v2565 = vpop.f32.mrb[0].mxu0
        %v2566 = vadd.f32 0.0, %v2565
        %v2567 = vpop.f32.mrb[0].mxu0
        %2568 = vdwg.mxu0
        %v2569 = vsel %vm698, %v2566, -inf
        %2570 = vmax.xlane.f32.xlu0 %v2569
        %v2571 = vpop.xlane.xlu0 %2570
        %v2572 = vsub.f32 %v2566, %v2571
        %v2573 = vmul.f32 %v2572, 1.442695
        %v2574 = vpow.pop %v2573
        %v2575 = vsel %vm698, %v2574, 0.0
        %2576 = vadd.xlane.f32.xlu0 %v2575
        %v2577 = vpop.xlane.xlu0 %2576
        %v2578 = vrcp.pop %v2577
        %2579 = vrot.lane.b32.xlu0 %v1989, 40
        %v2580 = vpop.permute.xlu0 %2579
        %v2583 = vsel %vm698, %v2574, 0
        %2585 = vmatprep.subr.mxu0 0.0
        %2586 = vmatpush1.msra.mxu0 %v2580
        %2587 = vmatprep.subr.mxu0 0.0
        %2588 = vmatpush1.msra.mxu0 0.0
        %2589 = vmatprep.subr.mxu0 0.0
        %2590 = vmatpush1.msra.mxu0 0.0
        %2591 = vmatprep.subr.mxu0 0.0
        %2592 = vmatpush1.msra.mxu0 0.0
        %2593 = vmatprep.subr.mxu0 0.0
        %2594 = vmatpush1.msra.mxu0 0.0
        %2595 = vmatprep.subr.mxu0 0.0
        %2596 = vmatpush1.msra.mxu0 0.0
        %2597 = vmatprep.subr.mxu0 0.0
        %2598 = vmatpush1.msra.mxu0 0.0
        %2599 = vmatprep.subr.mxu0 0.0
        %2600 = vmatpush1.msra.mxu0 0.0
        %2601 = vmatprep.subr.mxu0 0.0
        %2602 = vmatpush1.msra.mxu0 0.0
        %2603 = vmatprep.subr.mxu0 0.0
        %2604 = vmatpush1.msra.mxu0 0.0
        %2605 = vmatprep.subr.mxu0 0.0
        %2606 = vmatpush1.msra.mxu0 0.0
        %2607 = vmatprep.subr.mxu0 0.0
        %2608 = vmatpush1.msra.mxu0 0.0
        %2609 = vmatprep.subr.mxu0 0.0
        %2610 = vmatpush1.msra.mxu0 0.0
        %2611 = vmatprep.subr.mxu0 0.0
        %2612 = vmatpush1.msra.mxu0 0.0
        %2613 = vmatprep.subr.mxu0 0.0
        %2614 = vmatpush1.msra.mxu0 0.0
        %2615 = vmatprep.subr.mxu0 0.0
        %2616 = vmatpush1.msra.mxu0 0.0
        %2617 = vmatprep.subr.mxu0 0.0
        %2618 = vmatpush1.msra.mxu0 0.0
        %2619 = vmatprep.subr.mxu0 0.0
        %2620 = vmatpush1.msra.mxu0 0.0
        %2621 = vmatprep.subr.mxu0 0.0
        %2622 = vmatpush1.msra.mxu0 0.0
        %2623 = vmatprep.subr.mxu0 0.0
        %2624 = vmatpush1.msra.mxu0 0.0
        %2625 = vmatprep.subr.mxu0 0.0
        %2626 = vmatpush1.msra.mxu0 0.0
        %2627 = vmatprep.subr.mxu0 0.0
        %2628 = vmatpush1.msra.mxu0 0.0
        %2629 = vmatprep.subr.mxu0 0.0
        %2630 = vmatpush1.msra.mxu0 0.0
        %2631 = vmatprep.subr.mxu0 0.0
        %2632 = vmatpush1.msra.mxu0 0.0
        %2633 = vmatprep.subr.mxu0 0.0
        %2634 = vmatpush1.msra.mxu0 0.0
        %2635 = vmatprep.subr.mxu0 0.0
        %2636 = vmatpush1.msra.mxu0 0.0
        %2637 = vmatprep.subr.mxu0 0.0
        %2638 = vmatpush1.msra.mxu0 0.0
        %2639 = vmatprep.subr.mxu0 0.0
        %2640 = vmatpush1.msra.mxu0 0.0
        %2641 = vmatprep.subr.mxu0 0.0
        %2642 = vmatpush1.msra.mxu0 0.0
        %2643 = vmatprep.subr.mxu0 0.0
        %2644 = vmatpush1.msra.mxu0 0.0
        %2645 = vmatprep.subr.mxu0 0.0
        %2646 = vmatpush1.msra.mxu0 0.0
        %2647 = vmatprep.subr.mxu0 0.0
        %2648 = vmatpush1.msra.mxu0 0.0
        %2649 = vmatprep.mubr.f32.mxu0 0.0
        %2650 = vmatmul.mubr.f32.gmra.mrb[0].mxu0 %v2583
        %v2651 = vpop.f32.mrb[0].mxu0
        %v2652 = vadd.f32 0.0, %v2651
        %v2653 = vpop.f32.mrb[0].mxu0
        %2654 = vdwg.mxu0
        %v2655 = vmul.f32 %v2652, %v2578
        %v2657 = vsel %vm698, %v2325, 0
        %2659 = vmatprep.subr.mxu0 0.0
        %2660 = vmatpush1.msra.mxu0 %v1994
        %2661 = vmatprep.subr.mxu0 0.0
        %2662 = vmatpush1.msra.mxu0 0.0
        %2663 = vmatprep.subr.mxu0 0.0
        %2664 = vmatpush1.msra.mxu0 0.0
        %2665 = vmatprep.subr.mxu0 0.0
        %2666 = vmatpush1.msra.mxu0 0.0
        %2667 = vmatprep.subr.mxu0 0.0
        %2668 = vmatpush1.msra.mxu0 0.0
        %2669 = vmatprep.subr.mxu0 0.0
        %2670 = vmatpush1.msra.mxu0 0.0
        %2671 = vmatprep.subr.mxu0 0.0
        %2672 = vmatpush1.msra.mxu0 0.0
        %2673 = vmatprep.subr.mxu0 0.0
        %2674 = vmatpush1.msra.mxu0 0.0
        %2675 = vmatprep.subr.mxu0 0.0
        %2676 = vmatpush1.msra.mxu0 0.0
        %2677 = vmatprep.subr.mxu0 0.0
        %2678 = vmatpush1.msra.mxu0 0.0
        %2679 = vmatprep.subr.mxu0 0.0
        %2680 = vmatpush1.msra.mxu0 0.0
        %2681 = vmatprep.subr.mxu0 0.0
        %2682 = vmatpush1.msra.mxu0 0.0
        %2683 = vmatprep.subr.mxu0 0.0
        %2684 = vmatpush1.msra.mxu0 0.0
        %2685 = vmatprep.subr.mxu0 0.0
        %2686 = vmatpush1.msra.mxu0 0.0
        %2687 = vmatprep.subr.mxu0 0.0
        %2688 = vmatpush1.msra.mxu0 0.0
        %2689 = vmatprep.subr.mxu0 0.0
        %2690 = vmatpush1.msra.mxu0 0.0
        %2691 = vmatprep.subr.mxu0 0.0
        %2692 = vmatpush1.msra.mxu0 0.0
        %2693 = vmatprep.subr.mxu0 0.0
        %2694 = vmatpush1.msra.mxu0 0.0
        %2695 = vmatprep.subr.mxu0 0.0
        %2696 = vmatpush1.msra.mxu0 0.0
        %2697 = vmatprep.subr.mxu0 0.0
        %2698 = vmatpush1.msra.mxu0 0.0
        %2699 = vmatprep.subr.mxu0 0.0
        %2700 = vmatpush1.msra.mxu0 0.0
        %2701 = vmatprep.subr.mxu0 0.0
        %2702 = vmatpush1.msra.mxu0 0.0
        %2703 = vmatprep.subr.mxu0 0.0
        %2704 = vmatpush1.msra.mxu0 0.0
        %2705 = vmatprep.subr.mxu0 0.0
        %2706 = vmatpush1.msra.mxu0 0.0
        %2707 = vmatprep.subr.mxu0 0.0
        %2708 = vmatpush1.msra.mxu0 0.0
        %2709 = vmatprep.subr.mxu0 0.0
        %2710 = vmatpush1.msra.mxu0 0.0
        %2711 = vmatprep.subr.mxu0 0.0
        %2712 = vmatpush1.msra.mxu0 0.0
        %2713 = vmatprep.subr.mxu0 0.0
        %2714 = vmatpush1.msra.mxu0 0.0
        %2715 = vmatprep.subr.mxu0 0.0
        %2716 = vmatpush1.msra.mxu0 0.0
        %2717 = vmatprep.subr.mxu0 0.0
        %2718 = vmatpush1.msra.mxu0 0.0
        %2719 = vmatprep.subr.mxu0 0.0
        %2720 = vmatpush1.msra.mxu0 0.0
        %2721 = vmatprep.subr.mxu0 0.0
        %2722 = vmatpush1.msra.mxu0 0.0
        %2723 = vmatprep.mubr.f32.mxu0 0.0
        %2724 = vmatmul.mubr.f32.gmra.mrb[0].mxu0 %v2657
        %v2725 = vpop.f32.mrb[0].mxu0
        %v2726 = vadd.f32 0.0, %v2725
        %v2727 = vpop.f32.mrb[0].mxu0
        %2728 = vdwg.mxu0
        %v2730 = vsel %vm698, %v2655, 0
        %2732 = vmatprep.subr.mxu0 0.0
        %2733 = vmatpush1.msra.mxu0 %v1996
        %2734 = vmatprep.subr.mxu0 0.0
        %2735 = vmatpush1.msra.mxu0 0.0
        %2736 = vmatprep.subr.mxu0 0.0
        %2737 = vmatpush1.msra.mxu0 0.0
        %2738 = vmatprep.subr.mxu0 0.0
        %2739 = vmatpush1.msra.mxu0 0.0
        %2740 = vmatprep.subr.mxu0 0.0
        %2741 = vmatpush1.msra.mxu0 0.0
        %2742 = vmatprep.subr.mxu0 0.0
        %2743 = vmatpush1.msra.mxu0 0.0
        %2744 = vmatprep.subr.mxu0 0.0
        %2745 = vmatpush1.msra.mxu0 0.0
        %2746 = vmatprep.subr.mxu0 0.0
        %2747 = vmatpush1.msra.mxu0 0.0
        %2748 = vmatprep.subr.mxu0 0.0
        %2749 = vmatpush1.msra.mxu0 0.0
        %2750 = vmatprep.subr.mxu0 0.0
        %2751 = vmatpush1.msra.mxu0 0.0
        %2752 = vmatprep.subr.mxu0 0.0
        %2753 = vmatpush1.msra.mxu0 0.0
        %2754 = vmatprep.subr.mxu0 0.0
        %2755 = vmatpush1.msra.mxu0 0.0
        %2756 = vmatprep.subr.mxu0 0.0
        %2757 = vmatpush1.msra.mxu0 0.0
        %2758 = vmatprep.subr.mxu0 0.0
        %2759 = vmatpush1.msra.mxu0 0.0
        %2760 = vmatprep.subr.mxu0 0.0
        %2761 = vmatpush1.msra.mxu0 0.0
        %2762 = vmatprep.subr.mxu0 0.0
        %2763 = vmatpush1.msra.mxu0 0.0
        %2764 = vmatprep.subr.mxu0 0.0
        %2765 = vmatpush1.msra.mxu0 0.0
        %2766 = vmatprep.subr.mxu0 0.0
        %2767 = vmatpush1.msra.mxu0 0.0
        %2768 = vmatprep.subr.mxu0 0.0
        %2769 = vmatpush1.msra.mxu0 0.0
        %2770 = vmatprep.subr.mxu0 0.0
        %2771 = vmatpush1.msra.mxu0 0.0
        %2772 = vmatprep.subr.mxu0 0.0
        %2773 = vmatpush1.msra.mxu0 0.0
        %2774 = vmatprep.subr.mxu0 0.0
        %2775 = vmatpush1.msra.mxu0 0.0
        %2776 = vmatprep.subr.mxu0 0.0
        %2777 = vmatpush1.msra.mxu0 0.0
        %2778 = vmatprep.subr.mxu0 0.0
        %2779 = vmatpush1.msra.mxu0 0.0
        %2780 = vmatprep.subr.mxu0 0.0
        %2781 = vmatpush1.msra.mxu0 0.0
        %2782 = vmatprep.subr.mxu0 0.0
        %2783 = vmatpush1.msra.mxu0 0.0
        %2784 = vmatprep.subr.mxu0 0.0
        %2785 = vmatpush1.msra.mxu0 0.0
        %2786 = vmatprep.subr.mxu0 0.0
        %2787 = vmatpush1.msra.mxu0 0.0
        %2788 = vmatprep.subr.mxu0 0.0
        %2789 = vmatpush1.msra.mxu0 0.0
        %2790 = vmatprep.subr.mxu0 0.0
        %2791 = vmatpush1.msra.mxu0 0.0
        %2792 = vmatprep.subr.mxu0 0.0
        %2793 = vmatpush1.msra.mxu0 0.0
        %2794 = vmatprep.subr.mxu0 0.0
        %2795 = vmatpush1.msra.mxu0 0.0
        %2796 = vmatprep.mubr.f32.mxu0 0.0
        %2797 = vmatmul.mubr.f32.gmra.mrb[0].mxu0 %v2730
        %v2798 = vpop.f32.mrb[0].mxu0
        %v2799 = vadd.f32 0.0, %v2798
        %v2800 = vpop.f32.mrb[0].mxu0
        %2801 = vdwg.mxu0
        %v2803 = vsel %vm698, %v2160, 0
        %2805 = vmatprep.subr.mxu0 0.0
        %2806 = vmatpush1.msra.mxu0 %v1993
        %2807 = vmatprep.subr.mxu0 0.0
        %2808 = vmatpush1.msra.mxu0 0.0
        %2809 = vmatprep.subr.mxu0 0.0
        %2810 = vmatpush1.msra.mxu0 0.0
        %2811 = vmatprep.subr.mxu0 0.0
        %2812 = vmatpush1.msra.mxu0 0.0
        %2813 = vmatprep.subr.mxu0 0.0
        %2814 = vmatpush1.msra.mxu0 0.0
        %2815 = vmatprep.subr.mxu0 0.0
        %2816 = vmatpush1.msra.mxu0 0.0
        %2817 = vmatprep.subr.mxu0 0.0
        %2818 = vmatpush1.msra.mxu0 0.0
        %2819 = vmatprep.subr.mxu0 0.0
        %2820 = vmatpush1.msra.mxu0 0.0
        %2821 = vmatprep.subr.mxu0 0.0
        %2822 = vmatpush1.msra.mxu0 0.0
        %2823 = vmatprep.subr.mxu0 0.0
        %2824 = vmatpush1.msra.mxu0 0.0
        %2825 = vmatprep.subr.mxu0 0.0
        %2826 = vmatpush1.msra.mxu0 0.0
        %2827 = vmatprep.subr.mxu0 0.0
        %2828 = vmatpush1.msra.mxu0 0.0
        %2829 = vmatprep.subr.mxu0 0.0
        %2830 = vmatpush1.msra.mxu0 0.0
        %2831 = vmatprep.subr.mxu0 0.0
        %2832 = vmatpush1.msra.mxu0 0.0
        %2833 = vmatprep.subr.mxu0 0.0
        %2834 = vmatpush1.msra.mxu0 0.0
        %2835 = vmatprep.subr.mxu0 0.0
        %2836 = vmatpush1.msra.mxu0 0.0
        %2837 = vmatprep.subr.mxu0 0.0
        %2838 = vmatpush1.msra.mxu0 0.0
        %2839 = vmatprep.subr.mxu0 0.0
        %2840 = vmatpush1.msra.mxu0 0.0
        %2841 = vmatprep.subr.mxu0 0.0
        %2842 = vmatpush1.msra.mxu0 0.0
        %2843 = vmatprep.subr.mxu0 0.0
        %2844 = vmatpush1.msra.mxu0 0.0
        %2845 = vmatprep.subr.mxu0 0.0
        %2846 = vmatpush1.msra.mxu0 0.0
        %2847 = vmatprep.subr.mxu0 0.0
        %2848 = vmatpush1.msra.mxu0 0.0
        %2849 = vmatprep.subr.mxu0 0.0
        %2850 = vmatpush1.msra.mxu0 0.0
        %2851 = vmatprep.subr.mxu0 0.0
        %2852 = vmatpush1.msra.mxu0 0.0
        %2853 = vmatprep.subr.mxu0 0.0
        %2854 = vmatpush1.msra.mxu0 0.0
        %2855 = vmatprep.subr.mxu0 0.0
        %2856 = vmatpush1.msra.mxu0 0.0
        %2857 = vmatprep.subr.mxu0 0.0
        %2858 = vmatpush1.msra.mxu0 0.0
        %2859 = vmatprep.subr.mxu0 0.0
        %2860 = vmatpush1.msra.mxu0 0.0
        %2861 = vmatprep.subr.mxu0 0.0
        %2862 = vmatpush1.msra.mxu0 0.0
        %2863 = vmatprep.subr.mxu0 0.0
        %2864 = vmatpush1.msra.mxu0 0.0
        %2865 = vmatprep.subr.mxu0 0.0
        %2866 = vmatpush1.msra.mxu0 0.0
        %2867 = vmatprep.subr.mxu0 0.0
        %2868 = vmatpush1.msra.mxu0 0.0
        %2869 = vmatprep.mubr.f32.mxu0 0.0
        %2870 = vmatmul.mubr.f32.gmra.mrb[0].mxu0 %v2803
        %v2871 = vpop.f32.mrb[0].mxu0
        %v2872 = vadd.f32 %v2726, %v2871
        %v2873 = vpop.f32.mrb[0].mxu0
        %2874 = vdwg.mxu0
        %v2876 = vsel %vm698, %v2490, 0
        %2878 = vmatprep.subr.mxu0 0.0
        %2879 = vmatpush1.msra.mxu0 %v1995
        %2880 = vmatprep.subr.mxu0 0.0
        %2881 = vmatpush1.msra.mxu0 0.0
        %2882 = vmatprep.subr.mxu0 0.0
        %2883 = vmatpush1.msra.mxu0 0.0
        %2884 = vmatprep.subr.mxu0 0.0
        %2885 = vmatpush1.msra.mxu0 0.0
        %2886 = vmatprep.subr.mxu0 0.0
        %2887 = vmatpush1.msra.mxu0 0.0
        %2888 = vmatprep.subr.mxu0 0.0
        %2889 = vmatpush1.msra.mxu0 0.0
        %2890 = vmatprep.subr.mxu0 0.0
        %2891 = vmatpush1.msra.mxu0 0.0
        %2892 = vmatprep.subr.mxu0 0.0
        %2893 = vmatpush1.msra.mxu0 0.0
        %2894 = vmatprep.subr.mxu0 0.0
        %2895 = vmatpush1.msra.mxu0 0.0
        %2896 = vmatprep.subr.mxu0 0.0
        %2897 = vmatpush1.msra.mxu0 0.0
        %2898 = vmatprep.subr.mxu0 0.0
        %2899 = vmatpush1.msra.mxu0 0.0
        %2900 = vmatprep.subr.mxu0 0.0
        %2901 = vmatpush1.msra.mxu0 0.0
        %2902 = vmatprep.subr.mxu0 0.0
        %2903 = vmatpush1.msra.mxu0 0.0
        %2904 = vmatprep.subr.mxu0 0.0
        %2905 = vmatpush1.msra.mxu0 0.0
        %2906 = vmatprep.subr.mxu0 0.0
        %2907 = vmatpush1.msra.mxu0 0.0
        %2908 = vmatprep.subr.mxu0 0.0
        %2909 = vmatpush1.msra.mxu0 0.0
        %2910 = vmatprep.subr.mxu0 0.0
        %2911 = vmatpush1.msra.mxu0 0.0
        %2912 = vmatprep.subr.mxu0 0.0
        %2913 = vmatpush1.msra.mxu0 0.0
        %2914 = vmatprep.subr.mxu0 0.0
        %2915 = vmatpush1.msra.mxu0 0.0
        %2916 = vmatprep.subr.mxu0 0.0
        %2917 = vmatpush1.msra.mxu0 0.0
        %2918 = vmatprep.subr.mxu0 0.0
        %2919 = vmatpush1.msra.mxu0 0.0
        %2920 = vmatprep.subr.mxu0 0.0
        %2921 = vmatpush1.msra.mxu0 0.0
        %2922 = vmatprep.subr.mxu0 0.0
        %2923 = vmatpush1.msra.mxu0 0.0
        %2924 = vmatprep.subr.mxu0 0.0
        %2925 = vmatpush1.msra.mxu0 0.0
        %2926 = vmatprep.subr.mxu0 0.0
        %2927 = vmatpush1.msra.mxu0 0.0
        %2928 = vmatprep.subr.mxu0 0.0
        %2929 = vmatpush1.msra.mxu0 0.0
        %2930 = vmatprep.subr.mxu0 0.0
        %2931 = vmatpush1.msra.mxu0 0.0
        %2932 = vmatprep.subr.mxu0 0.0
        %2933 = vmatpush1.msra.mxu0 0.0
        %2934 = vmatprep.subr.mxu0 0.0
        %2935 = vmatpush1.msra.mxu0 0.0
        %2936 = vmatprep.subr.mxu0 0.0
        %2937 = vmatpush1.msra.mxu0 0.0
        %2938 = vmatprep.subr.mxu0 0.0
        %2939 = vmatpush1.msra.mxu0 0.0
        %2940 = vmatprep.subr.mxu0 0.0
        %2941 = vmatpush1.msra.mxu0 0.0
        %2942 = vmatprep.mubr.f32.mxu0 0.0
        %2943 = vmatmul.mubr.f32.gmra.mrb[0].mxu0 %v2876
        %v2944 = vpop.f32.mrb[0].mxu0
        %v2945 = vadd.f32 %v2799, %v2944
        %v2946 = vpop.f32.mrb[0].mxu0
        %2947 = vdwg.mxu0
        %v2948 = vadd.f32 %v2872, %v2945
        %s2949 = scalar_lea.vmem %s7, 1
        %v2950 = vld [vmem:[%s2949] sm:$0x1]
        %v2952 = vlaneseq
        %v2953 = vshrl.u32 %v2952, 7
        %v2954 = vsub.s32 0, %v2953
        %v2955 = vrot.slane %v2950, %v2954
        %v2957 = vadd.f32 %v2948, %v2955
        %v2958 = vadd.f32 %v2957, %v1905
        %s2959 = scalar_lea.vmem %s8, 1
        %v2960 = vld [vmem:[%s2959] sm:$0x1]
        %s2961 = scalar_lea.vmem %s9, 1
        %v2962 = vld [vmem:[%s2961] sm:$0x1]
        %v2963 = vsel %vm576, %v2958, 0.0
        %2964 = vadd.xlane.f32.xlu0 %v2963
        %v2965 = vpop.xlane.xlu0 %2964
        %v2966 = vmul.f32 %v2965, %v580
        %v2967 = vmul.f32 %v2958, %v2958
        %v2968 = vsel %vm576, %v2967, 0.0
        %2969 = vadd.xlane.f32.xlu0 %v2968
        %v2970 = vpop.xlane.xlu0 %2969
        %v2971 = vmul.f32 %v2970, %v580
        %v2972 = vmul.f32 %v2966, %v2966
        %v2973 = vsub.f32 %v2971, %v2972
        %v2974 = vadd.f32 %v2973, 1e-12
        %v2975 = vrsqrt.pop %v2974
        %v2976 = vsub.f32 %v2958, %v2966
        %v2977 = vmul.f32 %v2976, %v2975
        %v2979 = vlaneseq
        %v2980 = vshrl.u32 %v2979, 7
        %v2981 = vsub.s32 0, %v2980
        %v2982 = vrot.slane %v2960, %v2981
        %v2984 = vmul.f32 %v2977, %v2982
        %v2986 = vlaneseq
        %v2987 = vshrl.u32 %v2986, 7
        %v2988 = vsub.s32 0, %v2987
        %v2989 = vrot.slane %v2962, %v2988
        %v2991 = vadd.f32 %v2984, %v2989
        %s2992 = scalar_lea.vmem %s10, 32
        %v2993 = vld [vmem:[%s2992] sm:$0xff]
        %v2994 = vld [vmem:[%s2992 + $0x8] sm:$0xff]
        %v2995 = vld [vmem:[%s2992 + $0x10] sm:$0xff]
        %v2996 = vld [vmem:[%s2992 + $0x18] sm:$0xff]
        %s2997 = scalar_lea.vmem %s11, 1
        %v2998 = vld [vmem:[%s2997] sm:$0x1]
        %v3000 = vlaneseq
        %v3001 = vshrl.u32 %v3000, 7
        %v3002 = vsub.s32 0, %v3001
        %v3003 = vrot.slane %v2998, %v3002
        %v3006 = vsel %vm576, %v2991, 0
        %3008 = vmatprep.subr.mxu0 0.0
        %3009 = vmatpush1.msra.mxu0 %v2993
        %3010 = vmatprep.subr.mxu0 0.0
        %3011 = vmatpush1.msra.mxu0 %v2994
        %3012 = vmatprep.subr.mxu0 0.0
        %3013 = vmatpush1.msra.mxu0 %v2995
        %3014 = vmatprep.subr.mxu0 0.0
        %3015 = vmatpush1.msra.mxu0 %v2996
        %3016 = vmatprep.subr.mxu0 0.0
        %3017 = vmatpush1.msra.mxu0 0.0
        %3018 = vmatprep.subr.mxu0 0.0
        %3019 = vmatpush1.msra.mxu0 0.0
        %3020 = vmatprep.subr.mxu0 0.0
        %3021 = vmatpush1.msra.mxu0 0.0
        %3022 = vmatprep.subr.mxu0 0.0
        %3023 = vmatpush1.msra.mxu0 0.0
        %3024 = vmatprep.subr.mxu0 0.0
        %3025 = vmatpush1.msra.mxu0 0.0
        %3026 = vmatprep.subr.mxu0 0.0
        %3027 = vmatpush1.msra.mxu0 0.0
        %3028 = vmatprep.subr.mxu0 0.0
        %3029 = vmatpush1.msra.mxu0 0.0
        %3030 = vmatprep.subr.mxu0 0.0
        %3031 = vmatpush1.msra.mxu0 0.0
        %3032 = vmatprep.subr.mxu0 0.0
        %3033 = vmatpush1.msra.mxu0 0.0
        %3034 = vmatprep.subr.mxu0 0.0
        %3035 = vmatpush1.msra.mxu0 0.0
        %3036 = vmatprep.subr.mxu0 0.0
        %3037 = vmatpush1.msra.mxu0 0.0
        %3038 = vmatprep.subr.mxu0 0.0
        %3039 = vmatpush1.msra.mxu0 0.0
        %3040 = vmatprep.subr.mxu0 0.0
        %3041 = vmatpush1.msra.mxu0 0.0
        %3042 = vmatprep.subr.mxu0 0.0
        %3043 = vmatpush1.msra.mxu0 0.0
        %3044 = vmatprep.subr.mxu0 0.0
        %3045 = vmatpush1.msra.mxu0 0.0
        %3046 = vmatprep.subr.mxu0 0.0
        %3047 = vmatpush1.msra.mxu0 0.0
        %3048 = vmatprep.subr.mxu0 0.0
        %3049 = vmatpush1.msra.mxu0 0.0
        %3050 = vmatprep.subr.mxu0 0.0
        %3051 = vmatpush1.msra.mxu0 0.0
        %3052 = vmatprep.subr.mxu0 0.0
        %3053 = vmatpush1.msra.mxu0 0.0
        %3054 = vmatprep.subr.mxu0 0.0
        %3055 = vmatpush1.msra.mxu0 0.0
        %3056 = vmatprep.subr.mxu0 0.0
        %3057 = vmatpush1.msra.mxu0 0.0
        %3058 = vmatprep.subr.mxu0 0.0
        %3059 = vmatpush1.msra.mxu0 0.0
        %3060 = vmatprep.subr.mxu0 0.0
        %3061 = vmatpush1.msra.mxu0 0.0
        %3062 = vmatprep.subr.mxu0 0.0
        %3063 = vmatpush1.msra.mxu0 0.0
        %3064 = vmatprep.subr.mxu0 0.0
        %3065 = vmatpush1.msra.mxu0 0.0
        %3066 = vmatprep.subr.mxu0 0.0
        %3067 = vmatpush1.msra.mxu0 0.0
        %3068 = vmatprep.subr.mxu0 0.0
        %3069 = vmatpush1.msra.mxu0 0.0
        %3070 = vmatprep.subr.mxu0 0.0
        %3071 = vmatpush1.msra.mxu0 0.0
        %3072 = vmatprep.mubr.f32.mxu0 0.0
        %3073 = vmatmul.mubr.f32.gmra.mrb[0].mxu0 %v3006
        %v3074 = vpop.f32.mrb[0].mxu0
        %v3075 = vadd.f32 %v3003, %v3074
        %v3076 = vpop.f32.mrb[0].mxu0
        %3077 = vdwg.mxu0
        %v3078 = vmul.f32 %v3075, 0.5
        %v3079 = vmul.f32 %v3075, 0.044715
        %v3080 = vmul.f32 %v3079, %v3075
        %v3081 = vmul.f32 %v3080, %v3075
        %v3082 = vadd.f32 %v3075, %v3081
        %v3083 = vmul.f32 %v3082, 0.7978846
        %v3084 = vtanh.pop %v3083
        %v3085 = vadd.f32 %v3084, 1.0
        %v3086 = vmul.f32 %v3078, %v3085
        %s3087 = scalar_lea.vmem %s12, 128
        %v3088 = vld [vmem:[%s3087] sm:$0xff]
        %v3089 = vld [vmem:[%s3087 + $0x8] sm:$0xff]
        %v3090 = vld [vmem:[%s3087 + $0x10] sm:$0xff]
        %v3091 = vld [vmem:[%s3087 + $0x18] sm:$0xff]
        %v3092 = vld [vmem:[%s3087 + $0x20] sm:$0xff]
        %v3093 = vld [vmem:[%s3087 + $0x28] sm:$0xff]
        %v3094 = vld [vmem:[%s3087 + $0x30] sm:$0xff]
        %v3095 = vld [vmem:[%s3087 + $0x38] sm:$0xff]
        %v3096 = vld [vmem:[%s3087 + $0x40] sm:$0xff]
        %v3097 = vld [vmem:[%s3087 + $0x48] sm:$0xff]
        %v3098 = vld [vmem:[%s3087 + $0x50] sm:$0xff]
        %v3099 = vld [vmem:[%s3087 + $0x58] sm:$0xff]
        %v3100 = vld [vmem:[%s3087 + $0x60] sm:$0xff]
        %v3101 = vld [vmem:[%s3087 + $0x68] sm:$0xff]
        %v3102 = vld [vmem:[%s3087 + $0x70] sm:$0xff]
        %v3103 = vld [vmem:[%s3087 + $0x78] sm:$0xff]
        %s3104 = scalar_lea.vmem %s13, 1
        %v3105 = vld [vmem:[%s3104] sm:$0x1]
        %v3107 = vlaneseq
        %v3108 = vshrl.u32 %v3107, 7
        %v3109 = vsub.s32 0, %v3108
        %v3110 = vrot.slane %v3105, %v3109
        %3112 = vmatprep.subr.mxu0 0.0
        %3113 = vmatpush1.msra.mxu0 %v3088
        %3114 = vmatprep.subr.mxu0 0.0
        %3115 = vmatpush1.msra.mxu0 %v3089
        %3116 = vmatprep.subr.mxu0 0.0
        %3117 = vmatpush1.msra.mxu0 %v3090
        %3118 = vmatprep.subr.mxu0 0.0
        %3119 = vmatpush1.msra.mxu0 %v3091
        %3120 = vmatprep.subr.mxu0 0.0
        %3121 = vmatpush1.msra.mxu0 %v3092
        %3122 = vmatprep.subr.mxu0 0.0
        %3123 = vmatpush1.msra.mxu0 %v3093
        %3124 = vmatprep.subr.mxu0 0.0
        %3125 = vmatpush1.msra.mxu0 %v3094
        %3126 = vmatprep.subr.mxu0 0.0
        %3127 = vmatpush1.msra.mxu0 %v3095
        %3128 = vmatprep.subr.mxu0 0.0
        %3129 = vmatpush1.msra.mxu0 %v3096
        %3130 = vmatprep.subr.mxu0 0.0
        %3131 = vmatpush1.msra.mxu0 %v3097
        %3132 = vmatprep.subr.mxu0 0.0
        %3133 = vmatpush1.msra.mxu0 %v3098
        %3134 = vmatprep.subr.mxu0 0.0
        %3135 = vmatpush1.msra.mxu0 %v3099
        %3136 = vmatprep.subr.mxu0 0.0
        %3137 = vmatpush1.msra.mxu0 %v3100
        %3138 = vmatprep.subr.mxu0 0.0
        %3139 = vmatpush1.msra.mxu0 %v3101
        %3140 = vmatprep.subr.mxu0 0.0
        %3141 = vmatpush1.msra.mxu0 %v3102
        %3142 = vmatprep.subr.mxu0 0.0
        %3143 = vmatpush1.msra.mxu0 %v3103
        %3144 = vmatprep.subr.mxu0 0.0
        %3145 = vmatpush1.msra.mxu0 0.0
        %3146 = vmatprep.subr.mxu0 0.0
        %3147 = vmatpush1.msra.mxu0 0.0
        %3148 = vmatprep.subr.mxu0 0.0
        %3149 = vmatpush1.msra.mxu0 0.0
        %3150 = vmatprep.subr.mxu0 0.0
        %3151 = vmatpush1.msra.mxu0 0.0
        %3152 = vmatprep.subr.mxu0 0.0
        %3153 = vmatpush1.msra.mxu0 0.0
        %3154 = vmatprep.subr.mxu0 0.0
        %3155 = vmatpush1.msra.mxu0 0.0
        %3156 = vmatprep.subr.mxu0 0.0
        %3157 = vmatpush1.msra.mxu0 0.0
        %3158 = vmatprep.subr.mxu0 0.0
        %3159 = vmatpush1.msra.mxu0 0.0
        %3160 = vmatprep.subr.mxu0 0.0
        %3161 = vmatpush1.msra.mxu0 0.0
        %3162 = vmatprep.subr.mxu0 0.0
        %3163 = vmatpush1.msra.mxu0 0.0
        %3164 = vmatprep.subr.mxu0 0.0
        %3165 = vmatpush1.msra.mxu0 0.0
        %3166 = vmatprep.subr.mxu0 0.0
        %3167 = vmatpush1.msra.mxu0 0.0
        %3168 = vmatprep.subr.mxu0 0.0
        %3169 = vmatpush1.msra.mxu0 0.0
        %3170 = vmatprep.subr.mxu0 0.0
        %3171 = vmatpush1.msra.mxu0 0.0
        %3172 = vmatprep.subr.mxu0 0.0
        %3173 = vmatpush1.msra.mxu0 0.0
        %3174 = vmatprep.subr.mxu0 0.0
        %3175 = vmatpush1.msra.mxu0 0.0
        %3176 = vmatprep.mubr.f32.mxu0 0.0
        %3177 = vmatmul.mubr.f32.gmra.mrb[0].mxu0 %v3086
        %v3178 = vpop.f32.mrb[0].mxu0
        %v3179 = vadd.f32 %v3110, %v3178
        %v3180 = vpop.f32.mrb[0].mxu0
        %3181 = vdwg.mxu0
        %v3182 = vadd.f32 %v3179, %v2991
        %s3183 = scalar_lea.vmem %s14, 1
        %v3184 = vld [vmem:[%s3183] sm:$0x1]
        %s3185 = scalar_lea.vmem %s15, 1
        %v3186 = vld [vmem:[%s3185] sm:$0x1]
        %v3187 = vsel %vm576, %v3182, 0.0
        %3188 = vadd.xlane.f32.xlu0 %v3187
        %v3189 = vpop.xlane.xlu0 %3188
        %v3190 = vmul.f32 %v3189, %v580
        %v3191 = vmul.f32 %v3182, %v3182
        %v3192 = vsel %vm576, %v3191, 0.0
        %3193 = vadd.xlane.f32.xlu0 %v3192
        %v3194 = vpop.xlane.xlu0 %3193
        %v3195 = vmul.f32 %v3194, %v580
        %v3196 = vmul.f32 %v3190, %v3190
        %v3197 = vsub.f32 %v3195, %v3196
        %v3198 = vadd.f32 %v3197, 1e-12
        %v3199 = vrsqrt.pop %v3198
        %v3200 = vsub.f32 %v3182, %v3190
        %v3201 = vmul.f32 %v3200, %v3199
        %v3203 = vlaneseq
        %v3204 = vshrl.u32 %v3203, 7
        %v3205 = vsub.s32 0, %v3204
        %v3206 = vrot.slane %v3184, %v3205
        %v3208 = vmul.f32 %v3201, %v3206
        %v3210 = vlaneseq
        %v3211 = vshrl.u32 %v3210, 7
        %v3212 = vsub.s32 0, %v3211
        %v3213 = vrot.slane %v3186, %v3212
        %v3215 = vadd.f32 %v3208, %v3213
        %v3216 = vld [vmem:[%s16] sm:$0xff]
        %v3217 = vld [vmem:[%s16 + $0x8] sm:$0xff]
        %v3218 = vld [vmem:[%s16 + $0x10] sm:$0xff]
        %v3219 = vld [vmem:[%s16 + $0x18] sm:$0xff]
        %v3220 = vld [vmem:[%s17] sm:$0x1]
        %v3222 = vlaneseq
        %v3223 = vshrl.u32 %v3222, 7
        %v3224 = vsub.s32 0, %v3223
        %v3225 = vrot.slane %v3220, %v3224
        %v3228 = vsel %vm576, %v3215, 0
        %3230 = vmatprep.subr.mxu0 0.0
        %3231 = vmatpush1.msra.mxu0 %v3216
        %3232 = vmatprep.subr.mxu0 0.0
        %3233 = vmatpush1.msra.mxu0 %v3217
        %3234 = vmatprep.subr.mxu0 0.0
        %3235 = vmatpush1.msra.mxu0 %v3218
        %3236 = vmatprep.subr.mxu0 0.0
        %3237 = vmatpush1.msra.mxu0 %v3219
        %3238 = vmatprep.subr.mxu0 0.0
        %3239 = vmatpush1.msra.mxu0 0.0
        %3240 = vmatprep.subr.mxu0 0.0
        %3241 = vmatpush1.msra.mxu0 0.0
        %3242 = vmatprep.subr.mxu0 0.0
        %3243 = vmatpush1.msra.mxu0 0.0
        %3244 = vmatprep.subr.mxu0 0.0
        %3245 = vmatpush1.msra.mxu0 0.0
        %3246 = vmatprep.subr.mxu0 0.0
        %3247 = vmatpush1.msra.mxu0 0.0
        %3248 = vmatprep.subr.mxu0 0.0
        %3249 = vmatpush1.msra.mxu0 0.0
        %3250 = vmatprep.subr.mxu0 0.0
        %3251 = vmatpush1.msra.mxu0 0.0
        %3252 = vmatprep.subr.mxu0 0.0
        %3253 = vmatpush1.msra.mxu0 0.0
        %3254 = vmatprep.subr.mxu0 0.0
        %3255 = vmatpush1.msra.mxu0 0.0
        %3256 = vmatprep.subr.mxu0 0.0
        %3257 = vmatpush1.msra.mxu0 0.0
        %3258 = vmatprep.subr.mxu0 0.0
        %3259 = vmatpush1.msra.mxu0 0.0
        %3260 = vmatprep.subr.mxu0 0.0
        %3261 = vmatpush1.msra.mxu0 0.0
        %3262 = vmatprep.subr.mxu0 0.0
        %3263 = vmatpush1.msra.mxu0 0.0
        %3264 = vmatprep.subr.mxu0 0.0
        %3265 = vmatpush1.msra.mxu0 0.0
        %3266 = vmatprep.subr.mxu0 0.0
        %3267 = vmatpush1.msra.mxu0 0.0
        %3268 = vmatprep.subr.mxu0 0.0
        %3269 = vmatpush1.msra.mxu0 0.0
        %3270 = vmatprep.subr.mxu0 0.0
        %3271 = vmatpush1.msra.mxu0 0.0
        %3272 = vmatprep.subr.mxu0 0.0
        %3273 = vmatpush1.msra.mxu0 0.0
        %3274 = vmatprep.subr.mxu0 0.0
        %3275 = vmatpush1.msra.mxu0 0.0
        %3276 = vmatprep.subr.mxu0 0.0
        %3277 = vmatpush1.msra.mxu0 0.0
        %3278 = vmatprep.subr.mxu0 0.0
        %3279 = vmatpush1.msra.mxu0 0.0
        %3280 = vmatprep.subr.mxu0 0.0
        %3281 = vmatpush1.msra.mxu0 0.0
        %3282 = vmatprep.subr.mxu0 0.0
        %3283 = vmatpush1.msra.mxu0 0.0
        %3284 = vmatprep.subr.mxu0 0.0
        %3285 = vmatpush1.msra.mxu0 0.0
        %3286 = vmatprep.subr.mxu0 0.0
        %3287 = vmatpush1.msra.mxu0 0.0
        %3288 = vmatprep.subr.mxu0 0.0
        %3289 = vmatpush1.msra.mxu0 0.0
        %3290 = vmatprep.subr.mxu0 0.0
        %3291 = vmatpush1.msra.mxu0 0.0
        %3292 = vmatprep.subr.mxu0 0.0
        %3293 = vmatpush1.msra.mxu0 0.0
        %3294 = vmatprep.mubr.f32.mxu0 0.0
        %3295 = vmatmul.mubr.f32.gmra.mrb[0].mxu0 %v3228
        %v3296 = vpop.f32.mrb[0].mxu0
        %v3297 = vadd.f32 %v3225, %v3296
        %v3298 = vpop.f32.mrb[0].mxu0
        %3299 = vdwg.mxu0
        %3300 = vst [vmem:[%s566] sm:$0xff] %v3297
        %s3301 = sand.u32 %s423, 1
        %s3302 = scalar_lea.sflag [#allocation3], %s3301
        %s3303 = sand.u32 %s423, 1
        %s3304 = smul.addr %s3303, 8
        %s3305 = scalar_lea.vmem [#allocation2], %s3304
        // Predicated region
        $region93: #{detectbert_line_classifier.1} parent=91 // pred_check
          %p3306 = pneg %p433
        $region94: #{detectbert_line_classifier.1} parent=91 // pred_check_branch
          %3308 = sbr.rel (%p3306) target = $region96
        $region95: #{detectbert_line_classifier.1} parent=91 // pred_region
          %s3310 = ssub.s32 128, 128
          %3311 = vsyncadd %s3302, %s3310
          %s3312 = smul.addr %s32, 128
          %s3313 = scalar_lea.hbm %s18, %s3312
          %s3315 = sshll.u32 %s3305, 4
          %s3316 = int_to_ptr.vmem [resolvable:$true] %s3315
          %3318 = dma.vmem_to_hbm [thread:$0]  %s3316, 128, %s3313, %s3302
        $region96: #{detectbert_line_classifier.1} parent=91 // pred_fallthru
          _
      $region92: #{detectbert_line_classifier.1} parent=5 // pred_fallthru
        _
      %p3319 = scmp.le.s32.totalorder 2, %s27
      // Predicated region
      $region97: #{detectbert_line_classifier.1} parent=5 // pred_check
        %p3320 = pneg %p3319
      $region98: #{detectbert_line_classifier.1} parent=5 // pred_check_branch
        %3322 = sbr.rel (%p3320) target = $region100
      $region99: #{detectbert_line_classifier.1} parent=5 // pred_region
        %s3323 = ssub.s32 %s27, 2
        // Predicated region
        $region101: #{detectbert_line_classifier.1} parent=99 // pred_check
          %p3324 = pneg %p439
        $region102: #{detectbert_line_classifier.1} parent=99 // pred_check_branch
          %3326 = sbr.rel (%p3324) target = $region104
        $region103: #{detectbert_line_classifier.1} parent=99 // pred_region
          %s3327 = sand.u32 %s424, 1
          %s3328 = scalar_lea.sflag [#allocation3], %s3327
          %s3329 = sand.u32 %s424, 1
          %s3330 = smul.addr %s3329, 8
          %s3331 = scalar_lea.vmem [#allocation2], %s3330
          %3332 = dma.done %s3328, 128
        $region104: #{detectbert_line_classifier.1} parent=99 // pred_fallthru
          _
      $region100: #{detectbert_line_classifier.1} parent=5 // pred_fallthru
        _
    $region6: #{detectbert_line_classifier.1} parent=1 // loop_footer
      %s31 = sadd.s32 1, %s27
    $region7: #{detectbert_line_classifier.1} parent=1 // loop_footer_branch
      %26 = sbr.rel target = $region3
    $region8: #{detectbert_line_classifier.1} parent=1 // loop_exit
      _
    %3333 = vsyncpa [#allocation3], 1
    %s3334 = scalar_lea.sflag [#allocation3], 1
    %3335 = vsyncpa %s3334, 1

</llo_original>
